<compile_context>
chip_gen: v6e
topology: v6e:2x2x1
jax: 0.10.0
libtpu: 0.0.40
codegen_flags: <defaults>
</compile_context>

<pallas_src>
import functools

import numpy as np

import jax
import jax.numpy as jnp
from jax.experimental import pallas as pl
from jax.experimental.pallas import tpu as pltpu


# ---------------------------------------------------------------------------
# Pallas kernel 1: conv1 as an M-tiled matmul + bias + relu
# ---------------------------------------------------------------------------

def _conv1_kernel(p_ref, w_ref, b_ref, o_ref):
    y = jnp.dot(p_ref[...], w_ref[...], preferred_element_type=jnp.float32)
    o_ref[...] = jnp.maximum(y + b_ref[...], 0.0)


def _conv1_tile_rows(M):
    """8-aligned row tile: >=2 blocks whenever possible (v7x two-TC sharding and
    DMA/compute overlap), capped at 2048 rows (~0.56 MiB per double-buffered
    block) so large M amortizes the ~0.35us per-grid-step overhead."""
    if M <= 8:
        return M
    tm = (((M + 1) // 2) + 7) // 8 * 8
    return min(tm, 2048)


def conv1_matmul_relu(p1, w, b):
    """relu(p1 @ w + b).  p1:(M,64)  w:(64,4)  b:(1,4)."""
    M, K = p1.shape
    N = w.shape[1]
    tm = _conv1_tile_rows(M)
    grid = (pl.cdiv(M, tm),)
    return pl.pallas_call(
        _conv1_kernel,
        out_shape=jax.ShapeDtypeStruct((M, N), jnp.float32),
        grid=grid,
        in_specs=[
            pl.BlockSpec((tm, K), lambda i: (i, 0)),
            pl.BlockSpec((K, N), lambda i: (0, 0)),
            pl.BlockSpec((1, N), lambda i: (0, 0)),
        ],
        out_specs=pl.BlockSpec((tm, N), lambda i: (i, 0)),
        compiler_params=pltpu.CompilerParams(
            dimension_semantics=("parallel",),
            vmem_limit_bytes=32 * 1024 * 1024,
        ),
    )(p1, w, b)


# ---------------------------------------------------------------------------
# Pallas kernel 2: fused trunk (conv2 + fc1 + LSTM stack + heads), time-chunked
# ---------------------------------------------------------------------------

def make_trunk_kernel(Tc, B, num_layers, hidden, action_size, conv_feat):
    """Fused trunk body; Tc (chunk length), B, layer count etc. are static."""
    H = hidden

    def kernel(y1_ref, pose_ref, h0_ref, c0_ref,
               m2_ref, b2_ref, wf_ref, bf_ref, wh_ref, bh_ref, *rest):
        lstm_refs = rest[:3 * num_layers]
        head_ref, state_ref, h_st, c_st = rest[3 * num_layers:]

        # Seed the carried LSTM state from the kernel inputs on the first chunk.
        @pl.when(pl.program_id(0) == 0)
        def _():
            h_st[...] = h0_ref[...]
            c_st[...] = c0_ref[...]

        # ---- hoisted ref reads: once per chunk, never per timestep ----
        m2 = m2_ref[...]
        b2 = b2_ref[...]
        wf = wf_ref[...]
        bf = bf_ref[...]
        wh = wh_ref[...]
        bh = bh_ref[...]

        # ---- conv2 (im2col folded into m2) + frame_fc1, batched over Tc*B ----
        # Two MXU matmuls per chunk, completely off the serial recurrence.
        c2 = jnp.dot(y1_ref[...], m2, preferred_element_type=jnp.float32) + b2
        c2 = jnp.maximum(c2, 0.0)                                   # (TcB, 72)
        out1 = jnp.dot(c2, wf, preferred_element_type=jnp.float32) + bf
        out1 = jnp.maximum(out1, 0.0)                               # (TcB, 32)

        # ---- LSTM stack, layer-major: one batched x@W_ih(+bias) per layer;
        #      per-step serial chain is only h@W_hh + elementwise ----
        x_seq = pose_ref[...]                                       # (TcB, in)
        for l in range(num_layers):
            whh = lstm_refs[3 * l + 1][...]                         # (H, 4H)
            xproj = (jnp.dot(x_seq, lstm_refs[3 * l][...],
                             preferred_element_type=jnp.float32)
                     + lstm_refs[3 * l + 2][...])                   # (TcB, 4H)
            h_l = h_st[l]                                           # (B, H)
            c_l = c_st[l]
            hs = []
            for t in range(Tc):                                     # gate order i,f,g,o
                gates = xproj[t * B:(t + 1) * B, :] + jnp.dot(
                    h_l, whh, preferred_element_type=jnp.float32)   # (B, 4H)
                # Whole-vreg transcendentals (EUP), then 32-lane selects.
                # TODO(synk): pltpu.roll 128-lane gate update is a possible
                # micro-opt; verify in a bundle dump before adopting.
                sg = jax.nn.sigmoid(gates)
                th = jnp.tanh(gates)
                i_g = sg[:, 0 * H:1 * H]
                f_g = sg[:, 1 * H:2 * H]
                g_g = th[:, 2 * H:3 * H]
                o_g = sg[:, 3 * H:4 * H]
                c_l = f_g * c_l + i_g * g_g
                h_l = o_g * jnp.tanh(c_l)
                hs.append(h_l)
            h_st[l] = h_l
            c_st[l] = c_l
            x_seq = jnp.concatenate(hs, axis=0)                     # (TcB, H)

        # ---- merged value/policy head (K-split (64,1+A) weight) + EXACT
        #      softmax, once per chunk; single lane-merged store ----
        y = (jnp.dot(out1, wh[0:conv_feat, :],
                     preferred_element_type=jnp.float32)
             + jnp.dot(x_seq, wh[conv_feat:, :],
                       preferred_element_type=jnp.float32)
             + bh)                                                  # (TcB, 1+A)
        logits = y[:, 1:1 + action_size]
        m = jnp.max(logits, axis=-1, keepdims=True)
        e = jnp.exp(logits - m)
        probs = e / jnp.sum(e, axis=-1, keepdims=True)              # exact (PPO ratios)
        head_ref[...] = jnp.concatenate([y[:, 0:1], probs], axis=-1)

        # ---- final LSTM state written exactly once, lane-merged (L, B, 2H) ----
        @pl.when(pl.program_id(0) == pl.num_programs(0) - 1)
        def _():
            state_ref[...] = jnp.concatenate([h_st[...], c_st[...]], axis=-1)

    return kernel


# ---------------------------------------------------------------------------
# Plain-JAX glue: im2col for conv1 (pure slicing / layout, fused by XLA)
# ---------------------------------------------------------------------------

def im2col(x, k, s):
    """x:(N,C,H,W) -> patches (N*oh*ow, C*k*k), feature order (C, kh, kw)."""
    N, C, H, W = x.shape
    oh = (H - k) // s + 1
    ow = (W - k) // s + 1
    cols = []
    for i in range(k):
        for j in range(k):
            cols.append(x[:, :, i::s, j::s][:, :, :oh, :ow])        # (N,C,oh,ow)
    p = jnp.stack(cols, axis=2)                                     # (N,C,k*k,oh,ow)
    p = p.transpose(0, 3, 4, 1, 2).reshape(N * oh * ow, C * k * k)
    return p, oh, ow


# ---------------------------------------------------------------------------
# Parameters: PyTorch-layout init + one-time prep into kernel operand layout
# ---------------------------------------------------------------------------

def _uniform(key, shape, fan_in):
    bound = 1.0 / float(fan_in) ** 0.5
    return jax.random.uniform(key, shape, jnp.float32, -bound, bound)


def init_torch_params(key, action_size, num_layers, hidden=32):
    ks = jax.random.split(key, 10 + 4 * num_layers)
    it = iter(ks)
    p = {}
    p["conv1_w"] = _uniform(next(it), (4, 1, 8, 8), 1 * 8 * 8)
    p["conv1_b"] = _uniform(next(it), (4,), 1 * 8 * 8)
    p["conv2_w"] = _uniform(next(it), (8, 4, 4, 4), 4 * 4 * 4)
    p["conv2_b"] = _uniform(next(it), (8,), 4 * 4 * 4)
    p["fc1_w"] = _uniform(next(it), (32, 72), 72)
    p["fc1_b"] = _uniform(next(it), (32,), 72)
    p["lstm"] = []
    for layer in range(num_layers):
        in_sz = 2 if layer == 0 else hidden
        w_ih = _uniform(next(it), (4 * hidden, in_sz), hidden)
        w_hh = _uniform(next(it), (4 * hidden, hidden), hidden)
        b_ih = _uniform(next(it), (4 * hidden,), hidden)
        b_hh = _uniform(next(it), (4 * hidden,), hidden)
        p["lstm"].append((w_ih, w_hh, b_ih, b_hh))
    p["val_w"] = _uniform(next(it), (1, 64), 64)
    p["val_b"] = _uniform(next(it), (1,), 64)
    p["pol_w"] = _uniform(next(it), (action_size, 64), 64)
    p["pol_b"] = _uniform(next(it), (action_size,), 64)
    return p


def build_conv2_matrix(conv2_w, conv2_b):
    """Fold conv2's im2col gather + weight into one (324, 72) matrix.

    Rows: conv1 outputs flattened as (p*9+q)*4 + c (p,q = conv1 spatial 9x9,
    c = conv1 channel).  Columns: torch's conv2-output flatten order
    o*9 + i2*3 + j2.  conv2: kernel 4, stride 2 -> p = 2*i2+kh, q = 2*j2+kw.
    """
    w2 = np.asarray(conv2_w)          # (8, 4, 4, 4) = (out, in, kh, kw)
    out_c, in_c, k, _ = w2.shape
    m = np.zeros((9 * 9 * in_c, out_c * 3 * 3), np.float32)
    for i2 in range(3):
        for j2 in range(3):
            cols = np.array([o * 9 + i2 * 3 + j2 for o in range(out_c)])
            for kh in range(k):
                for kw in range(k):
                    p_, q_ = 2 * i2 + kh, 2 * j2 + kw
                    row0 = (p_ * 9 + q_) * in_c
                    m[row0:row0 + in_c, cols] = w2[:, :, kh, kw].T  # (in_c,out_c)
    b = np.repeat(np.asarray(conv2_b), 9)[None, :].astype(np.float32)  # (1, 72)
    return jnp.asarray(m), jnp.asarray(b)


def prepare_kernel_params(tp):
    """Torch-layout params -> kernel operand layout (transposes, folds)."""
    kp = {}
    kp["w1"] = jnp.transpose(tp["conv1_w"].reshape(4, 64))            # (64, 4)
    kp["b1"] = tp["conv1_b"][None, :]                                 # (1, 4)
    kp["m2"], kp["b2"] = build_conv2_matrix(tp["conv2_w"], tp["conv2_b"])
    kp["fc1_w"] = jnp.transpose(tp["fc1_w"])                          # (72, 32)
    kp["fc1_b"] = tp["fc1_b"][None, :]                                # (1, 32)
    kp["lstm_wih"] = [jnp.transpose(w_ih) for (w_ih, _, _, _) in tp["lstm"]]
    kp["lstm_whh"] = [jnp.transpose(w_hh) for (_, w_hh, _, _) in tp["lstm"]]
    kp["lstm_b"] = [(b_ih + b_hh)[None, :] for (_, _, b_ih, b_hh) in tp["lstm"]]
    kp["w_heads"] = jnp.concatenate(
        [jnp.transpose(tp["val_w"]), jnp.transpose(tp["pol_w"])], axis=1)  # (64,1+A)
    kp["b_heads"] = jnp.concatenate([tp["val_b"], tp["pol_b"]])[None, :]   # (1,1+A)
    return kp


# ---------------------------------------------------------------------------
# Forward pass (mirrors PPO_LSTM3.forward)
# ---------------------------------------------------------------------------

def _largest_divisor_leq(n, cap):
    best = 1
    for d in range(1, min(n, cap) + 1):
        if n % d == 0:
            best = d
    return best


def ppo_lstm3_forward(kp, frame, robot_pose, h_in, c_in, time_chunk=16):
    T, B, C_in, Hh, Ww = frame.shape         # expects C_in=1, H=W=40
    N = T * B
    x = frame.reshape(N, C_in, Hh, Ww).astype(jnp.float32)

    # conv1 (k=8, s=4) + relu as an im2col matmul (Pallas call 1).
    # TODO(synk): if profiling shows dispatch/copy overhead dominating, fold
    # conv1 into the trunk; kept split because the (N*81,4)->(N,324) feature
    # relayout does not stay inside (8,128) tiles in-kernel, while here it is a
    # free row-major metadata reshape in HBM.
    p1, oh1, ow1 = im2col(x, 8, 4)                                    # (N*81, 64)
    y1 = conv1_matmul_relu(p1, kp["w1"], kp["b1"])                    # (N*81, 4)

    num_layers = len(kp["lstm_wih"])
    hidden = kp["lstm_whh"][0].shape[0]
    action_size = kp["w_heads"].shape[1] - 1
    conv_feat = kp["fc1_w"].shape[1]
    f_conv = oh1 * ow1 * kp["w1"].shape[1]                            # 324

    # Time chunking: Tc | T so the recurrence never sees padded steps; Tc<=16
    # caps the per-chunk unroll (vreg live ranges); grid axis is "arbitrary"
    # because LSTM state is carried across chunks in VMEM scratch.
    Tc = _largest_divisor_leq(T, max(1, time_chunk))
    C = T // Tc
    TcB = Tc * B

    # Zero-copy metadata reshapes in HBM (row-major layouts line up exactly).
    y1c = y1.reshape(C, TcB, f_conv)                                  # (C,TcB,324)
    posec = robot_pose.astype(jnp.float32).reshape(C, TcB,
                                                   robot_pose.shape[-1])

    lstm_flat = []
    for layer in range(num_layers):
        lstm_flat += [kp["lstm_wih"][layer], kp["lstm_whh"][layer],
                      kp["lstm_b"][layer]]

    kernel = make_trunk_kernel(Tc, B, num_layers, hidden, action_size,
                               conv_feat)

    def chunk_spec(feat):
        return pl.BlockSpec((None, TcB, feat), lambda i: (i, 0, 0))

    def full2d(a):
        return pl.BlockSpec(a.shape, lambda i: (0, 0))

    state_in_spec = pl.BlockSpec((num_layers, B, hidden), lambda i: (0, 0, 0))

    in_specs = [
        chunk_spec(f_conv),                         # y1 time chunks
        chunk_spec(posec.shape[-1]),                # pose time chunks
        state_in_spec, state_in_spec,               # h_in, c_in
        full2d(kp["m2"]), full2d(kp["b2"]),
        full2d(kp["fc1_w"]), full2d(kp["fc1_b"]),
        full2d(kp["w_heads"]), full2d(kp["b_heads"]),
    ] + [full2d(w) for w in lstm_flat]

    out_specs = (
        pl.BlockSpec((None, TcB, 1 + action_size), lambda i: (i, 0, 0)),
        pl.BlockSpec((num_layers, B, 2 * hidden), lambda i: (0, 0, 0)),
    )

    head, state = pl.pallas_call(
        kernel,
        grid=(C,),
        in_specs=in_specs,
        out_specs=out_specs,
        out_shape=(
            jax.ShapeDtypeStruct((C, TcB, 1 + action_size), jnp.float32),
            jax.ShapeDtypeStruct((num_layers, B, 2 * hidden), jnp.float32),
        ),
        scratch_shapes=[
            pltpu.VMEM((num_layers, B, hidden), jnp.float32),   # carried h
            pltpu.VMEM((num_layers, B, hidden), jnp.float32),   # carried c
        ],
        compiler_params=pltpu.CompilerParams(
            dimension_semantics=("arbitrary",),
            vmem_limit_bytes=32 * 1024 * 1024,
        ),
    )(y1c, posec, h_in.astype(jnp.float32), c_in.astype(jnp.float32),
      kp["m2"], kp["b2"], kp["fc1_w"], kp["fc1_b"],
      kp["w_heads"], kp["b_heads"], *lstm_flat)

    head = head.reshape(T, B, 1 + action_size)
    val = head[..., 0:1]
    pol = head[..., 1:]
    h_out = state[..., :hidden]
    c_out = state[..., hidden:]
    return val, pol, h_out, c_out


# ---------------------------------------------------------------------------
# Pure-JAX reference (mirrors the PyTorch module) for a structural sanity check
# ---------------------------------------------------------------------------

def reference_forward(tp, frame, robot_pose, h_in, c_in):
    T, B, C, Hh, Ww = frame.shape
    hidden = h_in.shape[-1]
    x = frame.reshape(T * B, C, Hh, Ww)
    y = jax.lax.conv_general_dilated(
        x, tp["conv1_w"], (4, 4), "VALID",
        dimension_numbers=("NCHW", "OIHW", "NCHW"))
    y = jax.nn.relu(y + tp["conv1_b"][None, :, None, None])
    y = jax.lax.conv_general_dilated(
        y, tp["conv2_w"], (2, 2), "VALID",
        dimension_numbers=("NCHW", "OIHW", "NCHW"))
    y = jax.nn.relu(y + tp["conv2_b"][None, :, None, None])
    out1 = y.reshape(T, B, -1)
    out1 = jax.nn.relu(out1 @ tp["fc1_w"].T + tp["fc1_b"])

    L = len(tp["lstm"])
    h = [h_in[l] for l in range(L)]
    c = [c_in[l] for l in range(L)]
    outs = []
    for t in range(T):
        x_t = robot_pose[t]
        for l, (w_ih, w_hh, b_ih, b_hh) in enumerate(tp["lstm"]):
            g = x_t @ w_ih.T + b_ih + h[l] @ w_hh.T + b_hh
            i_g = jax.nn.sigmoid(g[:, 0 * hidden:1 * hidden])
            f_g = jax.nn.sigmoid(g[:, 1 * hidden:2 * hidden])
            g_g = jnp.tanh(g[:, 2 * hidden:3 * hidden])
            o_g = jax.nn.sigmoid(g[:, 3 * hidden:4 * hidden])
            c[l] = f_g * c[l] + i_g * g_g
            h[l] = o_g * jnp.tanh(c[l])
            x_t = h[l]
        outs.append(x_t)
    out2 = jnp.stack(outs, axis=0)
    feat = jnp.concatenate([out1, out2], axis=2)
    val = feat @ tp["val_w"].T + tp["val_b"]
    pol = jax.nn.softmax(feat @ tp["pol_w"].T + tp["pol_b"], axis=2)
    return val, pol, jnp.stack(h, axis=0), jnp.stack(c, axis=0)


# ---------------------------------------------------------------------------
# Example run
# ---------------------------------------------------------------------------

if __name__ == "__main__":
    ACTION_SIZE = 5
    NUM_LAYERS = 2
    HIDDEN = 32
    T, B = 8, 2                        # seq len, batch (-> 2 time chunks of 4)

    key = jax.random.PRNGKey(0)
    k_par, k_f, k_p, k_h, k_c = jax.random.split(key, 5)

    tp = init_torch_params(k_par, ACTION_SIZE, NUM_LAYERS, HIDDEN)
    kp = prepare_kernel_params(tp)

    frame = jax.random.normal(k_f, (T, B, 1, 40, 40), jnp.float32)
    robot_pose = jax.random.normal(k_p, (T, B, 2), jnp.float32)
    h_in = jax.random.normal(k_h, (NUM_LAYERS, B, HIDDEN), jnp.float32)
    c_in = jax.random.normal(k_c, (NUM_LAYERS, B, HIDDEN), jnp.float32)

    # time_chunk=4 -> 2-chunk grid, exercising the cross-chunk state carry.
    fwd = jax.jit(functools.partial(ppo_lstm3_forward, time_chunk=4))
    val, pol, h_out, c_out = fwd(kp, frame, robot_pose, h_in, c_in)
    jax.block_until_ready((val, pol, h_out, c_out))

    # --- structural checks ---
    assert val.shape == (T, B, 1)
    assert pol.shape == (T, B, ACTION_SIZE)
    assert h_out.shape == (NUM_LAYERS, B, HIDDEN)
    assert c_out.shape == (NUM_LAYERS, B, HIDDEN)
    assert bool(jnp.all(jnp.isfinite(val))) and bool(jnp.all(jnp.isfinite(pol)))
    # exact softmax now: rows sum to 1 to f32 accuracy
    assert bool(jnp.allclose(jnp.sum(pol, axis=2), 1.0, atol=1e-5))

    # --- check against a plain-JAX reference of the PyTorch module.  Remaining
    #     slack is MXU default-precision / accumulation-order differences
    #     between the Pallas matmuls and XLA's conv+dot (not the softmax, which
    #     is now exact); structural bugs (layout / gate order / conv2 folding)
    #     would show up as O(0.1-1) errors.
    rval, rpol, rh, rc = jax.jit(reference_forward)(tp, frame, robot_pose,
                                                    h_in, c_in)
    tol = 5e-3
    assert bool(jnp.max(jnp.abs(val - rval)) < tol)
    assert bool(jnp.max(jnp.abs(pol - rpol)) < tol)
    assert bool(jnp.max(jnp.abs(h_out - rh)) < tol)
    assert bool(jnp.max(jnp.abs(c_out - rc)) < tol)

    print("KERNEL_OK")
</pallas_src>

<mosaic_0001>
module attributes {stable_mosaic.version = 11 : i64} {
  func.func @_conv1_kernel(%arg0: i32, %arg1: memref<648x64xf32, #tpu.memory_space<vmem>>, %arg2: memref<64x4xf32, #tpu.memory_space<vmem>>, %arg3: memref<1x4xf32, #tpu.memory_space<vmem>>, %arg4: memref<648x4xf32, #tpu.memory_space<vmem>>) attributes {dimension_semantics = [#tpu.dimension_semantics<parallel>], iteration_bounds = array<i64: 2>, scalar_prefetch = 0 : i64, scratch_operands = 0 : i64, tpu.core_type = #tpu.core_type<tc>, window_params = [{transform_indices = @transform_0, window_bounds = array<i64: 648, 64>}, {pipeline_mode = #tpu.pipeline_mode<synchronous>, transform_indices = @transform_1, window_bounds = array<i64: 64, 4>}, {pipeline_mode = #tpu.pipeline_mode<synchronous>, transform_indices = @transform_2, window_bounds = array<i64: 1, 4>}, {transform_indices = @transform_3, window_bounds = array<i64: 648, 4>}]} {
    %c0 = arith.constant 0 : index
    %c0_0 = arith.constant 0 : index
    %0 = vector.load %arg1[%c0, %c0_0] : memref<648x64xf32, #tpu.memory_space<vmem>>, vector<648x64xf32>
    %c0_1 = arith.constant 0 : index
    %c0_2 = arith.constant 0 : index
    %1 = vector.load %arg2[%c0_1, %c0_2] : memref<64x4xf32, #tpu.memory_space<vmem>>, vector<64x4xf32>
    %cst = arith.constant dense<0.000000e+00> : vector<648x4xf32>
    %2 = tpu.matmul %0, %1, %cst {dimension_numbers = #tpu.dot_dimension_numbers<[1], [0], [0], [1], [0, 0, 1, 1], [], []>} : vector<648x64xf32>, vector<64x4xf32>, vector<648x4xf32> -> vector<648x4xf32>
    %c0_3 = arith.constant 0 : index
    %c0_4 = arith.constant 0 : index
    %3 = vector.load %arg3[%c0_3, %c0_4] : memref<1x4xf32, #tpu.memory_space<vmem>>, vector<1x4xf32>
    %4 = vector.broadcast %3 : vector<1x4xf32> to vector<648x4xf32>
    %5 = arith.addf %2, %4 : vector<648x4xf32>
    %cst_5 = arith.constant 0.000000e+00 : f32
    %6 = vector.broadcast %cst_5 : f32 to vector<648x4xf32>
    %7 = arith.maximumf %5, %6 : vector<648x4xf32>
    %c0_6 = arith.constant 0 : index
    %c0_7 = arith.constant 0 : index
    %8 = vector.load %arg4[%c0_6, %c0_7] : memref<648x4xf32, #tpu.memory_space<vmem>>, vector<648x4xf32>
    tpu.vector_store %arg4[%c0_6, %c0_7], %7 {strides = array<i32>} : memref<648x4xf32, #tpu.memory_space<vmem>>, vector<648x4xf32>,
    return
  }
  func.func @transform_0(%arg0: i32) -> (i32, i32) {
    %c0_i32 = arith.constant 0 : i32
    %c0_i32_0 = arith.constant 0 : i32
    return %arg0, %c0_i32 : i32, i32
  }
  func.func @transform_1(%arg0: i32) -> (i32, i32) {
    %c0_i32 = arith.constant 0 : i32
    %c0_i32_0 = arith.constant 0 : i32
    %c0_i32_1 = arith.constant 0 : i32
    return %c0_i32, %c0_i32_0 : i32, i32
  }
  func.func @transform_2(%arg0: i32) -> (i32, i32) {
    %c0_i32 = arith.constant 0 : i32
    %c0_i32_0 = arith.constant 0 : i32
    %c0_i32_1 = arith.constant 0 : i32
    return %c0_i32, %c0_i32_0 : i32, i32
  }
  func.func @transform_3(%arg0: i32) -> (i32, i32) {
    %c0_i32 = arith.constant 0 : i32
    %c0_i32_0 = arith.constant 0 : i32
    return %arg0, %c0_i32 : i32, i32
  }
}

module attributes {stable_mosaic.version = 11 : i64} {
  func.func @kernel(%arg0: i32, %arg1: memref<1x8x324xf32, #tpu.memory_space<vmem>>, %arg2: memref<1x8x2xf32, #tpu.memory_space<vmem>>, %arg3: memref<2x2x32xf32, #tpu.memory_space<vmem>>, %arg4: memref<2x2x32xf32, #tpu.memory_space<vmem>>, %arg5: memref<324x72xf32, #tpu.memory_space<vmem>>, %arg6: memref<1x72xf32, #tpu.memory_space<vmem>>, %arg7: memref<72x32xf32, #tpu.memory_space<vmem>>, %arg8: memref<1x32xf32, #tpu.memory_space<vmem>>, %arg9: memref<64x6xf32, #tpu.memory_space<vmem>>, %arg10: memref<1x6xf32, #tpu.memory_space<vmem>>, %arg11: memref<2x128xf32, #tpu.memory_space<vmem>>, %arg12: memref<32x128xf32, #tpu.memory_space<vmem>>, %arg13: memref<1x128xf32, #tpu.memory_space<vmem>>, %arg14: memref<32x128xf32, #tpu.memory_space<vmem>>, %arg15: memref<32x128xf32, #tpu.memory_space<vmem>>, %arg16: memref<1x128xf32, #tpu.memory_space<vmem>>, %arg17: memref<1x8x6xf32, #tpu.memory_space<vmem>>, %arg18: memref<2x2x64xf32, #tpu.memory_space<vmem>>, %arg19: memref<2x2x32xf32, #tpu.memory_space<vmem>>, %arg20: memref<2x2x32xf32, #tpu.memory_space<vmem>>) attributes {dimension_semantics = [#tpu.dimension_semantics<arbitrary>], iteration_bounds = array<i64: 2>, scalar_prefetch = 0 : i64, scratch_operands = 2 : i64, tpu.core_type = #tpu.core_type<tc>, window_params = [{transform_indices = @transform_0, window_bounds = array<i64: 1, 8, 324>}, {transform_indices = @transform_1, window_bounds = array<i64: 1, 8, 2>}, {pipeline_mode = #tpu.pipeline_mode<synchronous>, transform_indices = @transform_2, window_bounds = array<i64: 2, 2, 32>}, {pipeline_mode = #tpu.pipeline_mode<synchronous>, transform_indices = @transform_3, window_bounds = array<i64: 2, 2, 32>}, {pipeline_mode = #tpu.pipeline_mode<synchronous>, transform_indices = @transform_4, window_bounds = array<i64: 324, 72>}, {pipeline_mode = #tpu.pipeline_mode<synchronous>, transform_indices = @transform_5, window_bounds = array<i64: 1, 72>}, {pipeline_mode = #tpu.pipeline_mode<synchronous>, transform_indices = @transform_6, window_bounds = array<i64: 72, 32>}, {pipeline_mode = #tpu.pipeline_mode<synchronous>, transform_indices = @transform_7, window_bounds = array<i64: 1, 32>}, {pipeline_mode = #tpu.pipeline_mode<synchronous>, transform_indices = @transform_8, window_bounds = array<i64: 64, 6>}, {pipeline_mode = #tpu.pipeline_mode<synchronous>, transform_indices = @transform_9, window_bounds = array<i64: 1, 6>}, {pipeline_mode = #tpu.pipeline_mode<synchronous>, transform_indices = @transform_10, window_bounds = array<i64: 2, 128>}, {pipeline_mode = #tpu.pipeline_mode<synchronous>, transform_indices = @transform_11, window_bounds = array<i64: 32, 128>}, {pipeline_mode = #tpu.pipeline_mode<synchronous>, transform_indices = @transform_12, window_bounds = array<i64: 1, 128>}, {pipeline_mode = #tpu.pipeline_mode<synchronous>, transform_indices = @transform_13, window_bounds = array<i64: 32, 128>}, {pipeline_mode = #tpu.pipeline_mode<synchronous>, transform_indices = @transform_14, window_bounds = array<i64: 32, 128>}, {pipeline_mode = #tpu.pipeline_mode<synchronous>, transform_indices = @transform_15, window_bounds = array<i64: 1, 128>}, {transform_indices = @transform_16, window_bounds = array<i64: 1, 8, 6>}, {pipeline_mode = #tpu.pipeline_mode<synchronous>, transform_indices = @transform_17, window_bounds = array<i64: 2, 2, 64>}]} {
    %c0_i32 = arith.constant 0 : i32
    %0 = arith.cmpi eq, %arg0, %c0_i32 : i32
    %1 = arith.extui %0 : i1 to i32
    %c0_i32_0 = arith.constant 0 : i32
    %2 = arith.cmpi ne, %1, %c0_i32_0 : i32
    scf.if %2 {
      %c0_82 = arith.constant 0 : index
      %c0_83 = arith.constant 0 : index
      %c0_84 = arith.constant 0 : index
      %226 = vector.load %arg3[%c0_82, %c0_83, %c0_84] : memref<2x2x32xf32, #tpu.memory_space<vmem>>, vector<2x2x32xf32>
      %c0_85 = arith.constant 0 : index
      %c0_86 = arith.constant 0 : index
      %c0_87 = arith.constant 0 : index
      %227 = vector.load %arg19[%c0_85, %c0_86, %c0_87] : memref<2x2x32xf32, #tpu.memory_space<vmem>>, vector<2x2x32xf32>
      tpu.vector_store %arg19[%c0_85, %c0_86, %c0_87], %226 {strides = array<i32>} : memref<2x2x32xf32, #tpu.memory_space<vmem>>, vector<2x2x32xf32>,
      %c0_88 = arith.constant 0 : index
      %c0_89 = arith.constant 0 : index
      %c0_90 = arith.constant 0 : index
      %228 = vector.load %arg4[%c0_88, %c0_89, %c0_90] : memref<2x2x32xf32, #tpu.memory_space<vmem>>, vector<2x2x32xf32>
      %c0_91 = arith.constant 0 : index
      %c0_92 = arith.constant 0 : index
      %c0_93 = arith.constant 0 : index
      %229 = vector.load %arg20[%c0_91, %c0_92, %c0_93] : memref<2x2x32xf32, #tpu.memory_space<vmem>>, vector<2x2x32xf32>
      tpu.vector_store %arg20[%c0_91, %c0_92, %c0_93], %228 {strides = array<i32>} : memref<2x2x32xf32, #tpu.memory_space<vmem>>, vector<2x2x32xf32>,
    } else {
    }
    %c0 = arith.constant 0 : index
    %c0_1 = arith.constant 0 : index
    %3 = vector.load %arg5[%c0, %c0_1] : memref<324x72xf32, #tpu.memory_space<vmem>>, vector<324x72xf32>
    %c0_2 = arith.constant 0 : index
    %c0_3 = arith.constant 0 : index
    %4 = vector.load %arg6[%c0_2, %c0_3] : memref<1x72xf32, #tpu.memory_space<vmem>>, vector<1x72xf32>
    %c0_4 = arith.constant 0 : index
    %c0_5 = arith.constant 0 : index
    %5 = vector.load %arg7[%c0_4, %c0_5] : memref<72x32xf32, #tpu.memory_space<vmem>>, vector<72x32xf32>
    %c0_6 = arith.constant 0 : index
    %c0_7 = arith.constant 0 : index
    %6 = vector.load %arg8[%c0_6, %c0_7] : memref<1x32xf32, #tpu.memory_space<vmem>>, vector<1x32xf32>
    %c0_8 = arith.constant 0 : index
    %c0_9 = arith.constant 0 : index
    %7 = vector.load %arg9[%c0_8, %c0_9] : memref<64x6xf32, #tpu.memory_space<vmem>>, vector<64x6xf32>
    %c0_10 = arith.constant 0 : index
    %c0_11 = arith.constant 0 : index
    %8 = vector.load %arg10[%c0_10, %c0_11] : memref<1x6xf32, #tpu.memory_space<vmem>>, vector<1x6xf32>
    %c0_12 = arith.constant 0 : index
    %c0_13 = arith.constant 0 : index
    %c0_14 = arith.constant 0 : index
    %9 = vector.load %arg1[%c0_12, %c0_13, %c0_14] : memref<1x8x324xf32, #tpu.memory_space<vmem>>, vector<1x8x324xf32>
    %10 = vector.shape_cast %9 : vector<1x8x324xf32> to vector<8x324xf32>
    %cst = arith.constant dense<0.000000e+00> : vector<8x72xf32>
    %11 = tpu.matmul %10, %3, %cst {dimension_numbers = #tpu.dot_dimension_numbers<[1], [0], [0], [1], [0, 0, 1, 1], [], []>} : vector<8x324xf32>, vector<324x72xf32>, vector<8x72xf32> -> vector<8x72xf32>
    %12 = vector.broadcast %4 : vector<1x72xf32> to vector<8x72xf32>
    %13 = arith.addf %11, %12 : vector<8x72xf32>
    %cst_15 = arith.constant 0.000000e+00 : f32
    %14 = vector.broadcast %cst_15 : f32 to vector<8x72xf32>
    %15 = arith.maximumf %13, %14 : vector<8x72xf32>
    %cst_16 = arith.constant dense<0.000000e+00> : vector<8x32xf32>
    %16 = tpu.matmul %15, %5, %cst_16 {dimension_numbers = #tpu.dot_dimension_numbers<[1], [0], [0], [1], [0, 0, 1, 1], [], []>} : vector<8x72xf32>, vector<72x32xf32>, vector<8x32xf32> -> vector<8x32xf32>
    %17 = vector.broadcast %6 : vector<1x32xf32> to vector<8x32xf32>
    %18 = arith.addf %16, %17 : vector<8x32xf32>
    %cst_17 = arith.constant 0.000000e+00 : f32
    %19 = vector.broadcast %cst_17 : f32 to vector<8x32xf32>
    %20 = arith.maximumf %18, %19 : vector<8x32xf32>
    %c0_18 = arith.constant 0 : index
    %c0_19 = arith.constant 0 : index
    %c0_20 = arith.constant 0 : index
    %21 = vector.load %arg2[%c0_18, %c0_19, %c0_20] : memref<1x8x2xf32, #tpu.memory_space<vmem>>, vector<1x8x2xf32>
    %22 = vector.shape_cast %21 : vector<1x8x2xf32> to vector<8x2xf32>
    %c0_21 = arith.constant 0 : index
    %c0_22 = arith.constant 0 : index
    %23 = vector.load %arg12[%c0_21, %c0_22] : memref<32x128xf32, #tpu.memory_space<vmem>>, vector<32x128xf32>
    %c0_23 = arith.constant 0 : index
    %c0_24 = arith.constant 0 : index
    %24 = vector.load %arg11[%c0_23, %c0_24] : memref<2x128xf32, #tpu.memory_space<vmem>>, vector<2x128xf32>
    %cst_25 = arith.constant dense<0.000000e+00> : vector<8x128xf32>
    %25 = tpu.matmul %22, %24, %cst_25 {dimension_numbers = #tpu.dot_dimension_numbers<[1], [0], [0], [1], [0, 0, 1, 1], [], []>} : vector<8x2xf32>, vector<2x128xf32>, vector<8x128xf32> -> vector<8x128xf32>
    %c0_26 = arith.constant 0 : index
    %c0_27 = arith.constant 0 : index
    %26 = vector.load %arg13[%c0_26, %c0_27] : memref<1x128xf32, #tpu.memory_space<vmem>>, vector<1x128xf32>
    %27 = vector.broadcast %26 : vector<1x128xf32> to vector<8x128xf32>
    %28 = arith.addf %25, %27 : vector<8x128xf32>
    %c0_28 = arith.constant 0 : index
    %c0_29 = arith.constant 0 : index
    %c0_30 = arith.constant 0 : index
    %29 = vector.load %arg19[%c0_28, %c0_29, %c0_30] : memref<2x2x32xf32, #tpu.memory_space<vmem>>, vector<1x2x32xf32>
    %30 = vector.shape_cast %29 : vector<1x2x32xf32> to vector<2x32xf32>
    %c0_31 = arith.constant 0 : index
    %c0_32 = arith.constant 0 : index
    %c0_33 = arith.constant 0 : index
    %31 = vector.load %arg20[%c0_31, %c0_32, %c0_33] : memref<2x2x32xf32, #tpu.memory_space<vmem>>, vector<1x2x32xf32>
    %32 = vector.shape_cast %31 : vector<1x2x32xf32> to vector<2x32xf32>
    %33 = vector.extract_strided_slice %28 {offsets = [0, 0], sizes = [2, 128], strides = [1, 1]} : vector<8x128xf32> to vector<2x128xf32>
    %cst_34 = arith.constant dense<0.000000e+00> : vector<2x128xf32>
    %34 = tpu.matmul %30, %23, %cst_34 {dimension_numbers = #tpu.dot_dimension_numbers<[1], [0], [0], [1], [0, 0, 1, 1], [], []>} : vector<2x32xf32>, vector<32x128xf32>, vector<2x128xf32> -> vector<2x128xf32>
    %35 = arith.addf %33, %34 : vector<2x128xf32>
    %36 = arith.negf %35 : vector<2x128xf32>
    %37 = math.exp %36 : vector<2x128xf32>
    %cst_35 = arith.constant 1.000000e+00 : f32
    %38 = vector.broadcast %cst_35 : f32 to vector<2x128xf32>
    %39 = arith.addf %38, %37 : vector<2x128xf32>
    %40 = arith.divf %38, %39 : vector<2x128xf32>
    %41 = math.tanh %35 : vector<2x128xf32>
    %42 = vector.extract_strided_slice %40 {offsets = [0, 0], sizes = [2, 32], strides = [1, 1]} : vector<2x128xf32> to vector<2x32xf32>
    %43 = vector.extract_strided_slice %40 {offsets = [0, 32], sizes = [2, 32], strides = [1, 1]} : vector<2x128xf32> to vector<2x32xf32>
    %44 = vector.extract_strided_slice %41 {offsets = [0, 64], sizes = [2, 32], strides = [1, 1]} : vector<2x128xf32> to vector<2x32xf32>
    %45 = vector.extract_strided_slice %40 {offsets = [0, 96], sizes = [2, 32], strides = [1, 1]} : vector<2x128xf32> to vector<2x32xf32>
    %46 = arith.mulf %43, %32 : vector<2x32xf32>
    %47 = arith.mulf %42, %44 : vector<2x32xf32>
    %48 = arith.addf %46, %47 : vector<2x32xf32>
    %49 = math.tanh %48 : vector<2x32xf32>
    %50 = arith.mulf %45, %49 : vector<2x32xf32>
    %51 = vector.extract_strided_slice %28 {offsets = [2, 0], sizes = [2, 128], strides = [1, 1]} : vector<8x128xf32> to vector<2x128xf32>
    %cst_36 = arith.constant dense<0.000000e+00> : vector<2x128xf32>
    %52 = tpu.matmul %50, %23, %cst_36 {dimension_numbers = #tpu.dot_dimension_numbers<[1], [0], [0], [1], [0, 0, 1, 1], [], []>} : vector<2x32xf32>, vector<32x128xf32>, vector<2x128xf32> -> vector<2x128xf32>
    %53 = arith.addf %51, %52 : vector<2x128xf32>
    %54 = arith.negf %53 : vector<2x128xf32>
    %55 = math.exp %54 : vector<2x128xf32>
    %cst_37 = arith.constant 1.000000e+00 : f32
    %56 = vector.broadcast %cst_37 : f32 to vector<2x128xf32>
    %57 = arith.addf %56, %55 : vector<2x128xf32>
    %58 = arith.divf %56, %57 : vector<2x128xf32>
    %59 = math.tanh %53 : vector<2x128xf32>
    %60 = vector.extract_strided_slice %58 {offsets = [0, 0], sizes = [2, 32], strides = [1, 1]} : vector<2x128xf32> to vector<2x32xf32>
    %61 = vector.extract_strided_slice %58 {offsets = [0, 32], sizes = [2, 32], strides = [1, 1]} : vector<2x128xf32> to vector<2x32xf32>
    %62 = vector.extract_strided_slice %59 {offsets = [0, 64], sizes = [2, 32], strides = [1, 1]} : vector<2x128xf32> to vector<2x32xf32>
    %63 = vector.extract_strided_slice %58 {offsets = [0, 96], sizes = [2, 32], strides = [1, 1]} : vector<2x128xf32> to vector<2x32xf32>
    %64 = arith.mulf %61, %48 : vector<2x32xf32>
    %65 = arith.mulf %60, %62 : vector<2x32xf32>
    %66 = arith.addf %64, %65 : vector<2x32xf32>
    %67 = math.tanh %66 : vector<2x32xf32>
    %68 = arith.mulf %63, %67 : vector<2x32xf32>
    %69 = vector.extract_strided_slice %28 {offsets = [4, 0], sizes = [2, 128], strides = [1, 1]} : vector<8x128xf32> to vector<2x128xf32>
    %cst_38 = arith.constant dense<0.000000e+00> : vector<2x128xf32>
    %70 = tpu.matmul %68, %23, %cst_38 {dimension_numbers = #tpu.dot_dimension_numbers<[1], [0], [0], [1], [0, 0, 1, 1], [], []>} : vector<2x32xf32>, vector<32x128xf32>, vector<2x128xf32> -> vector<2x128xf32>
    %71 = arith.addf %69, %70 : vector<2x128xf32>
    %72 = arith.negf %71 : vector<2x128xf32>
    %73 = math.exp %72 : vector<2x128xf32>
    %cst_39 = arith.constant 1.000000e+00 : f32
    %74 = vector.broadcast %cst_39 : f32 to vector<2x128xf32>
    %75 = arith.addf %74, %73 : vector<2x128xf32>
    %76 = arith.divf %74, %75 : vector<2x128xf32>
    %77 = math.tanh %71 : vector<2x128xf32>
    %78 = vector.extract_strided_slice %76 {offsets = [0, 0], sizes = [2, 32], strides = [1, 1]} : vector<2x128xf32> to vector<2x32xf32>
    %79 = vector.extract_strided_slice %76 {offsets = [0, 32], sizes = [2, 32], strides = [1, 1]} : vector<2x128xf32> to vector<2x32xf32>
    %80 = vector.extract_strided_slice %77 {offsets = [0, 64], sizes = [2, 32], strides = [1, 1]} : vector<2x128xf32> to vector<2x32xf32>
    %81 = vector.extract_strided_slice %76 {offsets = [0, 96], sizes = [2, 32], strides = [1, 1]} : vector<2x128xf32> to vector<2x32xf32>
    %82 = arith.mulf %79, %66 : vector<2x32xf32>
    %83 = arith.mulf %78, %80 : vector<2x32xf32>
    %84 = arith.addf %82, %83 : vector<2x32xf32>
    %85 = math.tanh %84 : vector<2x32xf32>
    %86 = arith.mulf %81, %85 : vector<2x32xf32>
    %87 = vector.extract_strided_slice %28 {offsets = [6, 0], sizes = [2, 128], strides = [1, 1]} : vector<8x128xf32> to vector<2x128xf32>
    %cst_40 = arith.constant dense<0.000000e+00> : vector<2x128xf32>
    %88 = tpu.matmul %86, %23, %cst_40 {dimension_numbers = #tpu.dot_dimension_numbers<[1], [0], [0], [1], [0, 0, 1, 1], [], []>} : vector<2x32xf32>, vector<32x128xf32>, vector<2x128xf32> -> vector<2x128xf32>
    %89 = arith.addf %87, %88 : vector<2x128xf32>
    %90 = arith.negf %89 : vector<2x128xf32>
    %91 = math.exp %90 : vector<2x128xf32>
    %cst_41 = arith.constant 1.000000e+00 : f32
    %92 = vector.broadcast %cst_41 : f32 to vector<2x128xf32>
    %93 = arith.addf %92, %91 : vector<2x128xf32>
    %94 = arith.divf %92, %93 : vector<2x128xf32>
    %95 = math.tanh %89 : vector<2x128xf32>
    %96 = vector.extract_strided_slice %94 {offsets = [0, 0], sizes = [2, 32], strides = [1, 1]} : vector<2x128xf32> to vector<2x32xf32>
    %97 = vector.extract_strided_slice %94 {offsets = [0, 32], sizes = [2, 32], strides = [1, 1]} : vector<2x128xf32> to vector<2x32xf32>
    %98 = vector.extract_strided_slice %95 {offsets = [0, 64], sizes = [2, 32], strides = [1, 1]} : vector<2x128xf32> to vector<2x32xf32>
    %99 = vector.extract_strided_slice %94 {offsets = [0, 96], sizes = [2, 32], strides = [1, 1]} : vector<2x128xf32> to vector<2x32xf32>
    %100 = arith.mulf %97, %84 : vector<2x32xf32>
    %101 = arith.mulf %96, %98 : vector<2x32xf32>
    %102 = arith.addf %100, %101 : vector<2x32xf32>
    %103 = math.tanh %102 : vector<2x32xf32>
    %104 = arith.mulf %99, %103 : vector<2x32xf32>
    %c0_42 = arith.constant 0 : index
    %c0_43 = arith.constant 0 : index
    %c0_44 = arith.constant 0 : index
    %105 = vector.load %arg19[%c0_42, %c0_43, %c0_44] : memref<2x2x32xf32, #tpu.memory_space<vmem>>, vector<1x2x32xf32>
    %106 = vector.shape_cast %105 : vector<1x2x32xf32> to vector<2x32xf32>
    %107 = vector.shape_cast %104 : vector<2x32xf32> to vector<1x2x32xf32>
    tpu.vector_store %arg19[%c0_42, %c0_43, %c0_44], %107 {strides = array<i32>} : memref<2x2x32xf32, #tpu.memory_space<vmem>>, vector<1x2x32xf32>,
    %c0_45 = arith.constant 0 : index
    %c0_46 = arith.constant 0 : index
    %c0_47 = arith.constant 0 : index
    %108 = vector.load %arg20[%c0_45, %c0_46, %c0_47] : memref<2x2x32xf32, #tpu.memory_space<vmem>>, vector<1x2x32xf32>
    %109 = vector.shape_cast %108 : vector<1x2x32xf32> to vector<2x32xf32>
    %110 = vector.shape_cast %102 : vector<2x32xf32> to vector<1x2x32xf32>
    tpu.vector_store %arg20[%c0_45, %c0_46, %c0_47], %110 {strides = array<i32>} : memref<2x2x32xf32, #tpu.memory_space<vmem>>, vector<1x2x32xf32>,
    %111 = tpu.concatenate %50, %68, %86, %104 in 0 : vector<2x32xf32>, vector<2x32xf32>, vector<2x32xf32>, vector<2x32xf32> -> vector<8x32xf32>
    %c0_48 = arith.constant 0 : index
    %c0_49 = arith.constant 0 : index
    %112 = vector.load %arg15[%c0_48, %c0_49] : memref<32x128xf32, #tpu.memory_space<vmem>>, vector<32x128xf32>
    %c0_50 = arith.constant 0 : index
    %c0_51 = arith.constant 0 : index
    %113 = vector.load %arg14[%c0_50, %c0_51] : memref<32x128xf32, #tpu.memory_space<vmem>>, vector<32x128xf32>
    %cst_52 = arith.constant dense<0.000000e+00> : vector<8x128xf32>
    %114 = tpu.matmul %111, %113, %cst_52 {dimension_numbers = #tpu.dot_dimension_numbers<[1], [0], [0], [1], [0, 0, 1, 1], [], []>} : vector<8x32xf32>, vector<32x128xf32>, vector<8x128xf32> -> vector<8x128xf32>
    %c0_53 = arith.constant 0 : index
    %c0_54 = arith.constant 0 : index
    %115 = vector.load %arg16[%c0_53, %c0_54] : memref<1x128xf32, #tpu.memory_space<vmem>>, vector<1x128xf32>
    %116 = vector.broadcast %115 : vector<1x128xf32> to vector<8x128xf32>
    %117 = arith.addf %114, %116 : vector<8x128xf32>
    %c1 = arith.constant 1 : index
    %c0_55 = arith.constant 0 : index
    %c0_56 = arith.constant 0 : index
    %118 = vector.load %arg19[%c1, %c0_55, %c0_56] : memref<2x2x32xf32, #tpu.memory_space<vmem>>, vector<1x2x32xf32>
    %119 = vector.shape_cast %118 : vector<1x2x32xf32> to vector<2x32xf32>
    %c1_57 = arith.constant 1 : index
    %c0_58 = arith.constant 0 : index
    %c0_59 = arith.constant 0 : index
    %120 = vector.load %arg20[%c1_57, %c0_58, %c0_59] : memref<2x2x32xf32, #tpu.memory_space<vmem>>, vector<1x2x32xf32>
    %121 = vector.shape_cast %120 : vector<1x2x32xf32> to vector<2x32xf32>
    %122 = vector.extract_strided_slice %117 {offsets = [0, 0], sizes = [2, 128], strides = [1, 1]} : vector<8x128xf32> to vector<2x128xf32>
    %cst_60 = arith.constant dense<0.000000e+00> : vector<2x128xf32>
    %123 = tpu.matmul %119, %112, %cst_60 {dimension_numbers = #tpu.dot_dimension_numbers<[1], [0], [0], [1], [0, 0, 1, 1], [], []>} : vector<2x32xf32>, vector<32x128xf32>, vector<2x128xf32> -> vector<2x128xf32>
    %124 = arith.addf %122, %123 : vector<2x128xf32>
    %125 = arith.negf %124 : vector<2x128xf32>
    %126 = math.exp %125 : vector<2x128xf32>
    %cst_61 = arith.constant 1.000000e+00 : f32
    %127 = vector.broadcast %cst_61 : f32 to vector<2x128xf32>
    %128 = arith.addf %127, %126 : vector<2x128xf32>
    %129 = arith.divf %127, %128 : vector<2x128xf32>
    %130 = math.tanh %124 : vector<2x128xf32>
    %131 = vector.extract_strided_slice %129 {offsets = [0, 0], sizes = [2, 32], strides = [1, 1]} : vector<2x128xf32> to vector<2x32xf32>
    %132 = vector.extract_strided_slice %129 {offsets = [0, 32], sizes = [2, 32], strides = [1, 1]} : vector<2x128xf32> to vector<2x32xf32>
    %133 = vector.extract_strided_slice %130 {offsets = [0, 64], sizes = [2, 32], strides = [1, 1]} : vector<2x128xf32> to vector<2x32xf32>
    %134 = vector.extract_strided_slice %129 {offsets = [0, 96], sizes = [2, 32], strides = [1, 1]} : vector<2x128xf32> to vector<2x32xf32>
    %135 = arith.mulf %132, %121 : vector<2x32xf32>
    %136 = arith.mulf %131, %133 : vector<2x32xf32>
    %137 = arith.addf %135, %136 : vector<2x32xf32>
    %138 = math.tanh %137 : vector<2x32xf32>
    %139 = arith.mulf %134, %138 : vector<2x32xf32>
    %140 = vector.extract_strided_slice %117 {offsets = [2, 0], sizes = [2, 128], strides = [1, 1]} : vector<8x128xf32> to vector<2x128xf32>
    %cst_62 = arith.constant dense<0.000000e+00> : vector<2x128xf32>
    %141 = tpu.matmul %139, %112, %cst_62 {dimension_numbers = #tpu.dot_dimension_numbers<[1], [0], [0], [1], [0, 0, 1, 1], [], []>} : vector<2x32xf32>, vector<32x128xf32>, vector<2x128xf32> -> vector<2x128xf32>
    %142 = arith.addf %140, %141 : vector<2x128xf32>
    %143 = arith.negf %142 : vector<2x128xf32>
    %144 = math.exp %143 : vector<2x128xf32>
    %cst_63 = arith.constant 1.000000e+00 : f32
    %145 = vector.broadcast %cst_63 : f32 to vector<2x128xf32>
    %146 = arith.addf %145, %144 : vector<2x128xf32>
    %147 = arith.divf %145, %146 : vector<2x128xf32>
    %148 = math.tanh %142 : vector<2x128xf32>
    %149 = vector.extract_strided_slice %147 {offsets = [0, 0], sizes = [2, 32], strides = [1, 1]} : vector<2x128xf32> to vector<2x32xf32>
    %150 = vector.extract_strided_slice %147 {offsets = [0, 32], sizes = [2, 32], strides = [1, 1]} : vector<2x128xf32> to vector<2x32xf32>
    %151 = vector.extract_strided_slice %148 {offsets = [0, 64], sizes = [2, 32], strides = [1, 1]} : vector<2x128xf32> to vector<2x32xf32>
    %152 = vector.extract_strided_slice %147 {offsets = [0, 96], sizes = [2, 32], strides = [1, 1]} : vector<2x128xf32> to vector<2x32xf32>
    %153 = arith.mulf %150, %137 : vector<2x32xf32>
    %154 = arith.mulf %149, %151 : vector<2x32xf32>
    %155 = arith.addf %153, %154 : vector<2x32xf32>
    %156 = math.tanh %155 : vector<2x32xf32>
    %157 = arith.mulf %152, %156 : vector<2x32xf32>
    %158 = vector.extract_strided_slice %117 {offsets = [4, 0], sizes = [2, 128], strides = [1, 1]} : vector<8x128xf32> to vector<2x128xf32>
    %cst_64 = arith.constant dense<0.000000e+00> : vector<2x128xf32>
    %159 = tpu.matmul %157, %112, %cst_64 {dimension_numbers = #tpu.dot_dimension_numbers<[1], [0], [0], [1], [0, 0, 1, 1], [], []>} : vector<2x32xf32>, vector<32x128xf32>, vector<2x128xf32> -> vector<2x128xf32>
    %160 = arith.addf %158, %159 : vector<2x128xf32>
    %161 = arith.negf %160 : vector<2x128xf32>
    %162 = math.exp %161 : vector<2x128xf32>
    %cst_65 = arith.constant 1.000000e+00 : f32
    %163 = vector.broadcast %cst_65 : f32 to vector<2x128xf32>
    %164 = arith.addf %163, %162 : vector<2x128xf32>
    %165 = arith.divf %163, %164 : vector<2x128xf32>
    %166 = math.tanh %160 : vector<2x128xf32>
    %167 = vector.extract_strided_slice %165 {offsets = [0, 0], sizes = [2, 32], strides = [1, 1]} : vector<2x128xf32> to vector<2x32xf32>
    %168 = vector.extract_strided_slice %165 {offsets = [0, 32], sizes = [2, 32], strides = [1, 1]} : vector<2x128xf32> to vector<2x32xf32>
    %169 = vector.extract_strided_slice %166 {offsets = [0, 64], sizes = [2, 32], strides = [1, 1]} : vector<2x128xf32> to vector<2x32xf32>
    %170 = vector.extract_strided_slice %165 {offsets = [0, 96], sizes = [2, 32], strides = [1, 1]} : vector<2x128xf32> to vector<2x32xf32>
    %171 = arith.mulf %168, %155 : vector<2x32xf32>
    %172 = arith.mulf %167, %169 : vector<2x32xf32>
    %173 = arith.addf %171, %172 : vector<2x32xf32>
    %174 = math.tanh %173 : vector<2x32xf32>
    %175 = arith.mulf %170, %174 : vector<2x32xf32>
    %176 = vector.extract_strided_slice %117 {offsets = [6, 0], sizes = [2, 128], strides = [1, 1]} : vector<8x128xf32> to vector<2x128xf32>
    %cst_66 = arith.constant dense<0.000000e+00> : vector<2x128xf32>
    %177 = tpu.matmul %175, %112, %cst_66 {dimension_numbers = #tpu.dot_dimension_numbers<[1], [0], [0], [1], [0, 0, 1, 1], [], []>} : vector<2x32xf32>, vector<32x128xf32>, vector<2x128xf32> -> vector<2x128xf32>
    %178 = arith.addf %176, %177 : vector<2x128xf32>
    %179 = arith.negf %178 : vector<2x128xf32>
    %180 = math.exp %179 : vector<2x128xf32>
    %cst_67 = arith.constant 1.000000e+00 : f32
    %181 = vector.broadcast %cst_67 : f32 to vector<2x128xf32>
    %182 = arith.addf %181, %180 : vector<2x128xf32>
    %183 = arith.divf %181, %182 : vector<2x128xf32>
    %184 = math.tanh %178 : vector<2x128xf32>
    %185 = vector.extract_strided_slice %183 {offsets = [0, 0], sizes = [2, 32], strides = [1, 1]} : vector<2x128xf32> to vector<2x32xf32>
    %186 = vector.extract_strided_slice %183 {offsets = [0, 32], sizes = [2, 32], strides = [1, 1]} : vector<2x128xf32> to vector<2x32xf32>
    %187 = vector.extract_strided_slice %184 {offsets = [0, 64], sizes = [2, 32], strides = [1, 1]} : vector<2x128xf32> to vector<2x32xf32>
    %188 = vector.extract_strided_slice %183 {offsets = [0, 96], sizes = [2, 32], strides = [1, 1]} : vector<2x128xf32> to vector<2x32xf32>
    %189 = arith.mulf %186, %173 : vector<2x32xf32>
    %190 = arith.mulf %185, %187 : vector<2x32xf32>
    %191 = arith.addf %189, %190 : vector<2x32xf32>
    %192 = math.tanh %191 : vector<2x32xf32>
    %193 = arith.mulf %188, %192 : vector<2x32xf32>
    %c1_68 = arith.constant 1 : index
    %c0_69 = arith.constant 0 : index
    %c0_70 = arith.constant 0 : index
    %194 = vector.load %arg19[%c1_68, %c0_69, %c0_70] : memref<2x2x32xf32, #tpu.memory_space<vmem>>, vector<1x2x32xf32>
    %195 = vector.shape_cast %194 : vector<1x2x32xf32> to vector<2x32xf32>
    %196 = vector.shape_cast %193 : vector<2x32xf32> to vector<1x2x32xf32>
    tpu.vector_store %arg19[%c1_68, %c0_69, %c0_70], %196 {strides = array<i32>} : memref<2x2x32xf32, #tpu.memory_space<vmem>>, vector<1x2x32xf32>,
    %c1_71 = arith.constant 1 : index
    %c0_72 = arith.constant 0 : index
    %c0_73 = arith.constant 0 : index
    %197 = vector.load %arg20[%c1_71, %c0_72, %c0_73] : memref<2x2x32xf32, #tpu.memory_space<vmem>>, vector<1x2x32xf32>
    %198 = vector.shape_cast %197 : vector<1x2x32xf32> to vector<2x32xf32>
    %199 = vector.shape_cast %191 : vector<2x32xf32> to vector<1x2x32xf32>
    tpu.vector_store %arg20[%c1_71, %c0_72, %c0_73], %199 {strides = array<i32>} : memref<2x2x32xf32, #tpu.memory_space<vmem>>, vector<1x2x32xf32>,
    %200 = tpu.concatenate %139, %157, %175, %193 in 0 : vector<2x32xf32>, vector<2x32xf32>, vector<2x32xf32>, vector<2x32xf32> -> vector<8x32xf32>
    %201 = vector.extract_strided_slice %7 {offsets = [0, 0], sizes = [32, 6], strides = [1, 1]} : vector<64x6xf32> to vector<32x6xf32>
    %cst_74 = arith.constant dense<0.000000e+00> : vector<8x6xf32>
    %202 = tpu.matmul %20, %201, %cst_74 {dimension_numbers = #tpu.dot_dimension_numbers<[1], [0], [0], [1], [0, 0, 1, 1], [], []>} : vector<8x32xf32>, vector<32x6xf32>, vector<8x6xf32> -> vector<8x6xf32>
    %203 = vector.extract_strided_slice %7 {offsets = [32, 0], sizes = [32, 6], strides = [1, 1]} : vector<64x6xf32> to vector<32x6xf32>
    %cst_75 = arith.constant dense<0.000000e+00> : vector<8x6xf32>
    %204 = tpu.matmul %200, %203, %cst_75 {dimension_numbers = #tpu.dot_dimension_numbers<[1], [0], [0], [1], [0, 0, 1, 1], [], []>} : vector<8x32xf32>, vector<32x6xf32>, vector<8x6xf32> -> vector<8x6xf32>
    %205 = arith.addf %202, %204 : vector<8x6xf32>
    %206 = vector.broadcast %8 : vector<1x6xf32> to vector<8x6xf32>
    %207 = arith.addf %205, %206 : vector<8x6xf32>
    %208 = vector.extract_strided_slice %207 {offsets = [0, 1], sizes = [8, 5], strides = [1, 1]} : vector<8x6xf32> to vector<8x5xf32>
    %cst_76 = arith.constant dense<0xFF800000> : vector<8xf32>
    %209 = vector.multi_reduction <maximumf>, %208, %cst_76 [1] : vector<8x5xf32> to vector<8xf32>
    %210 = vector.shape_cast %209 : vector<8xf32> to vector<8x1xf32>
    %211 = vector.broadcast %210 : vector<8x1xf32> to vector<8x5xf32>
    %212 = arith.subf %208, %211 : vector<8x5xf32>
    %213 = math.exp %212 : vector<8x5xf32>
    %cst_77 = arith.constant dense<0.000000e+00> : vector<8xf32>
    %214 = vector.multi_reduction <add>, %213, %cst_77 [1] : vector<8x5xf32> to vector<8xf32>
    %215 = vector.shape_cast %214 : vector<8xf32> to vector<8x1xf32>
    %216 = vector.broadcast %215 : vector<8x1xf32> to vector<8x5xf32>
    %217 = arith.divf %213, %216 : vector<8x5xf32>
    %218 = vector.extract_strided_slice %207 {offsets = [0, 0], sizes = [8, 1], strides = [1, 1]} : vector<8x6xf32> to vector<8x1xf32>
    %219 = tpu.concatenate %218, %217 in 1 : vector<8x1xf32>, vector<8x5xf32> -> vector<8x6xf32>
    %c0_78 = arith.constant 0 : index
    %c0_79 = arith.constant 0 : index
    %c0_80 = arith.constant 0 : index
    %220 = vector.load %arg17[%c0_78, %c0_79, %c0_80] : memref<1x8x6xf32, #tpu.memory_space<vmem>>, vector<1x8x6xf32>
    %221 = vector.shape_cast %220 : vector<1x8x6xf32> to vector<8x6xf32>
    %222 = vector.shape_cast %219 : vector<8x6xf32> to vector<1x8x6xf32>
    tpu.vector_store %arg17[%c0_78, %c0_79, %c0_80], %222 {strides = array<i32>} : memref<1x8x6xf32, #tpu.memory_space<vmem>>, vector<1x8x6xf32>,
    %c1_i32 = arith.constant 1 : i32
    %223 = arith.cmpi eq, %arg0, %c1_i32 : i32
    %224 = arith.extui %223 : i1 to i32
    %c0_i32_81 = arith.constant 0 : i32
    %225 = arith.cmpi ne, %224, %c0_i32_81 : i32
    scf.if %225 {
      %c0_82 = arith.constant 0 : index
      %c0_83 = arith.constant 0 : index
      %c0_84 = arith.constant 0 : index
      %226 = vector.load %arg19[%c0_82, %c0_83, %c0_84] : memref<2x2x32xf32, #tpu.memory_space<vmem>>, vector<2x2x32xf32>
      %c0_85 = arith.constant 0 : index
      %c0_86 = arith.constant 0 : index
      %c0_87 = arith.constant 0 : index
      %227 = vector.load %arg20[%c0_85, %c0_86, %c0_87] : memref<2x2x32xf32, #tpu.memory_space<vmem>>, vector<2x2x32xf32>
      %228 = tpu.concatenate %226, %227 in 2 : vector<2x2x32xf32>, vector<2x2x32xf32> -> vector<2x2x64xf32>
      %c0_88 = arith.constant 0 : index
      %c0_89 = arith.constant 0 : index
      %c0_90 = arith.constant 0 : index
      %229 = vector.load %arg18[%c0_88, %c0_89, %c0_90] : memref<2x2x64xf32, #tpu.memory_space<vmem>>, vector<2x2x64xf32>
      tpu.vector_store %arg18[%c0_88, %c0_89, %c0_90], %228 {strides = array<i32>} : memref<2x2x64xf32, #tpu.memory_space<vmem>>, vector<2x2x64xf32>,
    } else {
    }
    return
  }
  func.func @transform_0(%arg0: i32) -> (i32, i32, i32) {
    %c0_i32 = arith.constant 0 : i32
    %c0_i32_0 = arith.constant 0 : i32
    %c0_i32_1 = arith.constant 0 : i32
    return %arg0, %c0_i32, %c0_i32_0 : i32, i32, i32
  }
  func.func @transform_1(%arg0: i32) -> (i32, i32, i32) {
    %c0_i32 = arith.constant 0 : i32
    %c0_i32_0 = arith.constant 0 : i32
    %c0_i32_1 = arith.constant 0 : i32
    return %arg0, %c0_i32, %c0_i32_0 : i32, i32, i32
  }
  func.func @transform_2(%arg0: i32) -> (i32, i32, i32) {
    %c0_i32 = arith.constant 0 : i32
    %c0_i32_0 = arith.constant 0 : i32
    %c0_i32_1 = arith.constant 0 : i32
    %c0_i32_2 = arith.constant 0 : i32
    return %c0_i32, %c0_i32_0, %c0_i32_1 : i32, i32, i32
  }
  func.func @transform_3(%arg0: i32) -> (i32, i32, i32) {
    %c0_i32 = arith.constant 0 : i32
    %c0_i32_0 = arith.constant 0 : i32
    %c0_i32_1 = arith.constant 0 : i32
    %c0_i32_2 = arith.constant 0 : i32
    return %c0_i32, %c0_i32_0, %c0_i32_1 : i32, i32, i32
  }
  func.func @transform_4(%arg0: i32) -> (i32, i32) {
    %c0_i32 = arith.constant 0 : i32
    %c0_i32_0 = arith.constant 0 : i32
    %c0_i32_1 = arith.constant 0 : i32
    return %c0_i32, %c0_i32_0 : i32, i32
  }
  func.func @transform_5(%arg0: i32) -> (i32, i32) {
    %c0_i32 = arith.constant 0 : i32
    %c0_i32_0 = arith.constant 0 : i32
    %c0_i32_1 = arith.constant 0 : i32
    return %c0_i32, %c0_i32_0 : i32, i32
  }
  func.func @transform_6(%arg0: i32) -> (i32, i32) {
    %c0_i32 = arith.constant 0 : i32
    %c0_i32_0 = arith.constant 0 : i32
    %c0_i32_1 = arith.constant 0 : i32
    return %c0_i32, %c0_i32_0 : i32, i32
  }
  func.func @transform_7(%arg0: i32) -> (i32, i32) {
    %c0_i32 = arith.constant 0 : i32
    %c0_i32_0 = arith.constant 0 : i32
    %c0_i32_1 = arith.constant 0 : i32
    return %c0_i32, %c0_i32_0 : i32, i32
  }
  func.func @transform_8(%arg0: i32) -> (i32, i32) {
    %c0_i32 = arith.constant 0 : i32
    %c0_i32_0 = arith.constant 0 : i32
    %c0_i32_1 = arith.constant 0 : i32
    return %c0_i32, %c0_i32_0 : i32, i32
  }
  func.func @transform_9(%arg0: i32) -> (i32, i32) {
    %c0_i32 = arith.constant 0 : i32
    %c0_i32_0 = arith.constant 0 : i32
    %c0_i32_1 = arith.constant 0 : i32
    return %c0_i32, %c0_i32_0 : i32, i32
  }
  func.func @transform_10(%arg0: i32) -> (i32, i32) {
    %c0_i32 = arith.constant 0 : i32
    %c0_i32_0 = arith.constant 0 : i32
    %c0_i32_1 = arith.constant 0 : i32
    return %c0_i32, %c0_i32_0 : i32, i32
  }
  func.func @transform_11(%arg0: i32) -> (i32, i32) {
    %c0_i32 = arith.constant 0 : i32
    %c0_i32_0 = arith.constant 0 : i32
    %c0_i32_1 = arith.constant 0 : i32
    return %c0_i32, %c0_i32_0 : i32, i32
  }
  func.func @transform_12(%arg0: i32) -> (i32, i32) {
    %c0_i32 = arith.constant 0 : i32
    %c0_i32_0 = arith.constant 0 : i32
    %c0_i32_1 = arith.constant 0 : i32
    return %c0_i32, %c0_i32_0 : i32, i32
  }
  func.func @transform_13(%arg0: i32) -> (i32, i32) {
    %c0_i32 = arith.constant 0 : i32
    %c0_i32_0 = arith.constant 0 : i32
    %c0_i32_1 = arith.constant 0 : i32
    return %c0_i32, %c0_i32_0 : i32, i32
  }
  func.func @transform_14(%arg0: i32) -> (i32, i32) {
    %c0_i32 = arith.constant 0 : i32
    %c0_i32_0 = arith.constant 0 : i32
    %c0_i32_1 = arith.constant 0 : i32
    return %c0_i32, %c0_i32_0 : i32, i32
  }
  func.func @transform_15(%arg0: i32) -> (i32, i32) {
    %c0_i32 = arith.constant 0 : i32
    %c0_i32_0 = arith.constant 0 : i32
    %c0_i32_1 = arith.constant 0 : i32
    return %c0_i32, %c0_i32_0 : i32, i32
  }
  func.func @transform_16(%arg0: i32) -> (i32, i32, i32) {
    %c0_i32 = arith.constant 0 : i32
    %c0_i32_0 = arith.constant 0 : i32
    %c0_i32_1 = arith.constant 0 : i32
    return %arg0, %c0_i32, %c0_i32_0 : i32, i32, i32
  }
  func.func @transform_17(%arg0: i32) -> (i32, i32, i32) {
    %c0_i32 = arith.constant 0 : i32
    %c0_i32_0 = arith.constant 0 : i32
    %c0_i32_1 = arith.constant 0 : i32
    %c0_i32_2 = arith.constant 0 : i32
    return %c0_i32, %c0_i32_0, %c0_i32_1 : i32, i32, i32
  }
}

</mosaic_0001>

<llo_original>
// kernel: ppo_lstm3_forward.2
$region0: #{ppo_lstm3_forward.2}
  #allocation0 [shape = 'u32[]', space=smem, size = 0x4, offset = 0x4, fixed_abs, tag = 'smem constant byte address 0x4 - core index']
  #allocation1 [shape = 'u32[144,128]{1,0:T(1,128)}', space=vmem, size = 0x12000, scoped, tag = 'internal scratch']
  %s0 = inlined_call_operand.vmem [shape: f32[1296,64], index: 0, kind: input, shape index: {}]
  %s1 = inlined_call_operand.vmem [shape: f32[64,4], index: 1, kind: input, shape index: {}]
  %s2 = inlined_call_operand.vmem [shape: f32[1,4], index: 2, kind: input, shape index: {}]
  %s3 = inlined_call_operand.vmem [shape: f32[1296,4], index: 3, kind: output, shape index: {}]
  %s4 = sld [smem:[#allocation0]]
  $region45: #{ppo_lstm3_forward.2} parent=0
    _
  %s6 = ssub.s32 1, %s4
  %s7 = scalar_select 0, %s6, %s4
  loop: start=0, step=1, limit=4
  $region2: #{ppo_lstm3_forward.2} parent=0 // loop_pre_header
    _
  $region3: #{ppo_lstm3_forward.2} parent=0 // loop_header
    %s9 = sphi 0, %s13
    %p10 = scmp.ge.s32.totalorder %s9, 4
    %s19 = sphi 0, %s21
    %s22 = sphi 0, %s19
    %s23 = sphi 0, %s22
    %s39 = sphi 0, %s23
    %s43 = sphi 0, %s43
    %s45 = sphi 0, %s43
    %s46 = sphi 0, %s45
    %s60 = sphi 0, %s46
    %s64 = sphi 0, %s64
    %s66 = sphi 0, %s64
    %s67 = sphi 0, %s66
    %s81 = sphi 0, %s67
    %s87 = sphi 0, %s89
    %s90 = sphi 0, %s87
    %s91 = sphi 0, %s90
    %s107 = sphi 0, %s91
  $region4: #{ppo_lstm3_forward.2} parent=0 // loop_header_branch
    %12 = sbr.rel (%p10) target = $region8
  $region5: #{ppo_lstm3_forward.2} parent=0 // loop_body
    %s14 = ssub.s32 %s9, 1
    %s15 = ssub.s32 %s9, 2
    %s16 = sadd.s32 %s9, 1
    %s17 = ssub.s32 %s9, %s16
    %p18 = scmp.eq.s32.totalorder %s17, 0
    %s20 = sadd.s32 %s19, 1
    %s21 = scalar_select %p18, %s19, %s20
    %p24 = pneg %p18
    %p25 = scmp.eq.s32.totalorder %s9, 1
    %p26 = por %p24, %p25
    %p27 = scmp.ne.s32.totalorder %s19, %s22
    %p28 = scmp.eq.s32.totalorder %s9, 0
    %p29 = por %p27, %p28
    %p30 = scmp.ne.s32.totalorder %s19, %s22
    %p31 = scmp.eq.s32.totalorder %s14, 1
    %p32 = por %p30, %p31
    %p33 = scmp.ne.s32.totalorder %s22, %s23
    %p34 = scmp.eq.s32.totalorder %s14, 0
    %p35 = por %p33, %p34
    %p36 = scmp.ne.s32.totalorder %s22, %s23
    %p37 = scmp.eq.s32.totalorder %s15, 1
    %p38 = por %p36, %p37
    %p40 = scmp.ne.s32.totalorder %s23, %s39
    %p41 = scmp.eq.s32.totalorder %s15, 0
    %p42 = por %p40, %p41
    %s44 = sadd.s32 %s43, 1
    %p47 = scmp.eq.s32.totalorder %s9, 1
    %p48 = scmp.ne.s32.totalorder %s43, %s45
    %p49 = scmp.eq.s32.totalorder %s9, 0
    %p50 = por %p48, %p49
    %p51 = scmp.ne.s32.totalorder %s43, %s45
    %p52 = scmp.eq.s32.totalorder %s14, 1
    %p53 = por %p51, %p52
    %p54 = scmp.ne.s32.totalorder %s45, %s46
    %p55 = scmp.eq.s32.totalorder %s14, 0
    %p56 = por %p54, %p55
    %p57 = scmp.ne.s32.totalorder %s45, %s46
    %p58 = scmp.eq.s32.totalorder %s15, 1
    %p59 = por %p57, %p58
    %p61 = scmp.ne.s32.totalorder %s46, %s60
    %p62 = scmp.eq.s32.totalorder %s15, 0
    %p63 = por %p61, %p62
    %s65 = sadd.s32 %s64, 1
    %p68 = scmp.eq.s32.totalorder %s9, 1
    %p69 = scmp.ne.s32.totalorder %s64, %s66
    %p70 = scmp.eq.s32.totalorder %s9, 0
    %p71 = por %p69, %p70
    %p72 = scmp.ne.s32.totalorder %s64, %s66
    %p73 = scmp.eq.s32.totalorder %s14, 1
    %p74 = por %p72, %p73
    %p75 = scmp.ne.s32.totalorder %s66, %s67
    %p76 = scmp.eq.s32.totalorder %s14, 0
    %p77 = por %p75, %p76
    %p78 = scmp.ne.s32.totalorder %s66, %s67
    %p79 = scmp.eq.s32.totalorder %s15, 1
    %p80 = por %p78, %p79
    %p82 = scmp.ne.s32.totalorder %s67, %s81
    %p83 = scmp.eq.s32.totalorder %s15, 0
    %p84 = por %p82, %p83
    %s85 = ssub.s32 %s9, %s16
    %p86 = scmp.eq.s32.totalorder %s85, 0
    %s88 = sadd.s32 %s87, 1
    %s89 = scalar_select %p86, %s87, %s88
    %p92 = pneg %p86
    %p93 = scmp.eq.s32.totalorder %s9, 1
    %p94 = por %p92, %p93
    %p95 = scmp.ne.s32.totalorder %s87, %s90
    %p96 = scmp.eq.s32.totalorder %s9, 0
    %p97 = por %p95, %p96
    %p98 = scmp.ne.s32.totalorder %s87, %s90
    %p99 = scmp.eq.s32.totalorder %s14, 1
    %p100 = por %p98, %p99
    %p101 = scmp.ne.s32.totalorder %s90, %s91
    %p102 = scmp.eq.s32.totalorder %s14, 0
    %p103 = por %p101, %p102
    %p104 = scmp.ne.s32.totalorder %s90, %s91
    %p105 = scmp.eq.s32.totalorder %s15, 1
    %p106 = por %p104, %p105
    %p108 = scmp.ne.s32.totalorder %s91, %s107
    %p109 = scmp.eq.s32.totalorder %s15, 0
    %p110 = por %p108, %p109
    %p111 = scmp.le.s32.totalorder 1, %s9
    %p112 = scmp.lt.s32.totalorder %s9, 3
    %p113 = pnand %p111, %p112
    %p114 = pneg %p113
    // Predicated region
    $region9: #{ppo_lstm3_forward.2} parent=5 // pred_check
      _
    $region10: #{ppo_lstm3_forward.2} parent=5 // pred_check_branch
      %116 = sbr.rel (%p113) target = $region12
    $region11: #{ppo_lstm3_forward.2} parent=5 // pred_region
      %s117 = ssub.s32 %s9, 1
      // Predicated region
      $region13: #{ppo_lstm3_forward.2} parent=11 // pred_check
        %p118 = pneg %p56
      $region14: #{ppo_lstm3_forward.2} parent=11 // pred_check_branch
        %120 = sbr.rel (%p118) target = $region16
      $region15: #{ppo_lstm3_forward.2} parent=11 // pred_region
        _
      $region16: #{ppo_lstm3_forward.2} parent=11 // pred_fallthru
        _
      // Predicated region
      $region17: #{ppo_lstm3_forward.2} parent=11 // pred_check
        %p121 = pneg %p77
      $region18: #{ppo_lstm3_forward.2} parent=11 // pred_check_branch
        %123 = sbr.rel (%p121) target = $region20
      $region19: #{ppo_lstm3_forward.2} parent=11 // pred_region
        _
      $region20: #{ppo_lstm3_forward.2} parent=11 // pred_fallthru
        _
    $region12: #{ppo_lstm3_forward.2} parent=5 // pred_fallthru
      _
    %p124 = scmp.lt.s32.totalorder %s9, 2
    // Predicated region
    $region21: #{ppo_lstm3_forward.2} parent=5 // pred_check
      %p125 = pneg %p124
    $region22: #{ppo_lstm3_forward.2} parent=5 // pred_check_branch
      %127 = sbr.rel (%p125) target = $region24
    $region23: #{ppo_lstm3_forward.2} parent=5 // pred_region
      // Predicated region
      $region25: #{ppo_lstm3_forward.2} parent=23 // pred_check
        %p128 = pneg %p29
      $region26: #{ppo_lstm3_forward.2} parent=23 // pred_check_branch
        %130 = sbr.rel (%p128) target = $region28
      $region27: #{ppo_lstm3_forward.2} parent=23 // pred_region
        %s131 = smul.u32 81, %s9
        %p132 = scmp.lt.s32.totalorder %s131, 161
        %s133 = scalar_select %p132, %s131, 161
        %s134 = smul.addr %s133, 8
        %s135 = scalar_lea.vmem %s0, %s134
        %s136 = smul.u32 81, %s9
      $region28: #{ppo_lstm3_forward.2} parent=23 // pred_fallthru
        _
    $region24: #{ppo_lstm3_forward.2} parent=5 // pred_fallthru
      _
    %p137 = scmp.le.s32.totalorder 1, %s9
    %p138 = scmp.lt.s32.totalorder %s9, 3
    %p139 = pnand %p137, %p138
    %p140 = pneg %p139
    // Predicated region
    $region29: #{ppo_lstm3_forward.2} parent=5 // pred_check
      _
    $region30: #{ppo_lstm3_forward.2} parent=5 // pred_check_branch
      %142 = sbr.rel (%p139) target = $region32
    $region31: #{ppo_lstm3_forward.2} parent=5 // pred_region
      %s143 = ssub.s32 %s9, 1
      %s144 = smul.u32 81, %s14
      %p145 = scmp.lt.s32.totalorder %s144, 161
      %s146 = scalar_select %p145, %s144, 161
      %s147 = smul.addr %s146, 8
      %s148 = scalar_lea.vmem %s0, %s147
      %p149 = pneg %p35
      %p150 = pneg %p32
      %p151 = pneg %p56
      %p152 = pneg %p53
      %p153 = pneg %p77
      %p154 = pneg %p74
      %p155 = pneg %p103
      %p156 = pneg %p100
      %s157 = smul.u32 81, %s14
      %p158 = scmp.lt.s32.totalorder %s157, 161
      %s159 = scalar_select %p158, %s157, 161
      %s160 = smul.addr %s159, 8
      %s161 = scalar_lea.vmem %s3, %s160
      %s162 = smul.u32 81, %s14
      %p163 = scmp.lt.s32.totalorder %s162, 161
      %s164 = scalar_select %p163, %s162, 161
      %s165 = smul.addr %s164, 8
      %s166 = scalar_lea.vmem %s0, %s165
      %s167 = smul.u32 81, %s14
      %s168 = smul.u32 81, %s14
      %p169 = scmp.lt.s32.totalorder %s168, 161
      %s170 = scalar_select %p169, %s168, 161
      %s171 = smul.addr %s170, 8
      %s172 = scalar_lea.vmem %s3, %s171
      %s173 = smul.u32 81, %s14
      %v174 = vld [vmem:[%s166] sm:$0xff]
      %v175 = vld [vmem:[%s166 + $0x8] sm:$0xff]
      %v176 = vld [vmem:[%s166 + $0x10] sm:$0xff]
      %v177 = vld [vmem:[%s166 + $0x18] sm:$0xff]
      %v178 = vld [vmem:[%s166 + $0x20] sm:$0xff]
      %v179 = vld [vmem:[%s166 + $0x28] sm:$0xff]
      %v180 = vld [vmem:[%s166 + $0x30] sm:$0xff]
      %v181 = vld [vmem:[%s166 + $0x38] sm:$0xff]
      %v182 = vld [vmem:[%s166 + $0x40] sm:$0xff]
      %v183 = vld [vmem:[%s166 + $0x48] sm:$0xff]
      %v184 = vld [vmem:[%s166 + $0x50] sm:$0xff]
      %v185 = vld [vmem:[%s166 + $0x58] sm:$0xff]
      %v186 = vld [vmem:[%s166 + $0x60] sm:$0xff]
      %v187 = vld [vmem:[%s166 + $0x68] sm:$0xff]
      %v188 = vld [vmem:[%s166 + $0x70] sm:$0xff]
      %v189 = vld [vmem:[%s166 + $0x78] sm:$0xff]
      %v190 = vld [vmem:[%s166 + $0x80] sm:$0xff]
      %v191 = vld [vmem:[%s166 + $0x88] sm:$0xff]
      %v192 = vld [vmem:[%s166 + $0x90] sm:$0xff]
      %v193 = vld [vmem:[%s166 + $0x98] sm:$0xff]
      %v194 = vld [vmem:[%s166 + $0xa0] sm:$0xff]
      %v195 = vld [vmem:[%s166 + $0xa8] sm:$0xff]
      %v196 = vld [vmem:[%s166 + $0xb0] sm:$0xff]
      %v197 = vld [vmem:[%s166 + $0xb8] sm:$0xff]
      %v198 = vld [vmem:[%s166 + $0xc0] sm:$0xff]
      %v199 = vld [vmem:[%s166 + $0xc8] sm:$0xff]
      %v200 = vld [vmem:[%s166 + $0xd0] sm:$0xff]
      %v201 = vld [vmem:[%s166 + $0xd8] sm:$0xff]
      %v202 = vld [vmem:[%s166 + $0xe0] sm:$0xff]
      %v203 = vld [vmem:[%s166 + $0xe8] sm:$0xff]
      %v204 = vld [vmem:[%s166 + $0xf0] sm:$0xff]
      %v205 = vld [vmem:[%s166 + $0xf8] sm:$0xff]
      %v206 = vld [vmem:[%s166 + $0x100] sm:$0xff]
      %v207 = vld [vmem:[%s166 + $0x108] sm:$0xff]
      %v208 = vld [vmem:[%s166 + $0x110] sm:$0xff]
      %v209 = vld [vmem:[%s166 + $0x118] sm:$0xff]
      %v210 = vld [vmem:[%s166 + $0x120] sm:$0xff]
      %v211 = vld [vmem:[%s166 + $0x128] sm:$0xff]
      %v212 = vld [vmem:[%s166 + $0x130] sm:$0xff]
      %v213 = vld [vmem:[%s166 + $0x138] sm:$0xff]
      %v214 = vld [vmem:[%s166 + $0x140] sm:$0xff]
      %v215 = vld [vmem:[%s166 + $0x148] sm:$0xff]
      %v216 = vld [vmem:[%s166 + $0x150] sm:$0xff]
      %v217 = vld [vmem:[%s166 + $0x158] sm:$0xff]
      %v218 = vld [vmem:[%s166 + $0x160] sm:$0xff]
      %v219 = vld [vmem:[%s166 + $0x168] sm:$0xff]
      %v220 = vld [vmem:[%s166 + $0x170] sm:$0xff]
      %v221 = vld [vmem:[%s166 + $0x178] sm:$0xff]
      %v222 = vld [vmem:[%s166 + $0x180] sm:$0xff]
      %v223 = vld [vmem:[%s166 + $0x188] sm:$0xff]
      %v224 = vld [vmem:[%s166 + $0x190] sm:$0xff]
      %v225 = vld [vmem:[%s166 + $0x198] sm:$0xff]
      %v226 = vld [vmem:[%s166 + $0x1a0] sm:$0xff]
      %v227 = vld [vmem:[%s166 + $0x1a8] sm:$0xff]
      %v228 = vld [vmem:[%s166 + $0x1b0] sm:$0xff]
      %v229 = vld [vmem:[%s166 + $0x1b8] sm:$0xff]
      %v230 = vld [vmem:[%s166 + $0x1c0] sm:$0xff]
      %v231 = vld [vmem:[%s166 + $0x1c8] sm:$0xff]
      %v232 = vld [vmem:[%s166 + $0x1d0] sm:$0xff]
      %v233 = vld [vmem:[%s166 + $0x1d8] sm:$0xff]
      %v234 = vld [vmem:[%s166 + $0x1e0] sm:$0xff]
      %v235 = vld [vmem:[%s166 + $0x1e8] sm:$0xff]
      %v236 = vld [vmem:[%s166 + $0x1f0] sm:$0xff]
      %v237 = vld [vmem:[%s166 + $0x1f8] sm:$0xff]
      %v238 = vld [vmem:[%s166 + $0x200] sm:$0xff]
      %v239 = vld [vmem:[%s166 + $0x208] sm:$0xff]
      %v240 = vld [vmem:[%s166 + $0x210] sm:$0xff]
      %v241 = vld [vmem:[%s166 + $0x218] sm:$0xff]
      %v242 = vld [vmem:[%s166 + $0x220] sm:$0xff]
      %v243 = vld [vmem:[%s166 + $0x228] sm:$0xff]
      %v244 = vld [vmem:[%s166 + $0x230] sm:$0xff]
      %v245 = vld [vmem:[%s166 + $0x238] sm:$0xff]
      %v246 = vld [vmem:[%s166 + $0x240] sm:$0xff]
      %v247 = vld [vmem:[%s166 + $0x248] sm:$0xff]
      %v248 = vld [vmem:[%s166 + $0x250] sm:$0xff]
      %v249 = vld [vmem:[%s166 + $0x258] sm:$0xff]
      %v250 = vld [vmem:[%s166 + $0x260] sm:$0xff]
      %v251 = vld [vmem:[%s166 + $0x268] sm:$0xff]
      %v252 = vld [vmem:[%s166 + $0x270] sm:$0xff]
      %v253 = vld [vmem:[%s166 + $0x278] sm:$0xff]
      %v254 = vld [vmem:[%s166 + $0x280] sm:$0xff]
      %v255 = vld [vmem:[%s1] sm:$0xff]
      %v256 = vld [vmem:[%s1 + $0x8] sm:$0xff]
      %v257 = vld [vmem:[%s1 + $0x10] sm:$0xff]
      %v258 = vld [vmem:[%s1 + $0x18] sm:$0xff]
      %v259 = vld [vmem:[%s1 + $0x20] sm:$0xff]
      %v260 = vld [vmem:[%s1 + $0x28] sm:$0xff]
      %v261 = vld [vmem:[%s1 + $0x30] sm:$0xff]
      %v262 = vld [vmem:[%s1 + $0x38] sm:$0xff]
      %v263 = vld [vmem:[%s2] sm:$0x1]
      %v265 = vlaneseq
      %v266 = vshrl.u32 %v265, 7
      %v267 = vsub.s32 0, %v266
      %v268 = vrot.slane %v263, %v267
      %vm270 = vcmask 523264
      %v272 = vsel %vm270, %v174, 0
      %v275 = vsel %vm270, %v175, 0
      %v278 = vsel %vm270, %v176, 0
      %v281 = vsel %vm270, %v177, 0
      %v284 = vsel %vm270, %v178, 0
      %v287 = vsel %vm270, %v179, 0
      %v290 = vsel %vm270, %v180, 0
      %v293 = vsel %vm270, %v181, 0
      %v296 = vsel %vm270, %v182, 0
      %v299 = vsel %vm270, %v183, 0
      %v302 = vsel %vm270, %v184, 0
      %v305 = vsel %vm270, %v185, 0
      %v308 = vsel %vm270, %v186, 0
      %v311 = vsel %vm270, %v187, 0
      %v314 = vsel %vm270, %v188, 0
      %v317 = vsel %vm270, %v189, 0
      %v320 = vsel %vm270, %v190, 0
      %v323 = vsel %vm270, %v191, 0
      %v326 = vsel %vm270, %v192, 0
      %v329 = vsel %vm270, %v193, 0
      %v332 = vsel %vm270, %v194, 0
      %v335 = vsel %vm270, %v195, 0
      %v338 = vsel %vm270, %v196, 0
      %v341 = vsel %vm270, %v197, 0
      %v344 = vsel %vm270, %v198, 0
      %v347 = vsel %vm270, %v199, 0
      %v350 = vsel %vm270, %v200, 0
      %v353 = vsel %vm270, %v201, 0
      %v356 = vsel %vm270, %v202, 0
      %v359 = vsel %vm270, %v203, 0
      %v362 = vsel %vm270, %v204, 0
      %v365 = vsel %vm270, %v205, 0
      %v368 = vsel %vm270, %v206, 0
      %v371 = vsel %vm270, %v207, 0
      %v374 = vsel %vm270, %v208, 0
      %v377 = vsel %vm270, %v209, 0
      %v380 = vsel %vm270, %v210, 0
      %v383 = vsel %vm270, %v211, 0
      %v386 = vsel %vm270, %v212, 0
      %v389 = vsel %vm270, %v213, 0
      %v392 = vsel %vm270, %v214, 0
      %v395 = vsel %vm270, %v215, 0
      %v398 = vsel %vm270, %v216, 0
      %v401 = vsel %vm270, %v217, 0
      %v404 = vsel %vm270, %v218, 0
      %v407 = vsel %vm270, %v219, 0
      %v410 = vsel %vm270, %v220, 0
      %v413 = vsel %vm270, %v221, 0
      %v416 = vsel %vm270, %v222, 0
      %v419 = vsel %vm270, %v223, 0
      %v422 = vsel %vm270, %v224, 0
      %v425 = vsel %vm270, %v225, 0
      %v428 = vsel %vm270, %v226, 0
      %v431 = vsel %vm270, %v227, 0
      %v434 = vsel %vm270, %v228, 0
      %v437 = vsel %vm270, %v229, 0
      %v440 = vsel %vm270, %v230, 0
      %v443 = vsel %vm270, %v231, 0
      %v446 = vsel %vm270, %v232, 0
      %v449 = vsel %vm270, %v233, 0
      %v452 = vsel %vm270, %v234, 0
      %v455 = vsel %vm270, %v235, 0
      %v458 = vsel %vm270, %v236, 0
      %v461 = vsel %vm270, %v237, 0
      %v464 = vsel %vm270, %v238, 0
      %v467 = vsel %vm270, %v239, 0
      %v470 = vsel %vm270, %v240, 0
      %v473 = vsel %vm270, %v241, 0
      %v476 = vsel %vm270, %v242, 0
      %v479 = vsel %vm270, %v243, 0
      %v482 = vsel %vm270, %v244, 0
      %v485 = vsel %vm270, %v245, 0
      %v488 = vsel %vm270, %v246, 0
      %v491 = vsel %vm270, %v247, 0
      %v494 = vsel %vm270, %v248, 0
      %v497 = vsel %vm270, %v249, 0
      %v500 = vsel %vm270, %v250, 0
      %v503 = vsel %vm270, %v251, 0
      %v506 = vsel %vm270, %v252, 0
      %v509 = vsel %vm270, %v253, 0
      %v512 = vsel %vm270, %v254, 0
      %514 = vmatprep.subr.mxu0 0.0
      %515 = vmatpush1.msra.mxu0 0.0
      %516 = vmatprep.subr.mxu0 0.0
      %517 = vmatpush1.msra.mxu0 0.0
      %518 = vmatprep.subr.mxu0 0.0
      %519 = vmatpush1.msra.mxu0 0.0
      %520 = vmatprep.subr.mxu0 0.0
      %521 = vmatpush1.msra.mxu0 0.0
      %522 = vmatprep.subr.mxu0 0.0
      %523 = vmatpush1.msra.mxu0 0.0
      %524 = vmatprep.subr.mxu0 0.0
      %525 = vmatpush1.msra.mxu0 0.0
      %526 = vmatprep.subr.mxu0 0.0
      %527 = vmatpush1.msra.mxu0 0.0
      %528 = vmatprep.subr.mxu0 0.0
      %529 = vmatpush1.msra.mxu0 0.0
      %530 = vmatprep.subr.mxu0 0.0
      %531 = vmatpush1.msra.mxu0 %v262
      %532 = vmatprep.subr.mxu0 0.0
      %533 = vmatpush1.msra.mxu0 %v261
      %534 = vmatprep.subr.mxu0 0.0
      %535 = vmatpush1.msra.mxu0 %v260
      %536 = vmatprep.subr.mxu0 0.0
      %537 = vmatpush1.msra.mxu0 %v259
      %538 = vmatprep.subr.mxu0 0.0
      %539 = vmatpush1.msra.mxu0 %v258
      %540 = vmatprep.subr.mxu0 0.0
      %541 = vmatpush1.msra.mxu0 %v257
      %542 = vmatprep.subr.mxu0 0.0
      %543 = vmatpush1.msra.mxu0 %v256
      %544 = vmatprep.subr.mxu0 0.0
      %545 = vmatpush1.msra.mxu0 %v255
      %546 = vmatprep.subr.mxu0 0.0
      %547 = vmatpush2.msra.mxu0 0.0
      %548 = vmatprep.subr.mxu0 0.0
      %549 = vmatpush2.msra.mxu0 0.0
      %550 = vmatprep.subr.mxu0 0.0
      %551 = vmatpush2.msra.mxu0 0.0
      %552 = vmatprep.subr.mxu0 0.0
      %553 = vmatpush2.msra.mxu0 0.0
      %554 = vmatprep.subr.mxu0 0.0
      %555 = vmatpush2.msra.mxu0 0.0
      %556 = vmatprep.subr.mxu0 0.0
      %557 = vmatpush2.msra.mxu0 0.0
      %558 = vmatprep.subr.mxu0 0.0
      %559 = vmatpush2.msra.mxu0 0.0
      %560 = vmatprep.subr.mxu0 0.0
      %561 = vmatpush2.msra.mxu0 0.0
      %562 = vmatprep.subr.mxu0 0.0
      %563 = vmatpush2.msra.mxu0 0.0
      %564 = vmatprep.subr.mxu0 0.0
      %565 = vmatpush2.msra.mxu0 0.0
      %566 = vmatprep.subr.mxu0 0.0
      %567 = vmatpush2.msra.mxu0 0.0
      %568 = vmatprep.subr.mxu0 0.0
      %569 = vmatpush2.msra.mxu0 0.0
      %570 = vmatprep.subr.mxu0 0.0
      %571 = vmatpush2.msra.mxu0 0.0
      %572 = vmatprep.subr.mxu0 0.0
      %573 = vmatpush2.msra.mxu0 0.0
      %574 = vmatprep.subr.mxu0 0.0
      %575 = vmatpush2.msra.mxu0 0.0
      %576 = vmatprep.subr.mxu0 0.0
      %577 = vmatpush2.msra.mxu0 0.0
      %578 = vmatprep.mubr.f32.mxu0 0.0
      %579 = vmatmul.mubr.f32.gmra.mxu0 %v272
      %v580 = vpop.f32.mrf.mxu0
      %v581 = vadd.f32 %v268, %v580
      %v582 = vpop.f32.mrf.mxu0
      %583 = vmatprep.mubr.f32.mxu0 0.0
      %584 = vmatmul.mubr.f32.gmra.mxu0 %v275
      %v585 = vpop.f32.mrf.mxu0
      %v586 = vadd.f32 %v268, %v585
      %v587 = vpop.f32.mrf.mxu0
      %588 = vmatprep.mubr.f32.mxu0 0.0
      %589 = vmatmul.mubr.f32.gmra.mxu0 %v278
      %v590 = vpop.f32.mrf.mxu0
      %v591 = vadd.f32 %v268, %v590
      %v592 = vpop.f32.mrf.mxu0
      %593 = vmatprep.mubr.f32.mxu0 0.0
      %594 = vmatmul.mubr.f32.gmra.mxu0 %v281
      %v595 = vpop.f32.mrf.mxu0
      %v596 = vadd.f32 %v268, %v595
      %v597 = vpop.f32.mrf.mxu0
      %598 = vmatprep.mubr.f32.mxu0 0.0
      %599 = vmatmul.mubr.f32.gmra.mxu0 %v284
      %v600 = vpop.f32.mrf.mxu0
      %v601 = vadd.f32 %v268, %v600
      %v602 = vpop.f32.mrf.mxu0
      %603 = vmatprep.mubr.f32.mxu0 0.0
      %604 = vmatmul.mubr.f32.gmra.mxu0 %v287
      %v605 = vpop.f32.mrf.mxu0
      %v606 = vadd.f32 %v268, %v605
      %v607 = vpop.f32.mrf.mxu0
      %608 = vmatprep.mubr.f32.mxu0 0.0
      %609 = vmatmul.mubr.f32.gmra.mxu0 %v290
      %v610 = vpop.f32.mrf.mxu0
      %v611 = vadd.f32 %v268, %v610
      %v612 = vpop.f32.mrf.mxu0
      %613 = vmatprep.mubr.f32.mxu0 0.0
      %614 = vmatmul.mubr.f32.gmra.mxu0 %v293
      %v615 = vpop.f32.mrf.mxu0
      %v616 = vadd.f32 %v268, %v615
      %v617 = vpop.f32.mrf.mxu0
      %618 = vmatprep.mubr.f32.mxu0 0.0
      %619 = vmatmul.mubr.f32.gmra.mxu0 %v296
      %v620 = vpop.f32.mrf.mxu0
      %v621 = vadd.f32 %v268, %v620
      %v622 = vpop.f32.mrf.mxu0
      %623 = vmatprep.mubr.f32.mxu0 0.0
      %624 = vmatmul.mubr.f32.gmra.mxu0 %v299
      %v625 = vpop.f32.mrf.mxu0
      %v626 = vadd.f32 %v268, %v625
      %v627 = vpop.f32.mrf.mxu0
      %628 = vmatprep.mubr.f32.mxu0 0.0
      %629 = vmatmul.mubr.f32.gmra.mxu0 %v302
      %v630 = vpop.f32.mrf.mxu0
      %v631 = vadd.f32 %v268, %v630
      %v632 = vpop.f32.mrf.mxu0
      %633 = vmatprep.mubr.f32.mxu0 0.0
      %634 = vmatmul.mubr.f32.gmra.mxu0 %v305
      %v635 = vpop.f32.mrf.mxu0
      %v636 = vadd.f32 %v268, %v635
      %v637 = vpop.f32.mrf.mxu0
      %638 = vmatprep.mubr.f32.mxu0 0.0
      %639 = vmatmul.mubr.f32.gmra.mxu0 %v308
      %v640 = vpop.f32.mrf.mxu0
      %v641 = vadd.f32 %v268, %v640
      %v642 = vpop.f32.mrf.mxu0
      %643 = vmatprep.mubr.f32.mxu0 0.0
      %644 = vmatmul.mubr.f32.gmra.mxu0 %v311
      %v645 = vpop.f32.mrf.mxu0
      %v646 = vadd.f32 %v268, %v645
      %v647 = vpop.f32.mrf.mxu0
      %648 = vmatprep.mubr.f32.mxu0 0.0
      %649 = vmatmul.mubr.f32.gmra.mxu0 %v314
      %v650 = vpop.f32.mrf.mxu0
      %v651 = vadd.f32 %v268, %v650
      %v652 = vpop.f32.mrf.mxu0
      %653 = vmatprep.mubr.f32.mxu0 0.0
      %654 = vmatmul.mubr.f32.gmra.mxu0 %v317
      %v655 = vpop.f32.mrf.mxu0
      %v656 = vadd.f32 %v268, %v655
      %v657 = vpop.f32.mrf.mxu0
      %658 = vmatprep.mubr.f32.mxu0 0.0
      %659 = vmatmul.mubr.f32.gmra.mxu0 %v320
      %v660 = vpop.f32.mrf.mxu0
      %v661 = vadd.f32 %v268, %v660
      %v662 = vpop.f32.mrf.mxu0
      %663 = vmatprep.mubr.f32.mxu0 0.0
      %664 = vmatmul.mubr.f32.gmra.mxu0 %v323
      %v665 = vpop.f32.mrf.mxu0
      %v666 = vadd.f32 %v268, %v665
      %v667 = vpop.f32.mrf.mxu0
      %668 = vmatprep.mubr.f32.mxu0 0.0
      %669 = vmatmul.mubr.f32.gmra.mxu0 %v326
      %v670 = vpop.f32.mrf.mxu0
      %v671 = vadd.f32 %v268, %v670
      %v672 = vpop.f32.mrf.mxu0
      %673 = vmatprep.mubr.f32.mxu0 0.0
      %674 = vmatmul.mubr.f32.gmra.mxu0 %v329
      %v675 = vpop.f32.mrf.mxu0
      %v676 = vadd.f32 %v268, %v675
      %v677 = vpop.f32.mrf.mxu0
      %678 = vmatprep.mubr.f32.mxu0 0.0
      %679 = vmatmul.mubr.f32.gmra.mxu0 %v332
      %v680 = vpop.f32.mrf.mxu0
      %v681 = vadd.f32 %v268, %v680
      %v682 = vpop.f32.mrf.mxu0
      %683 = vmatprep.mubr.f32.mxu0 0.0
      %684 = vmatmul.mubr.f32.gmra.mxu0 %v335
      %v685 = vpop.f32.mrf.mxu0
      %v686 = vadd.f32 %v268, %v685
      %v687 = vpop.f32.mrf.mxu0
      %688 = vmatprep.mubr.f32.mxu0 0.0
      %689 = vmatmul.mubr.f32.gmra.mxu0 %v338
      %v690 = vpop.f32.mrf.mxu0
      %v691 = vadd.f32 %v268, %v690
      %v692 = vpop.f32.mrf.mxu0
      %693 = vmatprep.mubr.f32.mxu0 0.0
      %694 = vmatmul.mubr.f32.gmra.mxu0 %v341
      %v695 = vpop.f32.mrf.mxu0
      %v696 = vadd.f32 %v268, %v695
      %v697 = vpop.f32.mrf.mxu0
      %698 = vmatprep.mubr.f32.mxu0 0.0
      %699 = vmatmul.mubr.f32.gmra.mxu0 %v344
      %v700 = vpop.f32.mrf.mxu0
      %v701 = vadd.f32 %v268, %v700
      %v702 = vpop.f32.mrf.mxu0
      %703 = vmatprep.mubr.f32.mxu0 0.0
      %704 = vmatmul.mubr.f32.gmra.mxu0 %v347
      %v705 = vpop.f32.mrf.mxu0
      %v706 = vadd.f32 %v268, %v705
      %v707 = vpop.f32.mrf.mxu0
      %708 = vmatprep.mubr.f32.mxu0 0.0
      %709 = vmatmul.mubr.f32.gmra.mxu0 %v350
      %v710 = vpop.f32.mrf.mxu0
      %v711 = vadd.f32 %v268, %v710
      %v712 = vpop.f32.mrf.mxu0
      %713 = vmatprep.mubr.f32.mxu0 0.0
      %714 = vmatmul.mubr.f32.gmra.mxu0 %v353
      %v715 = vpop.f32.mrf.mxu0
      %v716 = vadd.f32 %v268, %v715
      %v717 = vpop.f32.mrf.mxu0
      %718 = vmatprep.mubr.f32.mxu0 0.0
      %719 = vmatmul.mubr.f32.gmra.mxu0 %v356
      %v720 = vpop.f32.mrf.mxu0
      %v721 = vadd.f32 %v268, %v720
      %v722 = vpop.f32.mrf.mxu0
      %723 = vmatprep.mubr.f32.mxu0 0.0
      %724 = vmatmul.mubr.f32.gmra.mxu0 %v359
      %v725 = vpop.f32.mrf.mxu0
      %v726 = vadd.f32 %v268, %v725
      %v727 = vpop.f32.mrf.mxu0
      %728 = vmatprep.mubr.f32.mxu0 0.0
      %729 = vmatmul.mubr.f32.gmra.mxu0 %v362
      %v730 = vpop.f32.mrf.mxu0
      %v731 = vadd.f32 %v268, %v730
      %v732 = vpop.f32.mrf.mxu0
      %733 = vmatprep.mubr.f32.mxu0 0.0
      %734 = vmatmul.mubr.f32.gmra.mxu0 %v365
      %v735 = vpop.f32.mrf.mxu0
      %v736 = vadd.f32 %v268, %v735
      %v737 = vpop.f32.mrf.mxu0
      %738 = vmatprep.mubr.f32.mxu0 0.0
      %739 = vmatmul.mubr.f32.gmra.mxu0 %v368
      %v740 = vpop.f32.mrf.mxu0
      %v741 = vadd.f32 %v268, %v740
      %v742 = vpop.f32.mrf.mxu0
      %743 = vmatprep.mubr.f32.mxu0 0.0
      %744 = vmatmul.mubr.f32.gmra.mxu0 %v371
      %v745 = vpop.f32.mrf.mxu0
      %v746 = vadd.f32 %v268, %v745
      %v747 = vpop.f32.mrf.mxu0
      %748 = vmatprep.mubr.f32.mxu0 0.0
      %749 = vmatmul.mubr.f32.gmra.mxu0 %v374
      %v750 = vpop.f32.mrf.mxu0
      %v751 = vadd.f32 %v268, %v750
      %v752 = vpop.f32.mrf.mxu0
      %753 = vmatprep.mubr.f32.mxu0 0.0
      %754 = vmatmul.mubr.f32.gmra.mxu0 %v377
      %v755 = vpop.f32.mrf.mxu0
      %v756 = vadd.f32 %v268, %v755
      %v757 = vpop.f32.mrf.mxu0
      %758 = vmatprep.mubr.f32.mxu0 0.0
      %759 = vmatmul.mubr.f32.gmra.mxu0 %v380
      %v760 = vpop.f32.mrf.mxu0
      %v761 = vadd.f32 %v268, %v760
      %v762 = vpop.f32.mrf.mxu0
      %763 = vmatprep.mubr.f32.mxu0 0.0
      %764 = vmatmul.mubr.f32.gmra.mxu0 %v383
      %v765 = vpop.f32.mrf.mxu0
      %v766 = vadd.f32 %v268, %v765
      %v767 = vpop.f32.mrf.mxu0
      %768 = vmatprep.mubr.f32.mxu0 0.0
      %769 = vmatmul.mubr.f32.gmra.mxu0 %v386
      %v770 = vpop.f32.mrf.mxu0
      %v771 = vadd.f32 %v268, %v770
      %v772 = vpop.f32.mrf.mxu0
      %773 = vmatprep.mubr.f32.mxu0 0.0
      %774 = vmatmul.mubr.f32.gmra.mxu0 %v389
      %v775 = vpop.f32.mrf.mxu0
      %v776 = vadd.f32 %v268, %v775
      %v777 = vpop.f32.mrf.mxu0
      %778 = vmatprep.mubr.f32.mxu0 0.0
      %779 = vmatmul.mubr.f32.gmra.mxu0 %v392
      %v780 = vpop.f32.mrf.mxu0
      %v781 = vadd.f32 %v268, %v780
      %v782 = vpop.f32.mrf.mxu0
      %783 = vmatprep.mubr.f32.mxu0 0.0
      %784 = vmatmul.mubr.f32.gmra.mxu0 %v395
      %v785 = vpop.f32.mrf.mxu0
      %v786 = vadd.f32 %v268, %v785
      %v787 = vpop.f32.mrf.mxu0
      %788 = vmatprep.mubr.f32.mxu0 0.0
      %789 = vmatmul.mubr.f32.gmra.mxu0 %v398
      %v790 = vpop.f32.mrf.mxu0
      %v791 = vadd.f32 %v268, %v790
      %v792 = vpop.f32.mrf.mxu0
      %793 = vmatprep.mubr.f32.mxu0 0.0
      %794 = vmatmul.mubr.f32.gmra.mxu0 %v401
      %v795 = vpop.f32.mrf.mxu0
      %v796 = vadd.f32 %v268, %v795
      %v797 = vpop.f32.mrf.mxu0
      %798 = vmatprep.mubr.f32.mxu0 0.0
      %799 = vmatmul.mubr.f32.gmra.mxu0 %v404
      %v800 = vpop.f32.mrf.mxu0
      %v801 = vadd.f32 %v268, %v800
      %v802 = vpop.f32.mrf.mxu0
      %803 = vmatprep.mubr.f32.mxu0 0.0
      %804 = vmatmul.mubr.f32.gmra.mxu0 %v407
      %v805 = vpop.f32.mrf.mxu0
      %v806 = vadd.f32 %v268, %v805
      %v807 = vpop.f32.mrf.mxu0
      %808 = vmatprep.mubr.f32.mxu0 0.0
      %809 = vmatmul.mubr.f32.gmra.mxu0 %v410
      %v810 = vpop.f32.mrf.mxu0
      %v811 = vadd.f32 %v268, %v810
      %v812 = vpop.f32.mrf.mxu0
      %813 = vmatprep.mubr.f32.mxu0 0.0
      %814 = vmatmul.mubr.f32.gmra.mxu0 %v413
      %v815 = vpop.f32.mrf.mxu0
      %v816 = vadd.f32 %v268, %v815
      %v817 = vpop.f32.mrf.mxu0
      %818 = vmatprep.mubr.f32.mxu0 0.0
      %819 = vmatmul.mubr.f32.gmra.mxu0 %v416
      %v820 = vpop.f32.mrf.mxu0
      %v821 = vadd.f32 %v268, %v820
      %v822 = vpop.f32.mrf.mxu0
      %823 = vmatprep.mubr.f32.mxu0 0.0
      %824 = vmatmul.mubr.f32.gmra.mxu0 %v419
      %v825 = vpop.f32.mrf.mxu0
      %v826 = vadd.f32 %v268, %v825
      %v827 = vpop.f32.mrf.mxu0
      %828 = vmatprep.mubr.f32.mxu0 0.0
      %829 = vmatmul.mubr.f32.gmra.mxu0 %v422
      %v830 = vpop.f32.mrf.mxu0
      %v831 = vadd.f32 %v268, %v830
      %v832 = vpop.f32.mrf.mxu0
      %833 = vmatprep.mubr.f32.mxu0 0.0
      %834 = vmatmul.mubr.f32.gmra.mxu0 %v425
      %v835 = vpop.f32.mrf.mxu0
      %v836 = vadd.f32 %v268, %v835
      %v837 = vpop.f32.mrf.mxu0
      %838 = vmatprep.mubr.f32.mxu0 0.0
      %839 = vmatmul.mubr.f32.gmra.mxu0 %v428
      %v840 = vpop.f32.mrf.mxu0
      %v841 = vadd.f32 %v268, %v840
      %v842 = vpop.f32.mrf.mxu0
      %843 = vmatprep.mubr.f32.mxu0 0.0
      %844 = vmatmul.mubr.f32.gmra.mxu0 %v431
      %v845 = vpop.f32.mrf.mxu0
      %v846 = vadd.f32 %v268, %v845
      %v847 = vpop.f32.mrf.mxu0
      %848 = vmatprep.mubr.f32.mxu0 0.0
      %849 = vmatmul.mubr.f32.gmra.mxu0 %v434
      %v850 = vpop.f32.mrf.mxu0
      %v851 = vadd.f32 %v268, %v850
      %v852 = vpop.f32.mrf.mxu0
      %853 = vmatprep.mubr.f32.mxu0 0.0
      %854 = vmatmul.mubr.f32.gmra.mxu0 %v437
      %v855 = vpop.f32.mrf.mxu0
      %v856 = vadd.f32 %v268, %v855
      %v857 = vpop.f32.mrf.mxu0
      %858 = vmatprep.mubr.f32.mxu0 0.0
      %859 = vmatmul.mubr.f32.gmra.mxu0 %v440
      %v860 = vpop.f32.mrf.mxu0
      %v861 = vadd.f32 %v268, %v860
      %v862 = vpop.f32.mrf.mxu0
      %863 = vmatprep.mubr.f32.mxu0 0.0
      %864 = vmatmul.mubr.f32.gmra.mxu0 %v443
      %v865 = vpop.f32.mrf.mxu0
      %v866 = vadd.f32 %v268, %v865
      %v867 = vpop.f32.mrf.mxu0
      %868 = vmatprep.mubr.f32.mxu0 0.0
      %869 = vmatmul.mubr.f32.gmra.mxu0 %v446
      %v870 = vpop.f32.mrf.mxu0
      %v871 = vadd.f32 %v268, %v870
      %v872 = vpop.f32.mrf.mxu0
      %873 = vmatprep.mubr.f32.mxu0 0.0
      %874 = vmatmul.mubr.f32.gmra.mxu0 %v449
      %v875 = vpop.f32.mrf.mxu0
      %v876 = vadd.f32 %v268, %v875
      %v877 = vpop.f32.mrf.mxu0
      %878 = vmatprep.mubr.f32.mxu0 0.0
      %879 = vmatmul.mubr.f32.gmra.mxu0 %v452
      %v880 = vpop.f32.mrf.mxu0
      %v881 = vadd.f32 %v268, %v880
      %v882 = vpop.f32.mrf.mxu0
      %883 = vmatprep.mubr.f32.mxu0 0.0
      %884 = vmatmul.mubr.f32.gmra.mxu0 %v455
      %v885 = vpop.f32.mrf.mxu0
      %v886 = vadd.f32 %v268, %v885
      %v887 = vpop.f32.mrf.mxu0
      %888 = vmatprep.mubr.f32.mxu0 0.0
      %889 = vmatmul.mubr.f32.gmra.mxu0 %v458
      %v890 = vpop.f32.mrf.mxu0
      %v891 = vadd.f32 %v268, %v890
      %v892 = vpop.f32.mrf.mxu0
      %893 = vmatprep.mubr.f32.mxu0 0.0
      %894 = vmatmul.mubr.f32.gmra.mxu0 %v461
      %v895 = vpop.f32.mrf.mxu0
      %v896 = vadd.f32 %v268, %v895
      %v897 = vpop.f32.mrf.mxu0
      %898 = vmatprep.mubr.f32.mxu0 0.0
      %899 = vmatmul.mubr.f32.gmra.mxu0 %v464
      %v900 = vpop.f32.mrf.mxu0
      %v901 = vadd.f32 %v268, %v900
      %v902 = vpop.f32.mrf.mxu0
      %903 = vmatprep.mubr.f32.mxu0 0.0
      %904 = vmatmul.mubr.f32.gmra.mxu0 %v467
      %v905 = vpop.f32.mrf.mxu0
      %v906 = vadd.f32 %v268, %v905
      %v907 = vpop.f32.mrf.mxu0
      %908 = vmatprep.mubr.f32.mxu0 0.0
      %909 = vmatmul.mubr.f32.gmra.mxu0 %v470
      %v910 = vpop.f32.mrf.mxu0
      %v911 = vadd.f32 %v268, %v910
      %v912 = vpop.f32.mrf.mxu0
      %913 = vmatprep.mubr.f32.mxu0 0.0
      %914 = vmatmul.mubr.f32.gmra.mxu0 %v473
      %v915 = vpop.f32.mrf.mxu0
      %v916 = vadd.f32 %v268, %v915
      %v917 = vpop.f32.mrf.mxu0
      %918 = vmatprep.mubr.f32.mxu0 0.0
      %919 = vmatmul.mubr.f32.gmra.mxu0 %v476
      %v920 = vpop.f32.mrf.mxu0
      %v921 = vadd.f32 %v268, %v920
      %v922 = vpop.f32.mrf.mxu0
      %923 = vmatprep.mubr.f32.mxu0 0.0
      %924 = vmatmul.mubr.f32.gmra.mxu0 %v479
      %v925 = vpop.f32.mrf.mxu0
      %v926 = vadd.f32 %v268, %v925
      %v927 = vpop.f32.mrf.mxu0
      %928 = vmatprep.mubr.f32.mxu0 0.0
      %929 = vmatmul.mubr.f32.gmra.mxu0 %v482
      %v930 = vpop.f32.mrf.mxu0
      %v931 = vadd.f32 %v268, %v930
      %v932 = vpop.f32.mrf.mxu0
      %933 = vmatprep.mubr.f32.mxu0 0.0
      %934 = vmatmul.mubr.f32.gmra.mxu0 %v485
      %v935 = vpop.f32.mrf.mxu0
      %v936 = vadd.f32 %v268, %v935
      %v937 = vpop.f32.mrf.mxu0
      %938 = vmatprep.mubr.f32.mxu0 0.0
      %939 = vmatmul.mubr.f32.gmra.mxu0 %v488
      %v940 = vpop.f32.mrf.mxu0
      %v941 = vadd.f32 %v268, %v940
      %v942 = vpop.f32.mrf.mxu0
      %943 = vmatprep.mubr.f32.mxu0 0.0
      %944 = vmatmul.mubr.f32.gmra.mxu0 %v491
      %v945 = vpop.f32.mrf.mxu0
      %v946 = vadd.f32 %v268, %v945
      %v947 = vpop.f32.mrf.mxu0
      %948 = vmatprep.mubr.f32.mxu0 0.0
      %949 = vmatmul.mubr.f32.gmra.mxu0 %v494
      %v950 = vpop.f32.mrf.mxu0
      %v951 = vadd.f32 %v268, %v950
      %v952 = vpop.f32.mrf.mxu0
      %953 = vmatprep.mubr.f32.mxu0 0.0
      %954 = vmatmul.mubr.f32.gmra.mxu0 %v497
      %v955 = vpop.f32.mrf.mxu0
      %v956 = vadd.f32 %v268, %v955
      %v957 = vpop.f32.mrf.mxu0
      %958 = vmatprep.mubr.f32.mxu0 0.0
      %959 = vmatmul.mubr.f32.gmra.mxu0 %v500
      %v960 = vpop.f32.mrf.mxu0
      %v961 = vadd.f32 %v268, %v960
      %v962 = vpop.f32.mrf.mxu0
      %963 = vmatprep.mubr.f32.mxu0 0.0
      %964 = vmatmul.mubr.f32.gmra.mxu0 %v503
      %v965 = vpop.f32.mrf.mxu0
      %v966 = vadd.f32 %v268, %v965
      %v967 = vpop.f32.mrf.mxu0
      %968 = vmatprep.mubr.f32.mxu0 0.0
      %969 = vmatmul.mubr.f32.gmra.mxu0 %v506
      %v970 = vpop.f32.mrf.mxu0
      %v971 = vadd.f32 %v268, %v970
      %v972 = vpop.f32.mrf.mxu0
      %973 = vmatprep.mubr.f32.mxu0 0.0
      %974 = vmatmul.mubr.f32.gmra.mxu0 %v509
      %v975 = vpop.f32.mrf.mxu0
      %v976 = vadd.f32 %v268, %v975
      %v977 = vpop.f32.mrf.mxu0
      %978 = vmatprep.mubr.f32.mxu0 0.0
      %979 = vmatmul.mubr.f32.gmra.mxu0 %v512
      %v980 = vpop.f32.mrf.mxu0
      %v981 = vadd.f32 %v268, %v980
      %v982 = vpop.f32.mrf.mxu0
      %983 = vdwg.mxu0
      %v984 = vmax.f32 %v581, 0.0
      %v985 = vmax.f32 %v586, 0.0
      %v986 = vmax.f32 %v591, 0.0
      %v987 = vmax.f32 %v596, 0.0
      %v988 = vmax.f32 %v601, 0.0
      %v989 = vmax.f32 %v606, 0.0
      %v990 = vmax.f32 %v611, 0.0
      %v991 = vmax.f32 %v616, 0.0
      %v992 = vmax.f32 %v621, 0.0
      %v993 = vmax.f32 %v626, 0.0
      %v994 = vmax.f32 %v631, 0.0
      %v995 = vmax.f32 %v636, 0.0
      %v996 = vmax.f32 %v641, 0.0
      %v997 = vmax.f32 %v646, 0.0
      %v998 = vmax.f32 %v651, 0.0
      %v999 = vmax.f32 %v656, 0.0
      %v1000 = vmax.f32 %v661, 0.0
      %v1001 = vmax.f32 %v666, 0.0
      %v1002 = vmax.f32 %v671, 0.0
      %v1003 = vmax.f32 %v676, 0.0
      %v1004 = vmax.f32 %v681, 0.0
      %v1005 = vmax.f32 %v686, 0.0
      %v1006 = vmax.f32 %v691, 0.0
      %v1007 = vmax.f32 %v696, 0.0
      %v1008 = vmax.f32 %v701, 0.0
      %v1009 = vmax.f32 %v706, 0.0
      %v1010 = vmax.f32 %v711, 0.0
      %v1011 = vmax.f32 %v716, 0.0
      %v1012 = vmax.f32 %v721, 0.0
      %v1013 = vmax.f32 %v726, 0.0
      %v1014 = vmax.f32 %v731, 0.0
      %v1015 = vmax.f32 %v736, 0.0
      %v1016 = vmax.f32 %v741, 0.0
      %v1017 = vmax.f32 %v746, 0.0
      %v1018 = vmax.f32 %v751, 0.0
      %v1019 = vmax.f32 %v756, 0.0
      %v1020 = vmax.f32 %v761, 0.0
      %v1021 = vmax.f32 %v766, 0.0
      %v1022 = vmax.f32 %v771, 0.0
      %v1023 = vmax.f32 %v776, 0.0
      %v1024 = vmax.f32 %v781, 0.0
      %v1025 = vmax.f32 %v786, 0.0
      %v1026 = vmax.f32 %v791, 0.0
      %v1027 = vmax.f32 %v796, 0.0
      %v1028 = vmax.f32 %v801, 0.0
      %v1029 = vmax.f32 %v806, 0.0
      %v1030 = vmax.f32 %v811, 0.0
      %v1031 = vmax.f32 %v816, 0.0
      %v1032 = vmax.f32 %v821, 0.0
      %v1033 = vmax.f32 %v826, 0.0
      %v1034 = vmax.f32 %v831, 0.0
      %v1035 = vmax.f32 %v836, 0.0
      %v1036 = vmax.f32 %v841, 0.0
      %v1037 = vmax.f32 %v846, 0.0
      %v1038 = vmax.f32 %v851, 0.0
      %v1039 = vmax.f32 %v856, 0.0
      %v1040 = vmax.f32 %v861, 0.0
      %v1041 = vmax.f32 %v866, 0.0
      %v1042 = vmax.f32 %v871, 0.0
      %v1043 = vmax.f32 %v876, 0.0
      %v1044 = vmax.f32 %v881, 0.0
      %v1045 = vmax.f32 %v886, 0.0
      %v1046 = vmax.f32 %v891, 0.0
      %v1047 = vmax.f32 %v896, 0.0
      %v1048 = vmax.f32 %v901, 0.0
      %v1049 = vmax.f32 %v906, 0.0
      %v1050 = vmax.f32 %v911, 0.0
      %v1051 = vmax.f32 %v916, 0.0
      %v1052 = vmax.f32 %v921, 0.0
      %v1053 = vmax.f32 %v926, 0.0
      %v1054 = vmax.f32 %v931, 0.0
      %v1055 = vmax.f32 %v936, 0.0
      %v1056 = vmax.f32 %v941, 0.0
      %v1057 = vmax.f32 %v946, 0.0
      %v1058 = vmax.f32 %v951, 0.0
      %v1059 = vmax.f32 %v956, 0.0
      %v1060 = vmax.f32 %v961, 0.0
      %v1061 = vmax.f32 %v966, 0.0
      %v1062 = vmax.f32 %v971, 0.0
      %v1063 = vmax.f32 %v976, 0.0
      %v1064 = vmax.f32 %v981, 0.0
      %vm1065 = vcmask 31744
      %1066 = vst.msk [vmem:[%s172] sm:$0xff] %vm1065, %v984
      %1067 = vst.msk [vmem:[%s172 + $0x8] sm:$0xff] %vm1065, %v985
      %1068 = vst.msk [vmem:[%s172 + $0x10] sm:$0xff] %vm1065, %v986
      %1069 = vst.msk [vmem:[%s172 + $0x18] sm:$0xff] %vm1065, %v987
      %1070 = vst.msk [vmem:[%s172 + $0x20] sm:$0xff] %vm1065, %v988
      %1071 = vst.msk [vmem:[%s172 + $0x28] sm:$0xff] %vm1065, %v989
      %1072 = vst.msk [vmem:[%s172 + $0x30] sm:$0xff] %vm1065, %v990
      %1073 = vst.msk [vmem:[%s172 + $0x38] sm:$0xff] %vm1065, %v991
      %1074 = vst.msk [vmem:[%s172 + $0x40] sm:$0xff] %vm1065, %v992
      %1075 = vst.msk [vmem:[%s172 + $0x48] sm:$0xff] %vm1065, %v993
      %1076 = vst.msk [vmem:[%s172 + $0x50] sm:$0xff] %vm1065, %v994
      %1077 = vst.msk [vmem:[%s172 + $0x58] sm:$0xff] %vm1065, %v995
      %1078 = vst.msk [vmem:[%s172 + $0x60] sm:$0xff] %vm1065, %v996
      %1079 = vst.msk [vmem:[%s172 + $0x68] sm:$0xff] %vm1065, %v997
      %1080 = vst.msk [vmem:[%s172 + $0x70] sm:$0xff] %vm1065, %v998
      %1081 = vst.msk [vmem:[%s172 + $0x78] sm:$0xff] %vm1065, %v999
      %1082 = vst.msk [vmem:[%s172 + $0x80] sm:$0xff] %vm1065, %v1000
      %1083 = vst.msk [vmem:[%s172 + $0x88] sm:$0xff] %vm1065, %v1001
      %1084 = vst.msk [vmem:[%s172 + $0x90] sm:$0xff] %vm1065, %v1002
      %1085 = vst.msk [vmem:[%s172 + $0x98] sm:$0xff] %vm1065, %v1003
      %1086 = vst.msk [vmem:[%s172 + $0xa0] sm:$0xff] %vm1065, %v1004
      %1087 = vst.msk [vmem:[%s172 + $0xa8] sm:$0xff] %vm1065, %v1005
      %1088 = vst.msk [vmem:[%s172 + $0xb0] sm:$0xff] %vm1065, %v1006
      %1089 = vst.msk [vmem:[%s172 + $0xb8] sm:$0xff] %vm1065, %v1007
      %1090 = vst.msk [vmem:[%s172 + $0xc0] sm:$0xff] %vm1065, %v1008
      %1091 = vst.msk [vmem:[%s172 + $0xc8] sm:$0xff] %vm1065, %v1009
      %1092 = vst.msk [vmem:[%s172 + $0xd0] sm:$0xff] %vm1065, %v1010
      %1093 = vst.msk [vmem:[%s172 + $0xd8] sm:$0xff] %vm1065, %v1011
      %1094 = vst.msk [vmem:[%s172 + $0xe0] sm:$0xff] %vm1065, %v1012
      %1095 = vst.msk [vmem:[%s172 + $0xe8] sm:$0xff] %vm1065, %v1013
      %1096 = vst.msk [vmem:[%s172 + $0xf0] sm:$0xff] %vm1065, %v1014
      %1097 = vst.msk [vmem:[%s172 + $0xf8] sm:$0xff] %vm1065, %v1015
      %1098 = vst.msk [vmem:[%s172 + $0x100] sm:$0xff] %vm1065, %v1016
      %1099 = vst.msk [vmem:[%s172 + $0x108] sm:$0xff] %vm1065, %v1017
      %1100 = vst.msk [vmem:[%s172 + $0x110] sm:$0xff] %vm1065, %v1018
      %1101 = vst.msk [vmem:[%s172 + $0x118] sm:$0xff] %vm1065, %v1019
      %1102 = vst.msk [vmem:[%s172 + $0x120] sm:$0xff] %vm1065, %v1020
      %1103 = vst.msk [vmem:[%s172 + $0x128] sm:$0xff] %vm1065, %v1021
      %1104 = vst.msk [vmem:[%s172 + $0x130] sm:$0xff] %vm1065, %v1022
      %1105 = vst.msk [vmem:[%s172 + $0x138] sm:$0xff] %vm1065, %v1023
      %1106 = vst.msk [vmem:[%s172 + $0x140] sm:$0xff] %vm1065, %v1024
      %1107 = vst.msk [vmem:[%s172 + $0x148] sm:$0xff] %vm1065, %v1025
      %1108 = vst.msk [vmem:[%s172 + $0x150] sm:$0xff] %vm1065, %v1026
      %1109 = vst.msk [vmem:[%s172 + $0x158] sm:$0xff] %vm1065, %v1027
      %1110 = vst.msk [vmem:[%s172 + $0x160] sm:$0xff] %vm1065, %v1028
      %1111 = vst.msk [vmem:[%s172 + $0x168] sm:$0xff] %vm1065, %v1029
      %1112 = vst.msk [vmem:[%s172 + $0x170] sm:$0xff] %vm1065, %v1030
      %1113 = vst.msk [vmem:[%s172 + $0x178] sm:$0xff] %vm1065, %v1031
      %1114 = vst.msk [vmem:[%s172 + $0x180] sm:$0xff] %vm1065, %v1032
      %1115 = vst.msk [vmem:[%s172 + $0x188] sm:$0xff] %vm1065, %v1033
      %1116 = vst.msk [vmem:[%s172 + $0x190] sm:$0xff] %vm1065, %v1034
      %1117 = vst.msk [vmem:[%s172 + $0x198] sm:$0xff] %vm1065, %v1035
      %1118 = vst.msk [vmem:[%s172 + $0x1a0] sm:$0xff] %vm1065, %v1036
      %1119 = vst.msk [vmem:[%s172 + $0x1a8] sm:$0xff] %vm1065, %v1037
      %1120 = vst.msk [vmem:[%s172 + $0x1b0] sm:$0xff] %vm1065, %v1038
      %1121 = vst.msk [vmem:[%s172 + $0x1b8] sm:$0xff] %vm1065, %v1039
      %1122 = vst.msk [vmem:[%s172 + $0x1c0] sm:$0xff] %vm1065, %v1040
      %1123 = vst.msk [vmem:[%s172 + $0x1c8] sm:$0xff] %vm1065, %v1041
      %1124 = vst.msk [vmem:[%s172 + $0x1d0] sm:$0xff] %vm1065, %v1042
      %1125 = vst.msk [vmem:[%s172 + $0x1d8] sm:$0xff] %vm1065, %v1043
      %1126 = vst.msk [vmem:[%s172 + $0x1e0] sm:$0xff] %vm1065, %v1044
      %1127 = vst.msk [vmem:[%s172 + $0x1e8] sm:$0xff] %vm1065, %v1045
      %1128 = vst.msk [vmem:[%s172 + $0x1f0] sm:$0xff] %vm1065, %v1046
      %1129 = vst.msk [vmem:[%s172 + $0x1f8] sm:$0xff] %vm1065, %v1047
      %1130 = vst.msk [vmem:[%s172 + $0x200] sm:$0xff] %vm1065, %v1048
      %1131 = vst.msk [vmem:[%s172 + $0x208] sm:$0xff] %vm1065, %v1049
      %1132 = vst.msk [vmem:[%s172 + $0x210] sm:$0xff] %vm1065, %v1050
      %1133 = vst.msk [vmem:[%s172 + $0x218] sm:$0xff] %vm1065, %v1051
      %1134 = vst.msk [vmem:[%s172 + $0x220] sm:$0xff] %vm1065, %v1052
      %1135 = vst.msk [vmem:[%s172 + $0x228] sm:$0xff] %vm1065, %v1053
      %1136 = vst.msk [vmem:[%s172 + $0x230] sm:$0xff] %vm1065, %v1054
      %1137 = vst.msk [vmem:[%s172 + $0x238] sm:$0xff] %vm1065, %v1055
      %1138 = vst.msk [vmem:[%s172 + $0x240] sm:$0xff] %vm1065, %v1056
      %1139 = vst.msk [vmem:[%s172 + $0x248] sm:$0xff] %vm1065, %v1057
      %1140 = vst.msk [vmem:[%s172 + $0x250] sm:$0xff] %vm1065, %v1058
      %1141 = vst.msk [vmem:[%s172 + $0x258] sm:$0xff] %vm1065, %v1059
      %1142 = vst.msk [vmem:[%s172 + $0x260] sm:$0xff] %vm1065, %v1060
      %1143 = vst.msk [vmem:[%s172 + $0x268] sm:$0xff] %vm1065, %v1061
      %1144 = vst.msk [vmem:[%s172 + $0x270] sm:$0xff] %vm1065, %v1062
      %1145 = vst.msk [vmem:[%s172 + $0x278] sm:$0xff] %vm1065, %v1063
      %1146 = vst.msk [vmem:[%s172 + $0x280] sm:$0xff] %vm1065, %v1064
      %s1147 = smul.u32 81, %s14
      %p1148 = scmp.lt.s32.totalorder %s1147, 161
      %s1149 = scalar_select %p1148, %s1147, 161
      %s1150 = smul.addr %s1149, 8
      %s1151 = scalar_lea.vmem %s3, %s1150
      // Predicated region
      $region33: #{ppo_lstm3_forward.2} parent=31 // pred_check
        %p1152 = pneg %p100
      $region34: #{ppo_lstm3_forward.2} parent=31 // pred_check_branch
        %1154 = sbr.rel (%p1152) target = $region36
      $region35: #{ppo_lstm3_forward.2} parent=31 // pred_region
        %s1155 = smul.u32 81, %s14
      $region36: #{ppo_lstm3_forward.2} parent=31 // pred_fallthru
        _
    $region32: #{ppo_lstm3_forward.2} parent=5 // pred_fallthru
      _
    %p1156 = scmp.le.s32.totalorder 2, %s9
    // Predicated region
    $region37: #{ppo_lstm3_forward.2} parent=5 // pred_check
      %p1157 = pneg %p1156
    $region38: #{ppo_lstm3_forward.2} parent=5 // pred_check_branch
      %1159 = sbr.rel (%p1157) target = $region40
    $region39: #{ppo_lstm3_forward.2} parent=5 // pred_region
      %s1160 = ssub.s32 %s9, 2
      // Predicated region
      $region41: #{ppo_lstm3_forward.2} parent=39 // pred_check
        %p1161 = pneg %p106
      $region42: #{ppo_lstm3_forward.2} parent=39 // pred_check_branch
        %1163 = sbr.rel (%p1161) target = $region44
      $region43: #{ppo_lstm3_forward.2} parent=39 // pred_region
        %s1164 = smul.u32 81, %s15
        %p1165 = scmp.lt.s32.totalorder %s1164, 161
        %s1166 = scalar_select %p1165, %s1164, 161
        %s1167 = smul.addr %s1166, 8
        %s1168 = scalar_lea.vmem %s3, %s1167
      $region44: #{ppo_lstm3_forward.2} parent=39 // pred_fallthru
        _
    $region40: #{ppo_lstm3_forward.2} parent=5 // pred_fallthru
      _
  $region6: #{ppo_lstm3_forward.2} parent=0 // loop_footer
    %s13 = sadd.s32 1, %s9
  $region7: #{ppo_lstm3_forward.2} parent=0 // loop_footer_branch
    %8 = sbr.rel target = $region3
  $region8: #{ppo_lstm3_forward.2} parent=0 // loop_exit
    _

// kernel: ppo_lstm3_forward.3
$region0: #{ppo_lstm3_forward.3}
  #allocation0 [shape = 'u32[]', space=smem, size = 0x4, offset = 0x4, fixed_abs, tag = 'smem constant byte address 0x4 - core index']
  #allocation1 [shape = 'u32[144,128]{1,0:T(1,128)}', space=vmem, size = 0x12000, scoped, tag = 'internal scratch']
  #allocation2 [shape = 'f32[2,2,32]{2,1,0:T(2,128)}', space=vmem, size = 0x800, scoped, tag = 'scratch operand']
  #allocation3 [shape = 'f32[2,2,32]{2,1,0:T(2,128)}', space=vmem, size = 0x800, scoped, tag = 'scratch operand']
  %s0 = inlined_call_operand.vmem [shape: f32[2,8,324], index: 0, kind: input, shape index: {}]
  %s1 = inlined_call_operand.vmem [shape: f32[2,8,2], index: 1, kind: input, shape index: {}]
  %s2 = inlined_call_operand.vmem [shape: f32[2,2,32], index: 2, kind: input, shape index: {}]
  %s3 = inlined_call_operand.vmem [shape: f32[2,2,32], index: 3, kind: input, shape index: {}]
  %s4 = inlined_call_operand.vmem [shape: f32[324,72], index: 4, kind: input, shape index: {}]
  %s5 = inlined_call_operand.vmem [shape: f32[1,72], index: 5, kind: input, shape index: {}]
  %s6 = inlined_call_operand.vmem [shape: f32[72,32], index: 6, kind: input, shape index: {}]
  %s7 = inlined_call_operand.vmem [shape: f32[1,32], index: 7, kind: input, shape index: {}]
  %s8 = inlined_call_operand.vmem [shape: f32[64,6], index: 8, kind: input, shape index: {}]
  %s9 = inlined_call_operand.vmem [shape: f32[1,6], index: 9, kind: input, shape index: {}]
  %s10 = inlined_call_operand.vmem [shape: f32[2,128], index: 10, kind: input, shape index: {}]
  %s11 = inlined_call_operand.vmem [shape: f32[32,128], index: 11, kind: input, shape index: {}]
  %s12 = inlined_call_operand.vmem [shape: f32[1,128], index: 12, kind: input, shape index: {}]
  %s13 = inlined_call_operand.vmem [shape: f32[32,128], index: 13, kind: input, shape index: {}]
  %s14 = inlined_call_operand.vmem [shape: f32[32,128], index: 14, kind: input, shape index: {}]
  %s15 = inlined_call_operand.vmem [shape: f32[1,128], index: 15, kind: input, shape index: {}]
  %s16 = inlined_call_operand.vmem [shape: f32[2,8,6], index: 16, kind: output, shape index: {0}]
  %s17 = inlined_call_operand.vmem [shape: f32[2,2,64], index: 17, kind: output, shape index: {1}]
  %18 = xla_tuple %s16, %s17
  %s19 = sld [smem:[#allocation0]]
  $region113: #{ppo_lstm3_forward.3} parent=0
    _
  %s21 = ssub.s32 1, %s19
  %s22 = scalar_select 0, %s21, %s19
  loop: start=0, step=1, limit=4
  $region2: #{ppo_lstm3_forward.3} parent=0 // loop_pre_header
    _
  $region3: #{ppo_lstm3_forward.3} parent=0 // loop_header
    %s24 = sphi 0, %s28
    %p25 = scmp.ge.s32.totalorder %s24, 4
    %s34 = sphi 0, %s36
    %s37 = sphi 0, %s34
    %s38 = sphi 0, %s37
    %s54 = sphi 0, %s38
    %s60 = sphi 0, %s62
    %s63 = sphi 0, %s60
    %s64 = sphi 0, %s63
    %s80 = sphi 0, %s64
    %s84 = sphi 0, %s84
    %s86 = sphi 0, %s84
    %s87 = sphi 0, %s86
    %s101 = sphi 0, %s87
    %s105 = sphi 0, %s105
    %s107 = sphi 0, %s105
    %s108 = sphi 0, %s107
    %s122 = sphi 0, %s108
    %s126 = sphi 0, %s126
    %s128 = sphi 0, %s126
    %s129 = sphi 0, %s128
    %s143 = sphi 0, %s129
    %s147 = sphi 0, %s147
    %s149 = sphi 0, %s147
    %s150 = sphi 0, %s149
    %s164 = sphi 0, %s150
    %s168 = sphi 0, %s168
    %s170 = sphi 0, %s168
    %s171 = sphi 0, %s170
    %s185 = sphi 0, %s171
    %s189 = sphi 0, %s189
    %s191 = sphi 0, %s189
    %s192 = sphi 0, %s191
    %s206 = sphi 0, %s192
    %s210 = sphi 0, %s210
    %s212 = sphi 0, %s210
    %s213 = sphi 0, %s212
    %s227 = sphi 0, %s213
    %s231 = sphi 0, %s231
    %s233 = sphi 0, %s231
    %s234 = sphi 0, %s233
    %s248 = sphi 0, %s234
    %s252 = sphi 0, %s252
    %s254 = sphi 0, %s252
    %s255 = sphi 0, %s254
    %s269 = sphi 0, %s255
    %s273 = sphi 0, %s273
    %s275 = sphi 0, %s273
    %s276 = sphi 0, %s275
    %s290 = sphi 0, %s276
    %s294 = sphi 0, %s294
    %s296 = sphi 0, %s294
    %s297 = sphi 0, %s296
    %s311 = sphi 0, %s297
    %s315 = sphi 0, %s315
    %s317 = sphi 0, %s315
    %s318 = sphi 0, %s317
    %s332 = sphi 0, %s318
    %s336 = sphi 0, %s336
    %s338 = sphi 0, %s336
    %s339 = sphi 0, %s338
    %s353 = sphi 0, %s339
    %s357 = sphi 0, %s357
    %s359 = sphi 0, %s357
    %s360 = sphi 0, %s359
    %s374 = sphi 0, %s360
    %s380 = sphi 0, %s382
    %s383 = sphi 0, %s380
    %s384 = sphi 0, %s383
    %s400 = sphi 0, %s384
    %s404 = sphi 0, %s404
    %s406 = sphi 0, %s404
    %s407 = sphi 0, %s406
    %s421 = sphi 0, %s407
  $region4: #{ppo_lstm3_forward.3} parent=0 // loop_header_branch
    %27 = sbr.rel (%p25) target = $region8
  $region5: #{ppo_lstm3_forward.3} parent=0 // loop_body
    %s29 = ssub.s32 %s24, 1
    %s30 = ssub.s32 %s24, 2
    %s31 = sadd.s32 %s24, 1
    %s32 = ssub.s32 %s24, %s31
    %p33 = scmp.eq.s32.totalorder %s32, 0
    %s35 = sadd.s32 %s34, 1
    %s36 = scalar_select %p33, %s34, %s35
    %p39 = pneg %p33
    %p40 = scmp.eq.s32.totalorder %s24, 1
    %p41 = por %p39, %p40
    %p42 = scmp.ne.s32.totalorder %s34, %s37
    %p43 = scmp.eq.s32.totalorder %s24, 0
    %p44 = por %p42, %p43
    %p45 = scmp.ne.s32.totalorder %s34, %s37
    %p46 = scmp.eq.s32.totalorder %s29, 1
    %p47 = por %p45, %p46
    %p48 = scmp.ne.s32.totalorder %s37, %s38
    %p49 = scmp.eq.s32.totalorder %s29, 0
    %p50 = por %p48, %p49
    %p51 = scmp.ne.s32.totalorder %s37, %s38
    %p52 = scmp.eq.s32.totalorder %s30, 1
    %p53 = por %p51, %p52
    %p55 = scmp.ne.s32.totalorder %s38, %s54
    %p56 = scmp.eq.s32.totalorder %s30, 0
    %p57 = por %p55, %p56
    %s58 = ssub.s32 %s24, %s31
    %p59 = scmp.eq.s32.totalorder %s58, 0
    %s61 = sadd.s32 %s60, 1
    %s62 = scalar_select %p59, %s60, %s61
    %p65 = pneg %p59
    %p66 = scmp.eq.s32.totalorder %s24, 1
    %p67 = por %p65, %p66
    %p68 = scmp.ne.s32.totalorder %s60, %s63
    %p69 = scmp.eq.s32.totalorder %s24, 0
    %p70 = por %p68, %p69
    %p71 = scmp.ne.s32.totalorder %s60, %s63
    %p72 = scmp.eq.s32.totalorder %s29, 1
    %p73 = por %p71, %p72
    %p74 = scmp.ne.s32.totalorder %s63, %s64
    %p75 = scmp.eq.s32.totalorder %s29, 0
    %p76 = por %p74, %p75
    %p77 = scmp.ne.s32.totalorder %s63, %s64
    %p78 = scmp.eq.s32.totalorder %s30, 1
    %p79 = por %p77, %p78
    %p81 = scmp.ne.s32.totalorder %s64, %s80
    %p82 = scmp.eq.s32.totalorder %s30, 0
    %p83 = por %p81, %p82
    %s85 = sadd.s32 %s84, 1
    %p88 = scmp.eq.s32.totalorder %s24, 1
    %p89 = scmp.ne.s32.totalorder %s84, %s86
    %p90 = scmp.eq.s32.totalorder %s24, 0
    %p91 = por %p89, %p90
    %p92 = scmp.ne.s32.totalorder %s84, %s86
    %p93 = scmp.eq.s32.totalorder %s29, 1
    %p94 = por %p92, %p93
    %p95 = scmp.ne.s32.totalorder %s86, %s87
    %p96 = scmp.eq.s32.totalorder %s29, 0
    %p97 = por %p95, %p96
    %p98 = scmp.ne.s32.totalorder %s86, %s87
    %p99 = scmp.eq.s32.totalorder %s30, 1
    %p100 = por %p98, %p99
    %p102 = scmp.ne.s32.totalorder %s87, %s101
    %p103 = scmp.eq.s32.totalorder %s30, 0
    %p104 = por %p102, %p103
    %s106 = sadd.s32 %s105, 1
    %p109 = scmp.eq.s32.totalorder %s24, 1
    %p110 = scmp.ne.s32.totalorder %s105, %s107
    %p111 = scmp.eq.s32.totalorder %s24, 0
    %p112 = por %p110, %p111
    %p113 = scmp.ne.s32.totalorder %s105, %s107
    %p114 = scmp.eq.s32.totalorder %s29, 1
    %p115 = por %p113, %p114
    %p116 = scmp.ne.s32.totalorder %s107, %s108
    %p117 = scmp.eq.s32.totalorder %s29, 0
    %p118 = por %p116, %p117
    %p119 = scmp.ne.s32.totalorder %s107, %s108
    %p120 = scmp.eq.s32.totalorder %s30, 1
    %p121 = por %p119, %p120
    %p123 = scmp.ne.s32.totalorder %s108, %s122
    %p124 = scmp.eq.s32.totalorder %s30, 0
    %p125 = por %p123, %p124
    %s127 = sadd.s32 %s126, 1
    %p130 = scmp.eq.s32.totalorder %s24, 1
    %p131 = scmp.ne.s32.totalorder %s126, %s128
    %p132 = scmp.eq.s32.totalorder %s24, 0
    %p133 = por %p131, %p132
    %p134 = scmp.ne.s32.totalorder %s126, %s128
    %p135 = scmp.eq.s32.totalorder %s29, 1
    %p136 = por %p134, %p135
    %p137 = scmp.ne.s32.totalorder %s128, %s129
    %p138 = scmp.eq.s32.totalorder %s29, 0
    %p139 = por %p137, %p138
    %p140 = scmp.ne.s32.totalorder %s128, %s129
    %p141 = scmp.eq.s32.totalorder %s30, 1
    %p142 = por %p140, %p141
    %p144 = scmp.ne.s32.totalorder %s129, %s143
    %p145 = scmp.eq.s32.totalorder %s30, 0
    %p146 = por %p144, %p145
    %s148 = sadd.s32 %s147, 1
    %p151 = scmp.eq.s32.totalorder %s24, 1
    %p152 = scmp.ne.s32.totalorder %s147, %s149
    %p153 = scmp.eq.s32.totalorder %s24, 0
    %p154 = por %p152, %p153
    %p155 = scmp.ne.s32.totalorder %s147, %s149
    %p156 = scmp.eq.s32.totalorder %s29, 1
    %p157 = por %p155, %p156
    %p158 = scmp.ne.s32.totalorder %s149, %s150
    %p159 = scmp.eq.s32.totalorder %s29, 0
    %p160 = por %p158, %p159
    %p161 = scmp.ne.s32.totalorder %s149, %s150
    %p162 = scmp.eq.s32.totalorder %s30, 1
    %p163 = por %p161, %p162
    %p165 = scmp.ne.s32.totalorder %s150, %s164
    %p166 = scmp.eq.s32.totalorder %s30, 0
    %p167 = por %p165, %p166
    %s169 = sadd.s32 %s168, 1
    %p172 = scmp.eq.s32.totalorder %s24, 1
    %p173 = scmp.ne.s32.totalorder %s168, %s170
    %p174 = scmp.eq.s32.totalorder %s24, 0
    %p175 = por %p173, %p174
    %p176 = scmp.ne.s32.totalorder %s168, %s170
    %p177 = scmp.eq.s32.totalorder %s29, 1
    %p178 = por %p176, %p177
    %p179 = scmp.ne.s32.totalorder %s170, %s171
    %p180 = scmp.eq.s32.totalorder %s29, 0
    %p181 = por %p179, %p180
    %p182 = scmp.ne.s32.totalorder %s170, %s171
    %p183 = scmp.eq.s32.totalorder %s30, 1
    %p184 = por %p182, %p183
    %p186 = scmp.ne.s32.totalorder %s171, %s185
    %p187 = scmp.eq.s32.totalorder %s30, 0
    %p188 = por %p186, %p187
    %s190 = sadd.s32 %s189, 1
    %p193 = scmp.eq.s32.totalorder %s24, 1
    %p194 = scmp.ne.s32.totalorder %s189, %s191
    %p195 = scmp.eq.s32.totalorder %s24, 0
    %p196 = por %p194, %p195
    %p197 = scmp.ne.s32.totalorder %s189, %s191
    %p198 = scmp.eq.s32.totalorder %s29, 1
    %p199 = por %p197, %p198
    %p200 = scmp.ne.s32.totalorder %s191, %s192
    %p201 = scmp.eq.s32.totalorder %s29, 0
    %p202 = por %p200, %p201
    %p203 = scmp.ne.s32.totalorder %s191, %s192
    %p204 = scmp.eq.s32.totalorder %s30, 1
    %p205 = por %p203, %p204
    %p207 = scmp.ne.s32.totalorder %s192, %s206
    %p208 = scmp.eq.s32.totalorder %s30, 0
    %p209 = por %p207, %p208
    %s211 = sadd.s32 %s210, 1
    %p214 = scmp.eq.s32.totalorder %s24, 1
    %p215 = scmp.ne.s32.totalorder %s210, %s212
    %p216 = scmp.eq.s32.totalorder %s24, 0
    %p217 = por %p215, %p216
    %p218 = scmp.ne.s32.totalorder %s210, %s212
    %p219 = scmp.eq.s32.totalorder %s29, 1
    %p220 = por %p218, %p219
    %p221 = scmp.ne.s32.totalorder %s212, %s213
    %p222 = scmp.eq.s32.totalorder %s29, 0
    %p223 = por %p221, %p222
    %p224 = scmp.ne.s32.totalorder %s212, %s213
    %p225 = scmp.eq.s32.totalorder %s30, 1
    %p226 = por %p224, %p225
    %p228 = scmp.ne.s32.totalorder %s213, %s227
    %p229 = scmp.eq.s32.totalorder %s30, 0
    %p230 = por %p228, %p229
    %s232 = sadd.s32 %s231, 1
    %p235 = scmp.eq.s32.totalorder %s24, 1
    %p236 = scmp.ne.s32.totalorder %s231, %s233
    %p237 = scmp.eq.s32.totalorder %s24, 0
    %p238 = por %p236, %p237
    %p239 = scmp.ne.s32.totalorder %s231, %s233
    %p240 = scmp.eq.s32.totalorder %s29, 1
    %p241 = por %p239, %p240
    %p242 = scmp.ne.s32.totalorder %s233, %s234
    %p243 = scmp.eq.s32.totalorder %s29, 0
    %p244 = por %p242, %p243
    %p245 = scmp.ne.s32.totalorder %s233, %s234
    %p246 = scmp.eq.s32.totalorder %s30, 1
    %p247 = por %p245, %p246
    %p249 = scmp.ne.s32.totalorder %s234, %s248
    %p250 = scmp.eq.s32.totalorder %s30, 0
    %p251 = por %p249, %p250
    %s253 = sadd.s32 %s252, 1
    %p256 = scmp.eq.s32.totalorder %s24, 1
    %p257 = scmp.ne.s32.totalorder %s252, %s254
    %p258 = scmp.eq.s32.totalorder %s24, 0
    %p259 = por %p257, %p258
    %p260 = scmp.ne.s32.totalorder %s252, %s254
    %p261 = scmp.eq.s32.totalorder %s29, 1
    %p262 = por %p260, %p261
    %p263 = scmp.ne.s32.totalorder %s254, %s255
    %p264 = scmp.eq.s32.totalorder %s29, 0
    %p265 = por %p263, %p264
    %p266 = scmp.ne.s32.totalorder %s254, %s255
    %p267 = scmp.eq.s32.totalorder %s30, 1
    %p268 = por %p266, %p267
    %p270 = scmp.ne.s32.totalorder %s255, %s269
    %p271 = scmp.eq.s32.totalorder %s30, 0
    %p272 = por %p270, %p271
    %s274 = sadd.s32 %s273, 1
    %p277 = scmp.eq.s32.totalorder %s24, 1
    %p278 = scmp.ne.s32.totalorder %s273, %s275
    %p279 = scmp.eq.s32.totalorder %s24, 0
    %p280 = por %p278, %p279
    %p281 = scmp.ne.s32.totalorder %s273, %s275
    %p282 = scmp.eq.s32.totalorder %s29, 1
    %p283 = por %p281, %p282
    %p284 = scmp.ne.s32.totalorder %s275, %s276
    %p285 = scmp.eq.s32.totalorder %s29, 0
    %p286 = por %p284, %p285
    %p287 = scmp.ne.s32.totalorder %s275, %s276
    %p288 = scmp.eq.s32.totalorder %s30, 1
    %p289 = por %p287, %p288
    %p291 = scmp.ne.s32.totalorder %s276, %s290
    %p292 = scmp.eq.s32.totalorder %s30, 0
    %p293 = por %p291, %p292
    %s295 = sadd.s32 %s294, 1
    %p298 = scmp.eq.s32.totalorder %s24, 1
    %p299 = scmp.ne.s32.totalorder %s294, %s296
    %p300 = scmp.eq.s32.totalorder %s24, 0
    %p301 = por %p299, %p300
    %p302 = scmp.ne.s32.totalorder %s294, %s296
    %p303 = scmp.eq.s32.totalorder %s29, 1
    %p304 = por %p302, %p303
    %p305 = scmp.ne.s32.totalorder %s296, %s297
    %p306 = scmp.eq.s32.totalorder %s29, 0
    %p307 = por %p305, %p306
    %p308 = scmp.ne.s32.totalorder %s296, %s297
    %p309 = scmp.eq.s32.totalorder %s30, 1
    %p310 = por %p308, %p309
    %p312 = scmp.ne.s32.totalorder %s297, %s311
    %p313 = scmp.eq.s32.totalorder %s30, 0
    %p314 = por %p312, %p313
    %s316 = sadd.s32 %s315, 1
    %p319 = scmp.eq.s32.totalorder %s24, 1
    %p320 = scmp.ne.s32.totalorder %s315, %s317
    %p321 = scmp.eq.s32.totalorder %s24, 0
    %p322 = por %p320, %p321
    %p323 = scmp.ne.s32.totalorder %s315, %s317
    %p324 = scmp.eq.s32.totalorder %s29, 1
    %p325 = por %p323, %p324
    %p326 = scmp.ne.s32.totalorder %s317, %s318
    %p327 = scmp.eq.s32.totalorder %s29, 0
    %p328 = por %p326, %p327
    %p329 = scmp.ne.s32.totalorder %s317, %s318
    %p330 = scmp.eq.s32.totalorder %s30, 1
    %p331 = por %p329, %p330
    %p333 = scmp.ne.s32.totalorder %s318, %s332
    %p334 = scmp.eq.s32.totalorder %s30, 0
    %p335 = por %p333, %p334
    %s337 = sadd.s32 %s336, 1
    %p340 = scmp.eq.s32.totalorder %s24, 1
    %p341 = scmp.ne.s32.totalorder %s336, %s338
    %p342 = scmp.eq.s32.totalorder %s24, 0
    %p343 = por %p341, %p342
    %p344 = scmp.ne.s32.totalorder %s336, %s338
    %p345 = scmp.eq.s32.totalorder %s29, 1
    %p346 = por %p344, %p345
    %p347 = scmp.ne.s32.totalorder %s338, %s339
    %p348 = scmp.eq.s32.totalorder %s29, 0
    %p349 = por %p347, %p348
    %p350 = scmp.ne.s32.totalorder %s338, %s339
    %p351 = scmp.eq.s32.totalorder %s30, 1
    %p352 = por %p350, %p351
    %p354 = scmp.ne.s32.totalorder %s339, %s353
    %p355 = scmp.eq.s32.totalorder %s30, 0
    %p356 = por %p354, %p355
    %s358 = sadd.s32 %s357, 1
    %p361 = scmp.eq.s32.totalorder %s24, 1
    %p362 = scmp.ne.s32.totalorder %s357, %s359
    %p363 = scmp.eq.s32.totalorder %s24, 0
    %p364 = por %p362, %p363
    %p365 = scmp.ne.s32.totalorder %s357, %s359
    %p366 = scmp.eq.s32.totalorder %s29, 1
    %p367 = por %p365, %p366
    %p368 = scmp.ne.s32.totalorder %s359, %s360
    %p369 = scmp.eq.s32.totalorder %s29, 0
    %p370 = por %p368, %p369
    %p371 = scmp.ne.s32.totalorder %s359, %s360
    %p372 = scmp.eq.s32.totalorder %s30, 1
    %p373 = por %p371, %p372
    %p375 = scmp.ne.s32.totalorder %s360, %s374
    %p376 = scmp.eq.s32.totalorder %s30, 0
    %p377 = por %p375, %p376
    %s378 = ssub.s32 %s24, %s31
    %p379 = scmp.eq.s32.totalorder %s378, 0
    %s381 = sadd.s32 %s380, 1
    %s382 = scalar_select %p379, %s380, %s381
    %p385 = pneg %p379
    %p386 = scmp.eq.s32.totalorder %s24, 1
    %p387 = por %p385, %p386
    %p388 = scmp.ne.s32.totalorder %s380, %s383
    %p389 = scmp.eq.s32.totalorder %s24, 0
    %p390 = por %p388, %p389
    %p391 = scmp.ne.s32.totalorder %s380, %s383
    %p392 = scmp.eq.s32.totalorder %s29, 1
    %p393 = por %p391, %p392
    %p394 = scmp.ne.s32.totalorder %s383, %s384
    %p395 = scmp.eq.s32.totalorder %s29, 0
    %p396 = por %p394, %p395
    %p397 = scmp.ne.s32.totalorder %s383, %s384
    %p398 = scmp.eq.s32.totalorder %s30, 1
    %p399 = por %p397, %p398
    %p401 = scmp.ne.s32.totalorder %s384, %s400
    %p402 = scmp.eq.s32.totalorder %s30, 0
    %p403 = por %p401, %p402
    %s405 = sadd.s32 %s404, 1
    %p408 = scmp.eq.s32.totalorder %s24, 1
    %p409 = scmp.ne.s32.totalorder %s404, %s406
    %p410 = scmp.eq.s32.totalorder %s24, 0
    %p411 = por %p409, %p410
    %p412 = scmp.ne.s32.totalorder %s404, %s406
    %p413 = scmp.eq.s32.totalorder %s29, 1
    %p414 = por %p412, %p413
    %p415 = scmp.ne.s32.totalorder %s406, %s407
    %p416 = scmp.eq.s32.totalorder %s29, 0
    %p417 = por %p415, %p416
    %p418 = scmp.ne.s32.totalorder %s406, %s407
    %p419 = scmp.eq.s32.totalorder %s30, 1
    %p420 = por %p418, %p419
    %p422 = scmp.ne.s32.totalorder %s407, %s421
    %p423 = scmp.eq.s32.totalorder %s30, 0
    %p424 = por %p422, %p423
    %p425 = scmp.le.s32.totalorder 1, %s24
    %p426 = scmp.lt.s32.totalorder %s24, 3
    %p427 = pnand %p425, %p426
    %p428 = pneg %p427
    // Predicated region
    $region9: #{ppo_lstm3_forward.3} parent=5 // pred_check
      _
    $region10: #{ppo_lstm3_forward.3} parent=5 // pred_check_branch
      %430 = sbr.rel (%p427) target = $region12
    $region11: #{ppo_lstm3_forward.3} parent=5 // pred_region
      %s431 = ssub.s32 %s24, 1
      // Predicated region
      $region13: #{ppo_lstm3_forward.3} parent=11 // pred_check
        %p432 = pneg %p97
      $region14: #{ppo_lstm3_forward.3} parent=11 // pred_check_branch
        %434 = sbr.rel (%p432) target = $region16
      $region15: #{ppo_lstm3_forward.3} parent=11 // pred_region
        _
      $region16: #{ppo_lstm3_forward.3} parent=11 // pred_fallthru
        _
      // Predicated region
      $region17: #{ppo_lstm3_forward.3} parent=11 // pred_check
        %p435 = pneg %p118
      $region18: #{ppo_lstm3_forward.3} parent=11 // pred_check_branch
        %437 = sbr.rel (%p435) target = $region20
      $region19: #{ppo_lstm3_forward.3} parent=11 // pred_region
        _
      $region20: #{ppo_lstm3_forward.3} parent=11 // pred_fallthru
        _
      // Predicated region
      $region21: #{ppo_lstm3_forward.3} parent=11 // pred_check
        %p438 = pneg %p139
      $region22: #{ppo_lstm3_forward.3} parent=11 // pred_check_branch
        %440 = sbr.rel (%p438) target = $region24
      $region23: #{ppo_lstm3_forward.3} parent=11 // pred_region
        _
      $region24: #{ppo_lstm3_forward.3} parent=11 // pred_fallthru
        _
      // Predicated region
      $region25: #{ppo_lstm3_forward.3} parent=11 // pred_check
        %p441 = pneg %p160
      $region26: #{ppo_lstm3_forward.3} parent=11 // pred_check_branch
        %443 = sbr.rel (%p441) target = $region28
      $region27: #{ppo_lstm3_forward.3} parent=11 // pred_region
        _
      $region28: #{ppo_lstm3_forward.3} parent=11 // pred_fallthru
        _
      // Predicated region
      $region29: #{ppo_lstm3_forward.3} parent=11 // pred_check
        %p444 = pneg %p181
      $region30: #{ppo_lstm3_forward.3} parent=11 // pred_check_branch
        %446 = sbr.rel (%p444) target = $region32
      $region31: #{ppo_lstm3_forward.3} parent=11 // pred_region
        _
      $region32: #{ppo_lstm3_forward.3} parent=11 // pred_fallthru
        _
      // Predicated region
      $region33: #{ppo_lstm3_forward.3} parent=11 // pred_check
        %p447 = pneg %p202
      $region34: #{ppo_lstm3_forward.3} parent=11 // pred_check_branch
        %449 = sbr.rel (%p447) target = $region36
      $region35: #{ppo_lstm3_forward.3} parent=11 // pred_region
        _
      $region36: #{ppo_lstm3_forward.3} parent=11 // pred_fallthru
        _
      // Predicated region
      $region37: #{ppo_lstm3_forward.3} parent=11 // pred_check
        %p450 = pneg %p223
      $region38: #{ppo_lstm3_forward.3} parent=11 // pred_check_branch
        %452 = sbr.rel (%p450) target = $region40
      $region39: #{ppo_lstm3_forward.3} parent=11 // pred_region
        _
      $region40: #{ppo_lstm3_forward.3} parent=11 // pred_fallthru
        _
      // Predicated region
      $region41: #{ppo_lstm3_forward.3} parent=11 // pred_check
        %p453 = pneg %p244
      $region42: #{ppo_lstm3_forward.3} parent=11 // pred_check_branch
        %455 = sbr.rel (%p453) target = $region44
      $region43: #{ppo_lstm3_forward.3} parent=11 // pred_region
        _
      $region44: #{ppo_lstm3_forward.3} parent=11 // pred_fallthru
        _
      // Predicated region
      $region45: #{ppo_lstm3_forward.3} parent=11 // pred_check
        %p456 = pneg %p265
      $region46: #{ppo_lstm3_forward.3} parent=11 // pred_check_branch
        %458 = sbr.rel (%p456) target = $region48
      $region47: #{ppo_lstm3_forward.3} parent=11 // pred_region
        _
      $region48: #{ppo_lstm3_forward.3} parent=11 // pred_fallthru
        _
      // Predicated region
      $region49: #{ppo_lstm3_forward.3} parent=11 // pred_check
        %p459 = pneg %p286
      $region50: #{ppo_lstm3_forward.3} parent=11 // pred_check_branch
        %461 = sbr.rel (%p459) target = $region52
      $region51: #{ppo_lstm3_forward.3} parent=11 // pred_region
        _
      $region52: #{ppo_lstm3_forward.3} parent=11 // pred_fallthru
        _
      // Predicated region
      $region53: #{ppo_lstm3_forward.3} parent=11 // pred_check
        %p462 = pneg %p307
      $region54: #{ppo_lstm3_forward.3} parent=11 // pred_check_branch
        %464 = sbr.rel (%p462) target = $region56
      $region55: #{ppo_lstm3_forward.3} parent=11 // pred_region
        _
      $region56: #{ppo_lstm3_forward.3} parent=11 // pred_fallthru
        _
      // Predicated region
      $region57: #{ppo_lstm3_forward.3} parent=11 // pred_check
        %p465 = pneg %p328
      $region58: #{ppo_lstm3_forward.3} parent=11 // pred_check_branch
        %467 = sbr.rel (%p465) target = $region60
      $region59: #{ppo_lstm3_forward.3} parent=11 // pred_region
        _
      $region60: #{ppo_lstm3_forward.3} parent=11 // pred_fallthru
        _
      // Predicated region
      $region61: #{ppo_lstm3_forward.3} parent=11 // pred_check
        %p468 = pneg %p349
      $region62: #{ppo_lstm3_forward.3} parent=11 // pred_check_branch
        %470 = sbr.rel (%p468) target = $region64
      $region63: #{ppo_lstm3_forward.3} parent=11 // pred_region
        _
      $region64: #{ppo_lstm3_forward.3} parent=11 // pred_fallthru
        _
      // Predicated region
      $region65: #{ppo_lstm3_forward.3} parent=11 // pred_check
        %p471 = pneg %p370
      $region66: #{ppo_lstm3_forward.3} parent=11 // pred_check_branch
        %473 = sbr.rel (%p471) target = $region68
      $region67: #{ppo_lstm3_forward.3} parent=11 // pred_region
        _
      $region68: #{ppo_lstm3_forward.3} parent=11 // pred_fallthru
        _
    $region12: #{ppo_lstm3_forward.3} parent=5 // pred_fallthru
      _
    %p474 = scmp.lt.s32.totalorder %s24, 2
    // Predicated region
    $region69: #{ppo_lstm3_forward.3} parent=5 // pred_check
      %p475 = pneg %p474
    $region70: #{ppo_lstm3_forward.3} parent=5 // pred_check_branch
      %477 = sbr.rel (%p475) target = $region72
    $region71: #{ppo_lstm3_forward.3} parent=5 // pred_region
      // Predicated region
      $region73: #{ppo_lstm3_forward.3} parent=71 // pred_check
        %p478 = pneg %p44
      $region74: #{ppo_lstm3_forward.3} parent=71 // pred_check_branch
        %480 = sbr.rel (%p478) target = $region76
      $region75: #{ppo_lstm3_forward.3} parent=71 // pred_region
        %p481 = scmp.lt.s32.totalorder %s24, 1
        %s482 = scalar_select %p481, %s24, 1
        %s483 = smul.addr %s482, 3
        %s484 = smul.addr %s483, 8
        %s485 = scalar_lea.vmem %s0, %s484
      $region76: #{ppo_lstm3_forward.3} parent=71 // pred_fallthru
        _
      // Predicated region
      $region77: #{ppo_lstm3_forward.3} parent=71 // pred_check
        %p486 = pneg %p70
      $region78: #{ppo_lstm3_forward.3} parent=71 // pred_check_branch
        %488 = sbr.rel (%p486) target = $region80
      $region79: #{ppo_lstm3_forward.3} parent=71 // pred_region
        %p489 = scmp.lt.s32.totalorder %s24, 1
        %s490 = scalar_select %p489, %s24, 1
        %s491 = smul.addr %s490, 8
        %s492 = scalar_lea.vmem %s1, %s491
      $region80: #{ppo_lstm3_forward.3} parent=71 // pred_fallthru
        _
    $region72: #{ppo_lstm3_forward.3} parent=5 // pred_fallthru
      _
    %p493 = scmp.le.s32.totalorder 1, %s24
    %p494 = scmp.lt.s32.totalorder %s24, 3
    %p495 = pnand %p493, %p494
    %p496 = pneg %p495
    // Predicated region
    $region81: #{ppo_lstm3_forward.3} parent=5 // pred_check
      _
    $region82: #{ppo_lstm3_forward.3} parent=5 // pred_check_branch
      %498 = sbr.rel (%p495) target = $region84
    $region83: #{ppo_lstm3_forward.3} parent=5 // pred_region
      %s499 = ssub.s32 %s24, 1
      %p500 = scmp.lt.s32.totalorder %s29, 1
      %s501 = scalar_select %p500, %s29, 1
      %s502 = smul.addr %s501, 3
      %s503 = smul.addr %s502, 8
      %s504 = scalar_lea.vmem %s0, %s503
      %p505 = pneg %p50
      %p506 = pneg %p47
      %p507 = scmp.lt.s32.totalorder %s29, 1
      %s508 = scalar_select %p507, %s29, 1
      %s509 = smul.addr %s508, 8
      %s510 = scalar_lea.vmem %s1, %s509
      %p511 = pneg %p76
      %p512 = pneg %p73
      %p513 = pneg %p97
      %p514 = pneg %p94
      %p515 = pneg %p118
      %p516 = pneg %p115
      %p517 = pneg %p139
      %p518 = pneg %p136
      %p519 = pneg %p160
      %p520 = pneg %p157
      %p521 = pneg %p181
      %p522 = pneg %p178
      %p523 = pneg %p202
      %p524 = pneg %p199
      %p525 = pneg %p223
      %p526 = pneg %p220
      %p527 = pneg %p244
      %p528 = pneg %p241
      %p529 = pneg %p265
      %p530 = pneg %p262
      %p531 = pneg %p286
      %p532 = pneg %p283
      %p533 = pneg %p307
      %p534 = pneg %p304
      %p535 = pneg %p328
      %p536 = pneg %p325
      %p537 = pneg %p349
      %p538 = pneg %p346
      %p539 = pneg %p370
      %p540 = pneg %p367
      %p541 = pneg %p396
      %p542 = pneg %p393
      %p543 = scmp.lt.s32.totalorder %s29, 1
      %s544 = scalar_select %p543, %s29, 1
      %s545 = smul.addr %s544, 8
      %s546 = scalar_lea.vmem %s16, %s545
      %p547 = pneg %p417
      %p548 = pneg %p414
      %p549 = scmp.lt.s32.totalorder %s29, 1
      %s550 = scalar_select %p549, %s29, 1
      %s551 = smul.addr %s550, 3
      %s552 = smul.addr %s551, 8
      %s553 = scalar_lea.vmem %s0, %s552
      %p554 = scmp.lt.s32.totalorder %s29, 1
      %s555 = scalar_select %p554, %s29, 1
      %s556 = smul.addr %s555, 8
      %s557 = scalar_lea.vmem %s1, %s556
      %p558 = scmp.lt.s32.totalorder %s29, 1
      %s559 = scalar_select %p558, %s29, 1
      %s560 = smul.addr %s559, 8
      %s561 = scalar_lea.vmem %s16, %s560
      %p562 = scmp.eq.s32.totalorder %s29, 0
      // Predicated region
      $region85: #{ppo_lstm3_forward.3} parent=83 // pred_check
        %p563 = pneg %p562
      $region86: #{ppo_lstm3_forward.3} parent=83 // pred_check_branch
        %565 = sbr.rel (%p563) target = $region88
      $region87: #{ppo_lstm3_forward.3} parent=83 // pred_region
        %v566 = vld [vmem:[%s2] sm:$0x3]
        %v567 = vld [vmem:[%s2 + $0x2] sm:$0x3]
        %vm568 = vcmask 254976
        %569 = vst.msk [vmem:[#allocation2] sm:$0x3] %vm568, %v566
        %570 = vst.msk [vmem:[#allocation2 + $0x2] sm:$0x3] %vm568, %v567
        %v571 = vld [vmem:[%s3] sm:$0x3]
        %v572 = vld [vmem:[%s3 + $0x2] sm:$0x3]
        %573 = vst.msk [vmem:[#allocation3] sm:$0x3] %vm568, %v571
        %574 = vst.msk [vmem:[#allocation3 + $0x2] sm:$0x3] %vm568, %v572
      $region88: #{ppo_lstm3_forward.3} parent=83 // pred_fallthru
        _
      %v575 = vld [vmem:[%s4] sm:$0xff]
      %v576 = vld [vmem:[%s4 + $0x8] sm:$0xff]
      %v577 = vld [vmem:[%s4 + $0x10] sm:$0xff]
      %v578 = vld [vmem:[%s4 + $0x18] sm:$0xff]
      %v579 = vld [vmem:[%s4 + $0x20] sm:$0xff]
      %v580 = vld [vmem:[%s4 + $0x28] sm:$0xff]
      %v581 = vld [vmem:[%s4 + $0x30] sm:$0xff]
      %v582 = vld [vmem:[%s4 + $0x38] sm:$0xff]
      %v583 = vld [vmem:[%s4 + $0x40] sm:$0xff]
      %v584 = vld [vmem:[%s4 + $0x48] sm:$0xff]
      %v585 = vld [vmem:[%s4 + $0x50] sm:$0xff]
      %v586 = vld [vmem:[%s4 + $0x58] sm:$0xff]
      %v587 = vld [vmem:[%s4 + $0x60] sm:$0xff]
      %v588 = vld [vmem:[%s4 + $0x68] sm:$0xff]
      %v589 = vld [vmem:[%s4 + $0x70] sm:$0xff]
      %v590 = vld [vmem:[%s4 + $0x78] sm:$0xff]
      %v591 = vld [vmem:[%s4 + $0x80] sm:$0xff]
      %v592 = vld [vmem:[%s4 + $0x88] sm:$0xff]
      %v593 = vld [vmem:[%s4 + $0x90] sm:$0xff]
      %v594 = vld [vmem:[%s4 + $0x98] sm:$0xff]
      %v595 = vld [vmem:[%s4 + $0xa0] sm:$0xff]
      %v596 = vld [vmem:[%s4 + $0xa8] sm:$0xff]
      %v597 = vld [vmem:[%s4 + $0xb0] sm:$0xff]
      %v598 = vld [vmem:[%s4 + $0xb8] sm:$0xff]
      %v599 = vld [vmem:[%s4 + $0xc0] sm:$0xff]
      %v600 = vld [vmem:[%s4 + $0xc8] sm:$0xff]
      %v601 = vld [vmem:[%s4 + $0xd0] sm:$0xff]
      %v602 = vld [vmem:[%s4 + $0xd8] sm:$0xff]
      %v603 = vld [vmem:[%s4 + $0xe0] sm:$0xff]
      %v604 = vld [vmem:[%s4 + $0xe8] sm:$0xff]
      %v605 = vld [vmem:[%s4 + $0xf0] sm:$0xff]
      %v606 = vld [vmem:[%s4 + $0xf8] sm:$0xff]
      %v607 = vld [vmem:[%s4 + $0x100] sm:$0xff]
      %v608 = vld [vmem:[%s4 + $0x108] sm:$0xff]
      %v609 = vld [vmem:[%s4 + $0x110] sm:$0xff]
      %v610 = vld [vmem:[%s4 + $0x118] sm:$0xff]
      %v611 = vld [vmem:[%s4 + $0x120] sm:$0xff]
      %v612 = vld [vmem:[%s4 + $0x128] sm:$0xff]
      %v613 = vld [vmem:[%s4 + $0x130] sm:$0xff]
      %v614 = vld [vmem:[%s4 + $0x138] sm:$0xff]
      %v615 = vld [vmem:[%s4 + $0x140] sm:$0xf]
      %v616 = vld [vmem:[%s5] sm:$0x1]
      %v617 = vld [vmem:[%s6] sm:$0xff]
      %v618 = vld [vmem:[%s6 + $0x8] sm:$0xff]
      %v619 = vld [vmem:[%s6 + $0x10] sm:$0xff]
      %v620 = vld [vmem:[%s6 + $0x18] sm:$0xff]
      %v621 = vld [vmem:[%s6 + $0x20] sm:$0xff]
      %v622 = vld [vmem:[%s6 + $0x28] sm:$0xff]
      %v623 = vld [vmem:[%s6 + $0x30] sm:$0xff]
      %v624 = vld [vmem:[%s6 + $0x38] sm:$0xff]
      %v625 = vld [vmem:[%s6 + $0x40] sm:$0xff]
      %v626 = vld [vmem:[%s7] sm:$0x1]
      %v627 = vld [vmem:[%s8] sm:$0xff]
      %v628 = vld [vmem:[%s8 + $0x8] sm:$0xff]
      %v629 = vld [vmem:[%s8 + $0x10] sm:$0xff]
      %v630 = vld [vmem:[%s8 + $0x18] sm:$0xff]
      %v631 = vld [vmem:[%s8 + $0x20] sm:$0xff]
      %v632 = vld [vmem:[%s8 + $0x28] sm:$0xff]
      %v633 = vld [vmem:[%s8 + $0x30] sm:$0xff]
      %v634 = vld [vmem:[%s8 + $0x38] sm:$0xff]
      %v635 = vld [vmem:[%s9] sm:$0x1]
      %v636 = vld [vmem:[%s553] sm:$0xff]
      %v637 = vld [vmem:[%s553 + $0x8] sm:$0xff]
      %v638 = vld [vmem:[%s553 + $0x10] sm:$0xff]
      %v640 = vlaneseq
      %v641 = vshrl.u32 %v640, 7
      %v642 = vsub.s32 0, %v641
      %v643 = vrot.slane %v616, %v642
      %vm645 = vcmask 556032
      %v647 = vsel %vm645, %v638, 0
      %vm649 = vcmask 1043456
      %v651 = vsel %vm649, %v615, 0
      %653 = vmatprep.subr.mxu0 0.0
      %654 = vmatpush1.msra.mxu0 %v590
      %655 = vmatprep.subr.mxu0 0.0
      %656 = vmatpush1.msra.mxu0 %v589
      %657 = vmatprep.subr.mxu0 0.0
      %658 = vmatpush1.msra.mxu0 %v588
      %659 = vmatprep.subr.mxu0 0.0
      %660 = vmatpush1.msra.mxu0 %v587
      %661 = vmatprep.subr.mxu0 0.0
      %662 = vmatpush1.msra.mxu0 %v586
      %663 = vmatprep.subr.mxu0 0.0
      %664 = vmatpush1.msra.mxu0 %v585
      %665 = vmatprep.subr.mxu0 0.0
      %666 = vmatpush1.msra.mxu0 %v584
      %667 = vmatprep.subr.mxu0 0.0
      %668 = vmatpush1.msra.mxu0 %v583
      %669 = vmatprep.subr.mxu0 0.0
      %670 = vmatpush1.msra.mxu0 %v582
      %671 = vmatprep.subr.mxu0 0.0
      %672 = vmatpush1.msra.mxu0 %v581
      %673 = vmatprep.subr.mxu0 0.0
      %674 = vmatpush1.msra.mxu0 %v580
      %675 = vmatprep.subr.mxu0 0.0
      %676 = vmatpush1.msra.mxu0 %v579
      %677 = vmatprep.subr.mxu0 0.0
      %678 = vmatpush1.msra.mxu0 %v578
      %679 = vmatprep.subr.mxu0 0.0
      %680 = vmatpush1.msra.mxu0 %v577
      %681 = vmatprep.subr.mxu0 0.0
      %682 = vmatpush1.msra.mxu0 %v576
      %683 = vmatprep.subr.mxu0 0.0
      %684 = vmatpush1.msra.mxu0 %v575
      %685 = vmatprep.subr.mxu0 0.0
      %686 = vmatpush2.msra.mxu0 %v606
      %687 = vmatprep.subr.mxu0 0.0
      %688 = vmatpush2.msra.mxu0 %v605
      %689 = vmatprep.subr.mxu0 0.0
      %690 = vmatpush2.msra.mxu0 %v604
      %691 = vmatprep.subr.mxu0 0.0
      %692 = vmatpush2.msra.mxu0 %v603
      %693 = vmatprep.subr.mxu0 0.0
      %694 = vmatpush2.msra.mxu0 %v602
      %695 = vmatprep.subr.mxu0 0.0
      %696 = vmatpush2.msra.mxu0 %v601
      %697 = vmatprep.subr.mxu0 0.0
      %698 = vmatpush2.msra.mxu0 %v600
      %699 = vmatprep.subr.mxu0 0.0
      %700 = vmatpush2.msra.mxu0 %v599
      %701 = vmatprep.subr.mxu0 0.0
      %702 = vmatpush2.msra.mxu0 %v598
      %703 = vmatprep.subr.mxu0 0.0
      %704 = vmatpush2.msra.mxu0 %v597
      %705 = vmatprep.subr.mxu0 0.0
      %706 = vmatpush2.msra.mxu0 %v596
      %707 = vmatprep.subr.mxu0 0.0
      %708 = vmatpush2.msra.mxu0 %v595
      %709 = vmatprep.subr.mxu0 0.0
      %710 = vmatpush2.msra.mxu0 %v594
      %711 = vmatprep.subr.mxu0 0.0
      %712 = vmatpush2.msra.mxu0 %v593
      %713 = vmatprep.subr.mxu0 0.0
      %714 = vmatpush2.msra.mxu0 %v592
      %715 = vmatprep.subr.mxu0 0.0
      %716 = vmatpush2.msra.mxu0 %v591
      %717 = vmatprep.mubr.f32.mxu0 %v637
      %718 = vmatmul.mubr.f32.gmra.mxu0 %v636
      %v719 = vpop.f32.mrf.mxu0
      %v720 = vadd.f32 %v643, %v719
      %v721 = vpop.f32.mrf.mxu0
      %722 = vdwg.mxu0
      %723 = vmatprep.subr.mxu0 0.0
      %724 = vmatpush1.msra.mxu0 0.0
      %725 = vmatprep.subr.mxu0 0.0
      %726 = vmatpush1.msra.mxu0 0.0
      %727 = vmatprep.subr.mxu0 0.0
      %728 = vmatpush1.msra.mxu0 0.0
      %729 = vmatprep.subr.mxu0 0.0
      %730 = vmatpush1.msra.mxu0 0.0
      %731 = vmatprep.subr.mxu0 0.0
      %732 = vmatpush1.msra.mxu0 0.0
      %733 = vmatprep.subr.mxu0 0.0
      %734 = vmatpush1.msra.mxu0 0.0
      %735 = vmatprep.subr.mxu0 0.0
      %736 = vmatpush1.msra.mxu0 0.0
      %737 = vmatprep.subr.mxu0 0.0
      %738 = vmatpush1.msra.mxu0 %v651
      %739 = vmatprep.subr.mxu0 0.0
      %740 = vmatpush1.msra.mxu0 %v614
      %741 = vmatprep.subr.mxu0 0.0
      %742 = vmatpush1.msra.mxu0 %v613
      %743 = vmatprep.subr.mxu0 0.0
      %744 = vmatpush1.msra.mxu0 %v612
      %745 = vmatprep.subr.mxu0 0.0
      %746 = vmatpush1.msra.mxu0 %v611
      %747 = vmatprep.subr.mxu0 0.0
      %748 = vmatpush1.msra.mxu0 %v610
      %749 = vmatprep.subr.mxu0 0.0
      %750 = vmatpush1.msra.mxu0 %v609
      %751 = vmatprep.subr.mxu0 0.0
      %752 = vmatpush1.msra.mxu0 %v608
      %753 = vmatprep.subr.mxu0 0.0
      %754 = vmatpush1.msra.mxu0 %v607
      %755 = vmatprep.subr.mxu0 0.0
      %756 = vmatpush2.msra.mxu0 0.0
      %757 = vmatprep.subr.mxu0 0.0
      %758 = vmatpush2.msra.mxu0 0.0
      %759 = vmatprep.subr.mxu0 0.0
      %760 = vmatpush2.msra.mxu0 0.0
      %761 = vmatprep.subr.mxu0 0.0
      %762 = vmatpush2.msra.mxu0 0.0
      %763 = vmatprep.subr.mxu0 0.0
      %764 = vmatpush2.msra.mxu0 0.0
      %765 = vmatprep.subr.mxu0 0.0
      %766 = vmatpush2.msra.mxu0 0.0
      %767 = vmatprep.subr.mxu0 0.0
      %768 = vmatpush2.msra.mxu0 0.0
      %769 = vmatprep.subr.mxu0 0.0
      %770 = vmatpush2.msra.mxu0 0.0
      %771 = vmatprep.subr.mxu0 0.0
      %772 = vmatpush2.msra.mxu0 0.0
      %773 = vmatprep.subr.mxu0 0.0
      %774 = vmatpush2.msra.mxu0 0.0
      %775 = vmatprep.subr.mxu0 0.0
      %776 = vmatpush2.msra.mxu0 0.0
      %777 = vmatprep.subr.mxu0 0.0
      %778 = vmatpush2.msra.mxu0 0.0
      %779 = vmatprep.subr.mxu0 0.0
      %780 = vmatpush2.msra.mxu0 0.0
      %781 = vmatprep.subr.mxu0 0.0
      %782 = vmatpush2.msra.mxu0 0.0
      %783 = vmatprep.subr.mxu0 0.0
      %784 = vmatpush2.msra.mxu0 0.0
      %785 = vmatprep.subr.mxu0 0.0
      %786 = vmatpush2.msra.mxu0 0.0
      %787 = vmatprep.mubr.f32.mxu0 0.0
      %788 = vmatmul.mubr.f32.gmra.mxu0 %v647
      %v789 = vpop.f32.mrf.mxu0
      %v790 = vadd.f32 %v720, %v789
      %v791 = vpop.f32.mrf.mxu0
      %792 = vdwg.mxu0
      %v793 = vmax.f32 %v790, 0.0
      %v795 = vlaneseq
      %v796 = vshrl.u32 %v795, 7
      %v797 = vsub.s32 0, %v796
      %v798 = vrot.slane %v626, %v797
      %vm800 = vcmask 588800
      %v802 = vsel %vm800, %v793, 0
      %804 = vmatprep.subr.mxu0 0.0
      %805 = vmatpush1.msra.mxu0 0.0
      %806 = vmatprep.subr.mxu0 0.0
      %807 = vmatpush1.msra.mxu0 0.0
      %808 = vmatprep.subr.mxu0 0.0
      %809 = vmatpush1.msra.mxu0 0.0
      %810 = vmatprep.subr.mxu0 0.0
      %811 = vmatpush1.msra.mxu0 0.0
      %812 = vmatprep.subr.mxu0 0.0
      %813 = vmatpush1.msra.mxu0 0.0
      %814 = vmatprep.subr.mxu0 0.0
      %815 = vmatpush1.msra.mxu0 0.0
      %816 = vmatprep.subr.mxu0 0.0
      %817 = vmatpush1.msra.mxu0 0.0
      %818 = vmatprep.subr.mxu0 0.0
      %819 = vmatpush1.msra.mxu0 %v625
      %820 = vmatprep.subr.mxu0 0.0
      %821 = vmatpush1.msra.mxu0 %v624
      %822 = vmatprep.subr.mxu0 0.0
      %823 = vmatpush1.msra.mxu0 %v623
      %824 = vmatprep.subr.mxu0 0.0
      %825 = vmatpush1.msra.mxu0 %v622
      %826 = vmatprep.subr.mxu0 0.0
      %827 = vmatpush1.msra.mxu0 %v621
      %828 = vmatprep.subr.mxu0 0.0
      %829 = vmatpush1.msra.mxu0 %v620
      %830 = vmatprep.subr.mxu0 0.0
      %831 = vmatpush1.msra.mxu0 %v619
      %832 = vmatprep.subr.mxu0 0.0
      %833 = vmatpush1.msra.mxu0 %v618
      %834 = vmatprep.subr.mxu0 0.0
      %835 = vmatpush1.msra.mxu0 %v617
      %836 = vmatprep.subr.mxu0 0.0
      %837 = vmatpush2.msra.mxu0 0.0
      %838 = vmatprep.subr.mxu0 0.0
      %839 = vmatpush2.msra.mxu0 0.0
      %840 = vmatprep.subr.mxu0 0.0
      %841 = vmatpush2.msra.mxu0 0.0
      %842 = vmatprep.subr.mxu0 0.0
      %843 = vmatpush2.msra.mxu0 0.0
      %844 = vmatprep.subr.mxu0 0.0
      %845 = vmatpush2.msra.mxu0 0.0
      %846 = vmatprep.subr.mxu0 0.0
      %847 = vmatpush2.msra.mxu0 0.0
      %848 = vmatprep.subr.mxu0 0.0
      %849 = vmatpush2.msra.mxu0 0.0
      %850 = vmatprep.subr.mxu0 0.0
      %851 = vmatpush2.msra.mxu0 0.0
      %852 = vmatprep.subr.mxu0 0.0
      %853 = vmatpush2.msra.mxu0 0.0
      %854 = vmatprep.subr.mxu0 0.0
      %855 = vmatpush2.msra.mxu0 0.0
      %856 = vmatprep.subr.mxu0 0.0
      %857 = vmatpush2.msra.mxu0 0.0
      %858 = vmatprep.subr.mxu0 0.0
      %859 = vmatpush2.msra.mxu0 0.0
      %860 = vmatprep.subr.mxu0 0.0
      %861 = vmatpush2.msra.mxu0 0.0
      %862 = vmatprep.subr.mxu0 0.0
      %863 = vmatpush2.msra.mxu0 0.0
      %864 = vmatprep.subr.mxu0 0.0
      %865 = vmatpush2.msra.mxu0 0.0
      %866 = vmatprep.subr.mxu0 0.0
      %867 = vmatpush2.msra.mxu0 0.0
      %868 = vmatprep.mubr.f32.mxu0 0.0
      %869 = vmatmul.mubr.f32.gmra.mxu0 %v802
      %v870 = vpop.f32.mrf.mxu0
      %v871 = vadd.f32 %v798, %v870
      %v872 = vpop.f32.mrf.mxu0
      %873 = vdwg.mxu0
      %v874 = vmax.f32 %v871, 0.0
      %v875 = vld [vmem:[%s557] sm:$0xff]
      %v876 = vld [vmem:[%s11] sm:$0xff]
      %v877 = vld [vmem:[%s11 + $0x8] sm:$0xff]
      %v878 = vld [vmem:[%s11 + $0x10] sm:$0xff]
      %v879 = vld [vmem:[%s11 + $0x18] sm:$0xff]
      %v880 = vld [vmem:[%s10] sm:$0x3]
      %v881 = vld [vmem:[%s12] sm:$0x1]
      %v883 = vlaneseq
      %v884 = vshrl.u32 %v883, 7
      %v885 = vsub.s32 0, %v884
      %v886 = vrot.slane %v881, %v885
      %vm888 = vcmask 15360
      %v890 = vsel %vm888, %v875, 0
      %vm892 = vcmask 1041408
      %v894 = vsel %vm892, %v880, 0
      %896 = vmatprep.subr.mxu0 0.0
      %897 = vmatpush1.msra.mxu0 0.0
      %898 = vmatprep.subr.mxu0 0.0
      %899 = vmatpush1.msra.mxu0 0.0
      %900 = vmatprep.subr.mxu0 0.0
      %901 = vmatpush1.msra.mxu0 0.0
      %902 = vmatprep.subr.mxu0 0.0
      %903 = vmatpush1.msra.mxu0 0.0
      %904 = vmatprep.subr.mxu0 0.0
      %905 = vmatpush1.msra.mxu0 0.0
      %906 = vmatprep.subr.mxu0 0.0
      %907 = vmatpush1.msra.mxu0 0.0
      %908 = vmatprep.subr.mxu0 0.0
      %909 = vmatpush1.msra.mxu0 0.0
      %910 = vmatprep.subr.mxu0 0.0
      %911 = vmatpush1.msra.mxu0 0.0
      %912 = vmatprep.subr.mxu0 0.0
      %913 = vmatpush1.msra.mxu0 0.0
      %914 = vmatprep.subr.mxu0 0.0
      %915 = vmatpush1.msra.mxu0 0.0
      %916 = vmatprep.subr.mxu0 0.0
      %917 = vmatpush1.msra.mxu0 0.0
      %918 = vmatprep.subr.mxu0 0.0
      %919 = vmatpush1.msra.mxu0 0.0
      %920 = vmatprep.subr.mxu0 0.0
      %921 = vmatpush1.msra.mxu0 0.0
      %922 = vmatprep.subr.mxu0 0.0
      %923 = vmatpush1.msra.mxu0 0.0
      %924 = vmatprep.subr.mxu0 0.0
      %925 = vmatpush1.msra.mxu0 0.0
      %926 = vmatprep.subr.mxu0 0.0
      %927 = vmatpush1.msra.mxu0 %v894
      %928 = vmatprep.subr.mxu0 0.0
      %929 = vmatpush2.msra.mxu0 0.0
      %930 = vmatprep.subr.mxu0 0.0
      %931 = vmatpush2.msra.mxu0 0.0
      %932 = vmatprep.subr.mxu0 0.0
      %933 = vmatpush2.msra.mxu0 0.0
      %934 = vmatprep.subr.mxu0 0.0
      %935 = vmatpush2.msra.mxu0 0.0
      %936 = vmatprep.subr.mxu0 0.0
      %937 = vmatpush2.msra.mxu0 0.0
      %938 = vmatprep.subr.mxu0 0.0
      %939 = vmatpush2.msra.mxu0 0.0
      %940 = vmatprep.subr.mxu0 0.0
      %941 = vmatpush2.msra.mxu0 0.0
      %942 = vmatprep.subr.mxu0 0.0
      %943 = vmatpush2.msra.mxu0 0.0
      %944 = vmatprep.subr.mxu0 0.0
      %945 = vmatpush2.msra.mxu0 0.0
      %946 = vmatprep.subr.mxu0 0.0
      %947 = vmatpush2.msra.mxu0 0.0
      %948 = vmatprep.subr.mxu0 0.0
      %949 = vmatpush2.msra.mxu0 0.0
      %950 = vmatprep.subr.mxu0 0.0
      %951 = vmatpush2.msra.mxu0 0.0
      %952 = vmatprep.subr.mxu0 0.0
      %953 = vmatpush2.msra.mxu0 0.0
      %954 = vmatprep.subr.mxu0 0.0
      %955 = vmatpush2.msra.mxu0 0.0
      %956 = vmatprep.subr.mxu0 0.0
      %957 = vmatpush2.msra.mxu0 0.0
      %958 = vmatprep.subr.mxu0 0.0
      %959 = vmatpush2.msra.mxu0 0.0
      %960 = vmatprep.mubr.f32.mxu0 0.0
      %961 = vmatmul.mubr.f32.gmra.mxu0 %v890
      %v962 = vpop.f32.mrf.mxu0
      %v963 = vadd.f32 %v886, %v962
      %v964 = vpop.f32.mrf.mxu0
      %965 = vdwg.mxu0
      %v966 = vld [vmem:[#allocation2] sm:$0x3]
      %v967 = vld [vmem:[#allocation3] sm:$0x3]
      %vm968 = vcmask 261120
      %v970 = vsel %vm968, %v966, 0
      %972 = vmatprep.subr.mxu0 0.0
      %973 = vmatpush1.msra.mxu0 0.0
      %974 = vmatprep.subr.mxu0 0.0
      %975 = vmatpush1.msra.mxu0 0.0
      %976 = vmatprep.subr.mxu0 0.0
      %977 = vmatpush1.msra.mxu0 0.0
      %978 = vmatprep.subr.mxu0 0.0
      %979 = vmatpush1.msra.mxu0 0.0
      %980 = vmatprep.subr.mxu0 0.0
      %981 = vmatpush1.msra.mxu0 0.0
      %982 = vmatprep.subr.mxu0 0.0
      %983 = vmatpush1.msra.mxu0 0.0
      %984 = vmatprep.subr.mxu0 0.0
      %985 = vmatpush1.msra.mxu0 0.0
      %986 = vmatprep.subr.mxu0 0.0
      %987 = vmatpush1.msra.mxu0 0.0
      %988 = vmatprep.subr.mxu0 0.0
      %989 = vmatpush1.msra.mxu0 0.0
      %990 = vmatprep.subr.mxu0 0.0
      %991 = vmatpush1.msra.mxu0 0.0
      %992 = vmatprep.subr.mxu0 0.0
      %993 = vmatpush1.msra.mxu0 0.0
      %994 = vmatprep.subr.mxu0 0.0
      %995 = vmatpush1.msra.mxu0 0.0
      %996 = vmatprep.subr.mxu0 0.0
      %997 = vmatpush1.msra.mxu0 %v879
      %998 = vmatprep.subr.mxu0 0.0
      %999 = vmatpush1.msra.mxu0 %v878
      %1000 = vmatprep.subr.mxu0 0.0
      %1001 = vmatpush1.msra.mxu0 %v877
      %1002 = vmatprep.subr.mxu0 0.0
      %1003 = vmatpush1.msra.mxu0 %v876
      %1004 = vmatprep.subr.mxu0 0.0
      %1005 = vmatpush2.msra.mxu0 0.0
      %1006 = vmatprep.subr.mxu0 0.0
      %1007 = vmatpush2.msra.mxu0 0.0
      %1008 = vmatprep.subr.mxu0 0.0
      %1009 = vmatpush2.msra.mxu0 0.0
      %1010 = vmatprep.subr.mxu0 0.0
      %1011 = vmatpush2.msra.mxu0 0.0
      %1012 = vmatprep.subr.mxu0 0.0
      %1013 = vmatpush2.msra.mxu0 0.0
      %1014 = vmatprep.subr.mxu0 0.0
      %1015 = vmatpush2.msra.mxu0 0.0
      %1016 = vmatprep.subr.mxu0 0.0
      %1017 = vmatpush2.msra.mxu0 0.0
      %1018 = vmatprep.subr.mxu0 0.0
      %1019 = vmatpush2.msra.mxu0 0.0
      %1020 = vmatprep.subr.mxu0 0.0
      %1021 = vmatpush2.msra.mxu0 0.0
      %1022 = vmatprep.subr.mxu0 0.0
      %1023 = vmatpush2.msra.mxu0 0.0
      %1024 = vmatprep.subr.mxu0 0.0
      %1025 = vmatpush2.msra.mxu0 0.0
      %1026 = vmatprep.subr.mxu0 0.0
      %1027 = vmatpush2.msra.mxu0 0.0
      %1028 = vmatprep.subr.mxu0 0.0
      %1029 = vmatpush2.msra.mxu0 0.0
      %1030 = vmatprep.subr.mxu0 0.0
      %1031 = vmatpush2.msra.mxu0 0.0
      %1032 = vmatprep.subr.mxu0 0.0
      %1033 = vmatpush2.msra.mxu0 0.0
      %1034 = vmatprep.subr.mxu0 0.0
      %1035 = vmatpush2.msra.mxu0 0.0
      %1036 = vmatprep.mubr.f32.mxu0 0.0
      %1037 = vmatmul.mubr.f32.gmra.mxu0 %v970
      %v1038 = vpop.f32.mrf.mxu0
      %v1039 = vadd.f32 0.0, %v1038
      %v1040 = vpop.f32.mrf.mxu0
      %1041 = vdwg.mxu0
      %v1042 = vadd.f32 %v963, %v1039
      %v1043 = vxor.u32 %v1042, 2147483648
      %v1044 = vmul.f32 %v1043, 1.442695
      %v1045 = vpow.pop %v1044
      %v1046 = vadd.f32 %v1045, 1.0
      %v1047 = vrcp.pop %v1046
      %v1048 = vmul.f32 1.0, %v1047
      %v1049 = vtanh.pop %v1042
      %1051 = vrot.lane.b32.xlu0 %v967, 32
      %v1052 = vpop.permute.xlu0 %1051
      %v1054 = vmul.f32 %v1048, %v1052
      %1056 = vrot.lane.b32.xlu0 %v1049, 64
      %v1057 = vpop.permute.xlu0 %1056
      %v1059 = vmul.f32 %v1048, %v1057
      %1061 = vrot.lane.b32.xlu0 %v1059, 32
      %v1062 = vpop.permute.xlu0 %1061
      %v1064 = vadd.f32 %v1054, %v1062
      %v1065 = vtanh.pop %v1064
      %1067 = vrot.lane.b32.xlu0 %v1065, 64
      %v1068 = vpop.permute.xlu0 %1067
      %v1070 = vmul.f32 %v1048, %v1068
      %1072 = vrot.lane.b32.xlu0 %v1070, 32
      %v1073 = vpop.permute.xlu0 %1072
      %v1074 = vsel %vm968, %v1073, 0
      %1076 = vmatprep.subr.mxu0 0.0
      %1077 = vmatpush1.msra.mxu0 0.0
      %1078 = vmatprep.subr.mxu0 0.0
      %1079 = vmatpush1.msra.mxu0 0.0
      %1080 = vmatprep.subr.mxu0 0.0
      %1081 = vmatpush1.msra.mxu0 0.0
      %1082 = vmatprep.subr.mxu0 0.0
      %1083 = vmatpush1.msra.mxu0 0.0
      %1084 = vmatprep.subr.mxu0 0.0
      %1085 = vmatpush1.msra.mxu0 0.0
      %1086 = vmatprep.subr.mxu0 0.0
      %1087 = vmatpush1.msra.mxu0 0.0
      %1088 = vmatprep.subr.mxu0 0.0
      %1089 = vmatpush1.msra.mxu0 0.0
      %1090 = vmatprep.subr.mxu0 0.0
      %1091 = vmatpush1.msra.mxu0 0.0
      %1092 = vmatprep.subr.mxu0 0.0
      %1093 = vmatpush1.msra.mxu0 0.0
      %1094 = vmatprep.subr.mxu0 0.0
      %1095 = vmatpush1.msra.mxu0 0.0
      %1096 = vmatprep.subr.mxu0 0.0
      %1097 = vmatpush1.msra.mxu0 0.0
      %1098 = vmatprep.subr.mxu0 0.0
      %1099 = vmatpush1.msra.mxu0 0.0
      %1100 = vmatprep.subr.mxu0 0.0
      %1101 = vmatpush1.msra.mxu0 %v879
      %1102 = vmatprep.subr.mxu0 0.0
      %1103 = vmatpush1.msra.mxu0 %v878
      %1104 = vmatprep.subr.mxu0 0.0
      %1105 = vmatpush1.msra.mxu0 %v877
      %1106 = vmatprep.subr.mxu0 0.0
      %1107 = vmatpush1.msra.mxu0 %v876
      %1108 = vmatprep.subr.mxu0 0.0
      %1109 = vmatpush2.msra.mxu0 0.0
      %1110 = vmatprep.subr.mxu0 0.0
      %1111 = vmatpush2.msra.mxu0 0.0
      %1112 = vmatprep.subr.mxu0 0.0
      %1113 = vmatpush2.msra.mxu0 0.0
      %1114 = vmatprep.subr.mxu0 0.0
      %1115 = vmatpush2.msra.mxu0 0.0
      %1116 = vmatprep.subr.mxu0 0.0
      %1117 = vmatpush2.msra.mxu0 0.0
      %1118 = vmatprep.subr.mxu0 0.0
      %1119 = vmatpush2.msra.mxu0 0.0
      %1120 = vmatprep.subr.mxu0 0.0
      %1121 = vmatpush2.msra.mxu0 0.0
      %1122 = vmatprep.subr.mxu0 0.0
      %1123 = vmatpush2.msra.mxu0 0.0
      %1124 = vmatprep.subr.mxu0 0.0
      %1125 = vmatpush2.msra.mxu0 0.0
      %1126 = vmatprep.subr.mxu0 0.0
      %1127 = vmatpush2.msra.mxu0 0.0
      %1128 = vmatprep.subr.mxu0 0.0
      %1129 = vmatpush2.msra.mxu0 0.0
      %1130 = vmatprep.subr.mxu0 0.0
      %1131 = vmatpush2.msra.mxu0 0.0
      %1132 = vmatprep.subr.mxu0 0.0
      %1133 = vmatpush2.msra.mxu0 0.0
      %1134 = vmatprep.subr.mxu0 0.0
      %1135 = vmatpush2.msra.mxu0 0.0
      %1136 = vmatprep.subr.mxu0 0.0
      %1137 = vmatpush2.msra.mxu0 0.0
      %1138 = vmatprep.subr.mxu0 0.0
      %1139 = vmatpush2.msra.mxu0 0.0
      %1140 = vmatprep.mubr.f32.mxu0 0.0
      %1141 = vmatmul.mubr.f32.gmra.mxu0 %v1074
      %v1142 = vpop.f32.mrf.mxu0
      %v1143 = vadd.f32 0.0, %v1142
      %v1144 = vpop.f32.mrf.mxu0
      %1145 = vdwg.mxu0
      %v1147 = vrot.slane %v1143, 6
      %v1149 = vadd.f32 %v963, %v1147
      %v1150 = vxor.u32 %v1149, 2147483648
      %v1151 = vmul.f32 %v1150, 1.442695
      %v1152 = vpow.pop %v1151
      %v1153 = vadd.f32 %v1152, 1.0
      %v1154 = vrcp.pop %v1153
      %v1155 = vmul.f32 1.0, %v1154
      %v1156 = vtanh.pop %v1149
      %v1158 = vrot.slane %v1064, 6
      %v1160 = vmul.f32 %v1155, %v1158
      %1162 = vrot.lane.b32.xlu0 %v1156, 64
      %v1163 = vpop.permute.xlu0 %1162
      %v1165 = vmul.f32 %v1155, %v1163
      %1167 = vrot.lane.b32.xlu0 %v1165, 32
      %v1168 = vpop.permute.xlu0 %1167
      %v1170 = vadd.f32 %v1160, %v1168
      %v1171 = vtanh.pop %v1170
      %1173 = vrot.lane.b32.xlu0 %v1171, 64
      %v1174 = vpop.permute.xlu0 %1173
      %v1176 = vmul.f32 %v1155, %v1174
      %v1178 = vrot.slane %v1176, 2
      %1179 = vrot.lane.b32.xlu0 %v1178, 32
      %v1180 = vpop.permute.xlu0 %1179
      %v1181 = vsel %vm968, %v1180, 0
      %1183 = vmatprep.subr.mxu0 0.0
      %1184 = vmatpush1.msra.mxu0 0.0
      %1185 = vmatprep.subr.mxu0 0.0
      %1186 = vmatpush1.msra.mxu0 0.0
      %1187 = vmatprep.subr.mxu0 0.0
      %1188 = vmatpush1.msra.mxu0 0.0
      %1189 = vmatprep.subr.mxu0 0.0
      %1190 = vmatpush1.msra.mxu0 0.0
      %1191 = vmatprep.subr.mxu0 0.0
      %1192 = vmatpush1.msra.mxu0 0.0
      %1193 = vmatprep.subr.mxu0 0.0
      %1194 = vmatpush1.msra.mxu0 0.0
      %1195 = vmatprep.subr.mxu0 0.0
      %1196 = vmatpush1.msra.mxu0 0.0
      %1197 = vmatprep.subr.mxu0 0.0
      %1198 = vmatpush1.msra.mxu0 0.0
      %1199 = vmatprep.subr.mxu0 0.0
      %1200 = vmatpush1.msra.mxu0 0.0
      %1201 = vmatprep.subr.mxu0 0.0
      %1202 = vmatpush1.msra.mxu0 0.0
      %1203 = vmatprep.subr.mxu0 0.0
      %1204 = vmatpush1.msra.mxu0 0.0
      %1205 = vmatprep.subr.mxu0 0.0
      %1206 = vmatpush1.msra.mxu0 0.0
      %1207 = vmatprep.subr.mxu0 0.0
      %1208 = vmatpush1.msra.mxu0 %v879
      %1209 = vmatprep.subr.mxu0 0.0
      %1210 = vmatpush1.msra.mxu0 %v878
      %1211 = vmatprep.subr.mxu0 0.0
      %1212 = vmatpush1.msra.mxu0 %v877
      %1213 = vmatprep.subr.mxu0 0.0
      %1214 = vmatpush1.msra.mxu0 %v876
      %1215 = vmatprep.subr.mxu0 0.0
      %1216 = vmatpush2.msra.mxu0 0.0
      %1217 = vmatprep.subr.mxu0 0.0
      %1218 = vmatpush2.msra.mxu0 0.0
      %1219 = vmatprep.subr.mxu0 0.0
      %1220 = vmatpush2.msra.mxu0 0.0
      %1221 = vmatprep.subr.mxu0 0.0
      %1222 = vmatpush2.msra.mxu0 0.0
      %1223 = vmatprep.subr.mxu0 0.0
      %1224 = vmatpush2.msra.mxu0 0.0
      %1225 = vmatprep.subr.mxu0 0.0
      %1226 = vmatpush2.msra.mxu0 0.0
      %1227 = vmatprep.subr.mxu0 0.0
      %1228 = vmatpush2.msra.mxu0 0.0
      %1229 = vmatprep.subr.mxu0 0.0
      %1230 = vmatpush2.msra.mxu0 0.0
      %1231 = vmatprep.subr.mxu0 0.0
      %1232 = vmatpush2.msra.mxu0 0.0
      %1233 = vmatprep.subr.mxu0 0.0
      %1234 = vmatpush2.msra.mxu0 0.0
      %1235 = vmatprep.subr.mxu0 0.0
      %1236 = vmatpush2.msra.mxu0 0.0
      %1237 = vmatprep.subr.mxu0 0.0
      %1238 = vmatpush2.msra.mxu0 0.0
      %1239 = vmatprep.subr.mxu0 0.0
      %1240 = vmatpush2.msra.mxu0 0.0
      %1241 = vmatprep.subr.mxu0 0.0
      %1242 = vmatpush2.msra.mxu0 0.0
      %1243 = vmatprep.subr.mxu0 0.0
      %1244 = vmatpush2.msra.mxu0 0.0
      %1245 = vmatprep.subr.mxu0 0.0
      %1246 = vmatpush2.msra.mxu0 0.0
      %1247 = vmatprep.mubr.f32.mxu0 0.0
      %1248 = vmatmul.mubr.f32.gmra.mxu0 %v1181
      %v1249 = vpop.f32.mrf.mxu0
      %v1250 = vadd.f32 0.0, %v1249
      %v1251 = vpop.f32.mrf.mxu0
      %1252 = vdwg.mxu0
      %v1254 = vrot.slane %v1250, 4
      %v1256 = vadd.f32 %v963, %v1254
      %v1257 = vxor.u32 %v1256, 2147483648
      %v1258 = vmul.f32 %v1257, 1.442695
      %v1259 = vpow.pop %v1258
      %v1260 = vadd.f32 %v1259, 1.0
      %v1261 = vrcp.pop %v1260
      %v1262 = vmul.f32 1.0, %v1261
      %v1263 = vtanh.pop %v1256
      %v1265 = vrot.slane %v1170, 6
      %v1267 = vmul.f32 %v1262, %v1265
      %1269 = vrot.lane.b32.xlu0 %v1263, 64
      %v1270 = vpop.permute.xlu0 %1269
      %v1272 = vmul.f32 %v1262, %v1270
      %1274 = vrot.lane.b32.xlu0 %v1272, 32
      %v1275 = vpop.permute.xlu0 %1274
      %v1277 = vadd.f32 %v1267, %v1275
      %v1278 = vtanh.pop %v1277
      %1280 = vrot.lane.b32.xlu0 %v1278, 64
      %v1281 = vpop.permute.xlu0 %1280
      %v1283 = vmul.f32 %v1262, %v1281
      %v1285 = vrot.slane %v1283, 4
      %1286 = vrot.lane.b32.xlu0 %v1285, 32
      %v1287 = vpop.permute.xlu0 %1286
      %v1288 = vsel %vm968, %v1287, 0
      %1290 = vmatprep.subr.mxu0 0.0
      %1291 = vmatpush1.msra.mxu0 0.0
      %1292 = vmatprep.subr.mxu0 0.0
      %1293 = vmatpush1.msra.mxu0 0.0
      %1294 = vmatprep.subr.mxu0 0.0
      %1295 = vmatpush1.msra.mxu0 0.0
      %1296 = vmatprep.subr.mxu0 0.0
      %1297 = vmatpush1.msra.mxu0 0.0
      %1298 = vmatprep.subr.mxu0 0.0
      %1299 = vmatpush1.msra.mxu0 0.0
      %1300 = vmatprep.subr.mxu0 0.0
      %1301 = vmatpush1.msra.mxu0 0.0
      %1302 = vmatprep.subr.mxu0 0.0
      %1303 = vmatpush1.msra.mxu0 0.0
      %1304 = vmatprep.subr.mxu0 0.0
      %1305 = vmatpush1.msra.mxu0 0.0
      %1306 = vmatprep.subr.mxu0 0.0
      %1307 = vmatpush1.msra.mxu0 0.0
      %1308 = vmatprep.subr.mxu0 0.0
      %1309 = vmatpush1.msra.mxu0 0.0
      %1310 = vmatprep.subr.mxu0 0.0
      %1311 = vmatpush1.msra.mxu0 0.0
      %1312 = vmatprep.subr.mxu0 0.0
      %1313 = vmatpush1.msra.mxu0 0.0
      %1314 = vmatprep.subr.mxu0 0.0
      %1315 = vmatpush1.msra.mxu0 %v879
      %1316 = vmatprep.subr.mxu0 0.0
      %1317 = vmatpush1.msra.mxu0 %v878
      %1318 = vmatprep.subr.mxu0 0.0
      %1319 = vmatpush1.msra.mxu0 %v877
      %1320 = vmatprep.subr.mxu0 0.0
      %1321 = vmatpush1.msra.mxu0 %v876
      %1322 = vmatprep.subr.mxu0 0.0
      %1323 = vmatpush2.msra.mxu0 0.0
      %1324 = vmatprep.subr.mxu0 0.0
      %1325 = vmatpush2.msra.mxu0 0.0
      %1326 = vmatprep.subr.mxu0 0.0
      %1327 = vmatpush2.msra.mxu0 0.0
      %1328 = vmatprep.subr.mxu0 0.0
      %1329 = vmatpush2.msra.mxu0 0.0
      %1330 = vmatprep.subr.mxu0 0.0
      %1331 = vmatpush2.msra.mxu0 0.0
      %1332 = vmatprep.subr.mxu0 0.0
      %1333 = vmatpush2.msra.mxu0 0.0
      %1334 = vmatprep.subr.mxu0 0.0
      %1335 = vmatpush2.msra.mxu0 0.0
      %1336 = vmatprep.subr.mxu0 0.0
      %1337 = vmatpush2.msra.mxu0 0.0
      %1338 = vmatprep.subr.mxu0 0.0
      %1339 = vmatpush2.msra.mxu0 0.0
      %1340 = vmatprep.subr.mxu0 0.0
      %1341 = vmatpush2.msra.mxu0 0.0
      %1342 = vmatprep.subr.mxu0 0.0
      %1343 = vmatpush2.msra.mxu0 0.0
      %1344 = vmatprep.subr.mxu0 0.0
      %1345 = vmatpush2.msra.mxu0 0.0
      %1346 = vmatprep.subr.mxu0 0.0
      %1347 = vmatpush2.msra.mxu0 0.0
      %1348 = vmatprep.subr.mxu0 0.0
      %1349 = vmatpush2.msra.mxu0 0.0
      %1350 = vmatprep.subr.mxu0 0.0
      %1351 = vmatpush2.msra.mxu0 0.0
      %1352 = vmatprep.subr.mxu0 0.0
      %1353 = vmatpush2.msra.mxu0 0.0
      %1354 = vmatprep.mubr.f32.mxu0 0.0
      %1355 = vmatmul.mubr.f32.gmra.mxu0 %v1288
      %v1356 = vpop.f32.mrf.mxu0
      %v1357 = vadd.f32 0.0, %v1356
      %v1358 = vpop.f32.mrf.mxu0
      %1359 = vdwg.mxu0
      %v1361 = vrot.slane %v1357, 2
      %v1363 = vadd.f32 %v963, %v1361
      %v1364 = vxor.u32 %v1363, 2147483648
      %v1365 = vmul.f32 %v1364, 1.442695
      %v1366 = vpow.pop %v1365
      %v1367 = vadd.f32 %v1366, 1.0
      %v1368 = vrcp.pop %v1367
      %v1369 = vmul.f32 1.0, %v1368
      %v1370 = vtanh.pop %v1363
      %v1372 = vrot.slane %v1277, 6
      %v1374 = vmul.f32 %v1369, %v1372
      %1376 = vrot.lane.b32.xlu0 %v1370, 64
      %v1377 = vpop.permute.xlu0 %1376
      %v1379 = vmul.f32 %v1369, %v1377
      %1381 = vrot.lane.b32.xlu0 %v1379, 32
      %v1382 = vpop.permute.xlu0 %1381
      %v1384 = vadd.f32 %v1374, %v1382
      %v1385 = vtanh.pop %v1384
      %1387 = vrot.lane.b32.xlu0 %v1385, 64
      %v1388 = vpop.permute.xlu0 %1387
      %v1390 = vmul.f32 %v1369, %v1388
      %1392 = vrot.lane.b32.xlu0 %v1390, 32
      %v1393 = vpop.permute.xlu0 %1392
      %vm1395 = vcmask 261126
      %1396 = vst.msk [vmem:[#allocation2 - $0x6] sm:$0xc0] %vm1395, %v1393
      %1398 = vrot.lane.b32.xlu0 %v1384, 96
      %v1399 = vpop.permute.xlu0 %1398
      %1401 = vst.msk [vmem:[#allocation3 - $0x6] sm:$0xc0] %vm1395, %v1399
      %v1402 = vsel %vm892, %v1070, %v1176
      %v1403 = vsel %vm649, %v1402, %v1283
      %vm1404 = vcmask 1045504
      %v1405 = vsel %vm1404, %v1403, %v1390
      %v1406 = vld [vmem:[%s14] sm:$0xff]
      %v1407 = vld [vmem:[%s14 + $0x8] sm:$0xff]
      %v1408 = vld [vmem:[%s14 + $0x10] sm:$0xff]
      %v1409 = vld [vmem:[%s14 + $0x18] sm:$0xff]
      %v1410 = vld [vmem:[%s13] sm:$0xff]
      %v1411 = vld [vmem:[%s13 + $0x8] sm:$0xff]
      %v1412 = vld [vmem:[%s13 + $0x10] sm:$0xff]
      %v1413 = vld [vmem:[%s13 + $0x18] sm:$0xff]
      %v1414 = vld [vmem:[%s15] sm:$0x1]
      %v1416 = vlaneseq
      %v1417 = vshrl.u32 %v1416, 7
      %v1418 = vsub.s32 0, %v1417
      %v1419 = vrot.slane %v1414, %v1418
      %1422 = vrot.lane.b32.xlu0 %v1405, 32
      %v1423 = vpop.permute.xlu0 %1422
      %v1424 = vsel %vm968, %v1423, 0
      %1426 = vmatprep.subr.mxu0 0.0
      %1427 = vmatpush1.msra.mxu0 0.0
      %1428 = vmatprep.subr.mxu0 0.0
      %1429 = vmatpush1.msra.mxu0 0.0
      %1430 = vmatprep.subr.mxu0 0.0
      %1431 = vmatpush1.msra.mxu0 0.0
      %1432 = vmatprep.subr.mxu0 0.0
      %1433 = vmatpush1.msra.mxu0 0.0
      %1434 = vmatprep.subr.mxu0 0.0
      %1435 = vmatpush1.msra.mxu0 0.0
      %1436 = vmatprep.subr.mxu0 0.0
      %1437 = vmatpush1.msra.mxu0 0.0
      %1438 = vmatprep.subr.mxu0 0.0
      %1439 = vmatpush1.msra.mxu0 0.0
      %1440 = vmatprep.subr.mxu0 0.0
      %1441 = vmatpush1.msra.mxu0 0.0
      %1442 = vmatprep.subr.mxu0 0.0
      %1443 = vmatpush1.msra.mxu0 0.0
      %1444 = vmatprep.subr.mxu0 0.0
      %1445 = vmatpush1.msra.mxu0 0.0
      %1446 = vmatprep.subr.mxu0 0.0
      %1447 = vmatpush1.msra.mxu0 0.0
      %1448 = vmatprep.subr.mxu0 0.0
      %1449 = vmatpush1.msra.mxu0 0.0
      %1450 = vmatprep.subr.mxu0 0.0
      %1451 = vmatpush1.msra.mxu0 %v1413
      %1452 = vmatprep.subr.mxu0 0.0
      %1453 = vmatpush1.msra.mxu0 %v1412
      %1454 = vmatprep.subr.mxu0 0.0
      %1455 = vmatpush1.msra.mxu0 %v1411
      %1456 = vmatprep.subr.mxu0 0.0
      %1457 = vmatpush1.msra.mxu0 %v1410
      %1458 = vmatprep.subr.mxu0 0.0
      %1459 = vmatpush2.msra.mxu0 0.0
      %1460 = vmatprep.subr.mxu0 0.0
      %1461 = vmatpush2.msra.mxu0 0.0
      %1462 = vmatprep.subr.mxu0 0.0
      %1463 = vmatpush2.msra.mxu0 0.0
      %1464 = vmatprep.subr.mxu0 0.0
      %1465 = vmatpush2.msra.mxu0 0.0
      %1466 = vmatprep.subr.mxu0 0.0
      %1467 = vmatpush2.msra.mxu0 0.0
      %1468 = vmatprep.subr.mxu0 0.0
      %1469 = vmatpush2.msra.mxu0 0.0
      %1470 = vmatprep.subr.mxu0 0.0
      %1471 = vmatpush2.msra.mxu0 0.0
      %1472 = vmatprep.subr.mxu0 0.0
      %1473 = vmatpush2.msra.mxu0 0.0
      %1474 = vmatprep.subr.mxu0 0.0
      %1475 = vmatpush2.msra.mxu0 0.0
      %1476 = vmatprep.subr.mxu0 0.0
      %1477 = vmatpush2.msra.mxu0 0.0
      %1478 = vmatprep.subr.mxu0 0.0
      %1479 = vmatpush2.msra.mxu0 0.0
      %1480 = vmatprep.subr.mxu0 0.0
      %1481 = vmatpush2.msra.mxu0 0.0
      %1482 = vmatprep.subr.mxu0 0.0
      %1483 = vmatpush2.msra.mxu0 0.0
      %1484 = vmatprep.subr.mxu0 0.0
      %1485 = vmatpush2.msra.mxu0 0.0
      %1486 = vmatprep.subr.mxu0 0.0
      %1487 = vmatpush2.msra.mxu0 0.0
      %1488 = vmatprep.subr.mxu0 0.0
      %1489 = vmatpush2.msra.mxu0 0.0
      %1490 = vmatprep.mubr.f32.mxu0 0.0
      %1491 = vmatmul.mubr.f32.gmra.mxu0 %v1424
      %v1492 = vpop.f32.mrf.mxu0
      %v1493 = vadd.f32 %v1419, %v1492
      %v1494 = vpop.f32.mrf.mxu0
      %1495 = vdwg.mxu0
      %s1496 = scalar_lea.vmem [#allocation2], 2
      %v1497 = vld [vmem:[%s1496] sm:$0x3]
      %s1498 = scalar_lea.vmem [#allocation3], 2
      %v1499 = vld [vmem:[%s1498] sm:$0x3]
      %v1501 = vsel %vm968, %v1497, 0
      %1503 = vmatprep.subr.mxu0 0.0
      %1504 = vmatpush1.msra.mxu0 0.0
      %1505 = vmatprep.subr.mxu0 0.0
      %1506 = vmatpush1.msra.mxu0 0.0
      %1507 = vmatprep.subr.mxu0 0.0
      %1508 = vmatpush1.msra.mxu0 0.0
      %1509 = vmatprep.subr.mxu0 0.0
      %1510 = vmatpush1.msra.mxu0 0.0
      %1511 = vmatprep.subr.mxu0 0.0
      %1512 = vmatpush1.msra.mxu0 0.0
      %1513 = vmatprep.subr.mxu0 0.0
      %1514 = vmatpush1.msra.mxu0 0.0
      %1515 = vmatprep.subr.mxu0 0.0
      %1516 = vmatpush1.msra.mxu0 0.0
      %1517 = vmatprep.subr.mxu0 0.0
      %1518 = vmatpush1.msra.mxu0 0.0
      %1519 = vmatprep.subr.mxu0 0.0
      %1520 = vmatpush1.msra.mxu0 0.0
      %1521 = vmatprep.subr.mxu0 0.0
      %1522 = vmatpush1.msra.mxu0 0.0
      %1523 = vmatprep.subr.mxu0 0.0
      %1524 = vmatpush1.msra.mxu0 0.0
      %1525 = vmatprep.subr.mxu0 0.0
      %1526 = vmatpush1.msra.mxu0 0.0
      %1527 = vmatprep.subr.mxu0 0.0
      %1528 = vmatpush1.msra.mxu0 %v1409
      %1529 = vmatprep.subr.mxu0 0.0
      %1530 = vmatpush1.msra.mxu0 %v1408
      %1531 = vmatprep.subr.mxu0 0.0
      %1532 = vmatpush1.msra.mxu0 %v1407
      %1533 = vmatprep.subr.mxu0 0.0
      %1534 = vmatpush1.msra.mxu0 %v1406
      %1535 = vmatprep.subr.mxu0 0.0
      %1536 = vmatpush2.msra.mxu0 0.0
      %1537 = vmatprep.subr.mxu0 0.0
      %1538 = vmatpush2.msra.mxu0 0.0
      %1539 = vmatprep.subr.mxu0 0.0
      %1540 = vmatpush2.msra.mxu0 0.0
      %1541 = vmatprep.subr.mxu0 0.0
      %1542 = vmatpush2.msra.mxu0 0.0
      %1543 = vmatprep.subr.mxu0 0.0
      %1544 = vmatpush2.msra.mxu0 0.0
      %1545 = vmatprep.subr.mxu0 0.0
      %1546 = vmatpush2.msra.mxu0 0.0
      %1547 = vmatprep.subr.mxu0 0.0
      %1548 = vmatpush2.msra.mxu0 0.0
      %1549 = vmatprep.subr.mxu0 0.0
      %1550 = vmatpush2.msra.mxu0 0.0
      %1551 = vmatprep.subr.mxu0 0.0
      %1552 = vmatpush2.msra.mxu0 0.0
      %1553 = vmatprep.subr.mxu0 0.0
      %1554 = vmatpush2.msra.mxu0 0.0
      %1555 = vmatprep.subr.mxu0 0.0
      %1556 = vmatpush2.msra.mxu0 0.0
      %1557 = vmatprep.subr.mxu0 0.0
      %1558 = vmatpush2.msra.mxu0 0.0
      %1559 = vmatprep.subr.mxu0 0.0
      %1560 = vmatpush2.msra.mxu0 0.0
      %1561 = vmatprep.subr.mxu0 0.0
      %1562 = vmatpush2.msra.mxu0 0.0
      %1563 = vmatprep.subr.mxu0 0.0
      %1564 = vmatpush2.msra.mxu0 0.0
      %1565 = vmatprep.subr.mxu0 0.0
      %1566 = vmatpush2.msra.mxu0 0.0
      %1567 = vmatprep.mubr.f32.mxu0 0.0
      %1568 = vmatmul.mubr.f32.gmra.mxu0 %v1501
      %v1569 = vpop.f32.mrf.mxu0
      %v1570 = vadd.f32 0.0, %v1569
      %v1571 = vpop.f32.mrf.mxu0
      %1572 = vdwg.mxu0
      %v1573 = vadd.f32 %v1493, %v1570
      %v1574 = vxor.u32 %v1573, 2147483648
      %v1575 = vmul.f32 %v1574, 1.442695
      %v1576 = vpow.pop %v1575
      %v1577 = vadd.f32 %v1576, 1.0
      %v1578 = vrcp.pop %v1577
      %v1579 = vmul.f32 1.0, %v1578
      %v1580 = vtanh.pop %v1573
      %1582 = vrot.lane.b32.xlu0 %v1499, 32
      %v1583 = vpop.permute.xlu0 %1582
      %v1585 = vmul.f32 %v1579, %v1583
      %1587 = vrot.lane.b32.xlu0 %v1580, 64
      %v1588 = vpop.permute.xlu0 %1587
      %v1590 = vmul.f32 %v1579, %v1588
      %1592 = vrot.lane.b32.xlu0 %v1590, 32
      %v1593 = vpop.permute.xlu0 %1592
      %v1595 = vadd.f32 %v1585, %v1593
      %v1596 = vtanh.pop %v1595
      %1598 = vrot.lane.b32.xlu0 %v1596, 64
      %v1599 = vpop.permute.xlu0 %1598
      %v1601 = vmul.f32 %v1579, %v1599
      %1603 = vrot.lane.b32.xlu0 %v1601, 32
      %v1604 = vpop.permute.xlu0 %1603
      %v1605 = vsel %vm968, %v1604, 0
      %1607 = vmatprep.subr.mxu0 0.0
      %1608 = vmatpush1.msra.mxu0 0.0
      %1609 = vmatprep.subr.mxu0 0.0
      %1610 = vmatpush1.msra.mxu0 0.0
      %1611 = vmatprep.subr.mxu0 0.0
      %1612 = vmatpush1.msra.mxu0 0.0
      %1613 = vmatprep.subr.mxu0 0.0
      %1614 = vmatpush1.msra.mxu0 0.0
      %1615 = vmatprep.subr.mxu0 0.0
      %1616 = vmatpush1.msra.mxu0 0.0
      %1617 = vmatprep.subr.mxu0 0.0
      %1618 = vmatpush1.msra.mxu0 0.0
      %1619 = vmatprep.subr.mxu0 0.0
      %1620 = vmatpush1.msra.mxu0 0.0
      %1621 = vmatprep.subr.mxu0 0.0
      %1622 = vmatpush1.msra.mxu0 0.0
      %1623 = vmatprep.subr.mxu0 0.0
      %1624 = vmatpush1.msra.mxu0 0.0
      %1625 = vmatprep.subr.mxu0 0.0
      %1626 = vmatpush1.msra.mxu0 0.0
      %1627 = vmatprep.subr.mxu0 0.0
      %1628 = vmatpush1.msra.mxu0 0.0
      %1629 = vmatprep.subr.mxu0 0.0
      %1630 = vmatpush1.msra.mxu0 0.0
      %1631 = vmatprep.subr.mxu0 0.0
      %1632 = vmatpush1.msra.mxu0 %v1409
      %1633 = vmatprep.subr.mxu0 0.0
      %1634 = vmatpush1.msra.mxu0 %v1408
      %1635 = vmatprep.subr.mxu0 0.0
      %1636 = vmatpush1.msra.mxu0 %v1407
      %1637 = vmatprep.subr.mxu0 0.0
      %1638 = vmatpush1.msra.mxu0 %v1406
      %1639 = vmatprep.subr.mxu0 0.0
      %1640 = vmatpush2.msra.mxu0 0.0
      %1641 = vmatprep.subr.mxu0 0.0
      %1642 = vmatpush2.msra.mxu0 0.0
      %1643 = vmatprep.subr.mxu0 0.0
      %1644 = vmatpush2.msra.mxu0 0.0
      %1645 = vmatprep.subr.mxu0 0.0
      %1646 = vmatpush2.msra.mxu0 0.0
      %1647 = vmatprep.subr.mxu0 0.0
      %1648 = vmatpush2.msra.mxu0 0.0
      %1649 = vmatprep.subr.mxu0 0.0
      %1650 = vmatpush2.msra.mxu0 0.0
      %1651 = vmatprep.subr.mxu0 0.0
      %1652 = vmatpush2.msra.mxu0 0.0
      %1653 = vmatprep.subr.mxu0 0.0
      %1654 = vmatpush2.msra.mxu0 0.0
      %1655 = vmatprep.subr.mxu0 0.0
      %1656 = vmatpush2.msra.mxu0 0.0
      %1657 = vmatprep.subr.mxu0 0.0
      %1658 = vmatpush2.msra.mxu0 0.0
      %1659 = vmatprep.subr.mxu0 0.0
      %1660 = vmatpush2.msra.mxu0 0.0
      %1661 = vmatprep.subr.mxu0 0.0
      %1662 = vmatpush2.msra.mxu0 0.0
      %1663 = vmatprep.subr.mxu0 0.0
      %1664 = vmatpush2.msra.mxu0 0.0
      %1665 = vmatprep.subr.mxu0 0.0
      %1666 = vmatpush2.msra.mxu0 0.0
      %1667 = vmatprep.subr.mxu0 0.0
      %1668 = vmatpush2.msra.mxu0 0.0
      %1669 = vmatprep.subr.mxu0 0.0
      %1670 = vmatpush2.msra.mxu0 0.0
      %1671 = vmatprep.mubr.f32.mxu0 0.0
      %1672 = vmatmul.mubr.f32.gmra.mxu0 %v1605
      %v1673 = vpop.f32.mrf.mxu0
      %v1674 = vadd.f32 0.0, %v1673
      %v1675 = vpop.f32.mrf.mxu0
      %1676 = vdwg.mxu0
      %v1678 = vrot.slane %v1674, 6
      %v1680 = vadd.f32 %v1493, %v1678
      %v1681 = vxor.u32 %v1680, 2147483648
      %v1682 = vmul.f32 %v1681, 1.442695
      %v1683 = vpow.pop %v1682
      %v1684 = vadd.f32 %v1683, 1.0
      %v1685 = vrcp.pop %v1684
      %v1686 = vmul.f32 1.0, %v1685
      %v1687 = vtanh.pop %v1680
      %v1689 = vrot.slane %v1595, 6
      %v1691 = vmul.f32 %v1686, %v1689
      %1693 = vrot.lane.b32.xlu0 %v1687, 64
      %v1694 = vpop.permute.xlu0 %1693
      %v1696 = vmul.f32 %v1686, %v1694
      %1698 = vrot.lane.b32.xlu0 %v1696, 32
      %v1699 = vpop.permute.xlu0 %1698
      %v1701 = vadd.f32 %v1691, %v1699
      %v1702 = vtanh.pop %v1701
      %1704 = vrot.lane.b32.xlu0 %v1702, 64
      %v1705 = vpop.permute.xlu0 %1704
      %v1707 = vmul.f32 %v1686, %v1705
      %v1709 = vrot.slane %v1707, 2
      %1710 = vrot.lane.b32.xlu0 %v1709, 32
      %v1711 = vpop.permute.xlu0 %1710
      %v1712 = vsel %vm968, %v1711, 0
      %1714 = vmatprep.subr.mxu0 0.0
      %1715 = vmatpush1.msra.mxu0 0.0
      %1716 = vmatprep.subr.mxu0 0.0
      %1717 = vmatpush1.msra.mxu0 0.0
      %1718 = vmatprep.subr.mxu0 0.0
      %1719 = vmatpush1.msra.mxu0 0.0
      %1720 = vmatprep.subr.mxu0 0.0
      %1721 = vmatpush1.msra.mxu0 0.0
      %1722 = vmatprep.subr.mxu0 0.0
      %1723 = vmatpush1.msra.mxu0 0.0
      %1724 = vmatprep.subr.mxu0 0.0
      %1725 = vmatpush1.msra.mxu0 0.0
      %1726 = vmatprep.subr.mxu0 0.0
      %1727 = vmatpush1.msra.mxu0 0.0
      %1728 = vmatprep.subr.mxu0 0.0
      %1729 = vmatpush1.msra.mxu0 0.0
      %1730 = vmatprep.subr.mxu0 0.0
      %1731 = vmatpush1.msra.mxu0 0.0
      %1732 = vmatprep.subr.mxu0 0.0
      %1733 = vmatpush1.msra.mxu0 0.0
      %1734 = vmatprep.subr.mxu0 0.0
      %1735 = vmatpush1.msra.mxu0 0.0
      %1736 = vmatprep.subr.mxu0 0.0
      %1737 = vmatpush1.msra.mxu0 0.0
      %1738 = vmatprep.subr.mxu0 0.0
      %1739 = vmatpush1.msra.mxu0 %v1409
      %1740 = vmatprep.subr.mxu0 0.0
      %1741 = vmatpush1.msra.mxu0 %v1408
      %1742 = vmatprep.subr.mxu0 0.0
      %1743 = vmatpush1.msra.mxu0 %v1407
      %1744 = vmatprep.subr.mxu0 0.0
      %1745 = vmatpush1.msra.mxu0 %v1406
      %1746 = vmatprep.subr.mxu0 0.0
      %1747 = vmatpush2.msra.mxu0 0.0
      %1748 = vmatprep.subr.mxu0 0.0
      %1749 = vmatpush2.msra.mxu0 0.0
      %1750 = vmatprep.subr.mxu0 0.0
      %1751 = vmatpush2.msra.mxu0 0.0
      %1752 = vmatprep.subr.mxu0 0.0
      %1753 = vmatpush2.msra.mxu0 0.0
      %1754 = vmatprep.subr.mxu0 0.0
      %1755 = vmatpush2.msra.mxu0 0.0
      %1756 = vmatprep.subr.mxu0 0.0
      %1757 = vmatpush2.msra.mxu0 0.0
      %1758 = vmatprep.subr.mxu0 0.0
      %1759 = vmatpush2.msra.mxu0 0.0
      %1760 = vmatprep.subr.mxu0 0.0
      %1761 = vmatpush2.msra.mxu0 0.0
      %1762 = vmatprep.subr.mxu0 0.0
      %1763 = vmatpush2.msra.mxu0 0.0
      %1764 = vmatprep.subr.mxu0 0.0
      %1765 = vmatpush2.msra.mxu0 0.0
      %1766 = vmatprep.subr.mxu0 0.0
      %1767 = vmatpush2.msra.mxu0 0.0
      %1768 = vmatprep.subr.mxu0 0.0
      %1769 = vmatpush2.msra.mxu0 0.0
      %1770 = vmatprep.subr.mxu0 0.0
      %1771 = vmatpush2.msra.mxu0 0.0
      %1772 = vmatprep.subr.mxu0 0.0
      %1773 = vmatpush2.msra.mxu0 0.0
      %1774 = vmatprep.subr.mxu0 0.0
      %1775 = vmatpush2.msra.mxu0 0.0
      %1776 = vmatprep.subr.mxu0 0.0
      %1777 = vmatpush2.msra.mxu0 0.0
      %1778 = vmatprep.mubr.f32.mxu0 0.0
      %1779 = vmatmul.mubr.f32.gmra.mxu0 %v1712
      %v1780 = vpop.f32.mrf.mxu0
      %v1781 = vadd.f32 0.0, %v1780
      %v1782 = vpop.f32.mrf.mxu0
      %1783 = vdwg.mxu0
      %v1785 = vrot.slane %v1781, 4
      %v1787 = vadd.f32 %v1493, %v1785
      %v1788 = vxor.u32 %v1787, 2147483648
      %v1789 = vmul.f32 %v1788, 1.442695
      %v1790 = vpow.pop %v1789
      %v1791 = vadd.f32 %v1790, 1.0
      %v1792 = vrcp.pop %v1791
      %v1793 = vmul.f32 1.0, %v1792
      %v1794 = vtanh.pop %v1787
      %v1796 = vrot.slane %v1701, 6
      %v1798 = vmul.f32 %v1793, %v1796
      %1800 = vrot.lane.b32.xlu0 %v1794, 64
      %v1801 = vpop.permute.xlu0 %1800
      %v1803 = vmul.f32 %v1793, %v1801
      %1805 = vrot.lane.b32.xlu0 %v1803, 32
      %v1806 = vpop.permute.xlu0 %1805
      %v1808 = vadd.f32 %v1798, %v1806
      %v1809 = vtanh.pop %v1808
      %1811 = vrot.lane.b32.xlu0 %v1809, 64
      %v1812 = vpop.permute.xlu0 %1811
      %v1814 = vmul.f32 %v1793, %v1812
      %v1816 = vrot.slane %v1814, 4
      %1817 = vrot.lane.b32.xlu0 %v1816, 32
      %v1818 = vpop.permute.xlu0 %1817
      %v1819 = vsel %vm968, %v1818, 0
      %1821 = vmatprep.subr.mxu0 0.0
      %1822 = vmatpush1.msra.mxu0 0.0
      %1823 = vmatprep.subr.mxu0 0.0
      %1824 = vmatpush1.msra.mxu0 0.0
      %1825 = vmatprep.subr.mxu0 0.0
      %1826 = vmatpush1.msra.mxu0 0.0
      %1827 = vmatprep.subr.mxu0 0.0
      %1828 = vmatpush1.msra.mxu0 0.0
      %1829 = vmatprep.subr.mxu0 0.0
      %1830 = vmatpush1.msra.mxu0 0.0
      %1831 = vmatprep.subr.mxu0 0.0
      %1832 = vmatpush1.msra.mxu0 0.0
      %1833 = vmatprep.subr.mxu0 0.0
      %1834 = vmatpush1.msra.mxu0 0.0
      %1835 = vmatprep.subr.mxu0 0.0
      %1836 = vmatpush1.msra.mxu0 0.0
      %1837 = vmatprep.subr.mxu0 0.0
      %1838 = vmatpush1.msra.mxu0 0.0
      %1839 = vmatprep.subr.mxu0 0.0
      %1840 = vmatpush1.msra.mxu0 0.0
      %1841 = vmatprep.subr.mxu0 0.0
      %1842 = vmatpush1.msra.mxu0 0.0
      %1843 = vmatprep.subr.mxu0 0.0
      %1844 = vmatpush1.msra.mxu0 0.0
      %1845 = vmatprep.subr.mxu0 0.0
      %1846 = vmatpush1.msra.mxu0 %v1409
      %1847 = vmatprep.subr.mxu0 0.0
      %1848 = vmatpush1.msra.mxu0 %v1408
      %1849 = vmatprep.subr.mxu0 0.0
      %1850 = vmatpush1.msra.mxu0 %v1407
      %1851 = vmatprep.subr.mxu0 0.0
      %1852 = vmatpush1.msra.mxu0 %v1406
      %1853 = vmatprep.subr.mxu0 0.0
      %1854 = vmatpush2.msra.mxu0 0.0
      %1855 = vmatprep.subr.mxu0 0.0
      %1856 = vmatpush2.msra.mxu0 0.0
      %1857 = vmatprep.subr.mxu0 0.0
      %1858 = vmatpush2.msra.mxu0 0.0
      %1859 = vmatprep.subr.mxu0 0.0
      %1860 = vmatpush2.msra.mxu0 0.0
      %1861 = vmatprep.subr.mxu0 0.0
      %1862 = vmatpush2.msra.mxu0 0.0
      %1863 = vmatprep.subr.mxu0 0.0
      %1864 = vmatpush2.msra.mxu0 0.0
      %1865 = vmatprep.subr.mxu0 0.0
      %1866 = vmatpush2.msra.mxu0 0.0
      %1867 = vmatprep.subr.mxu0 0.0
      %1868 = vmatpush2.msra.mxu0 0.0
      %1869 = vmatprep.subr.mxu0 0.0
      %1870 = vmatpush2.msra.mxu0 0.0
      %1871 = vmatprep.subr.mxu0 0.0
      %1872 = vmatpush2.msra.mxu0 0.0
      %1873 = vmatprep.subr.mxu0 0.0
      %1874 = vmatpush2.msra.mxu0 0.0
      %1875 = vmatprep.subr.mxu0 0.0
      %1876 = vmatpush2.msra.mxu0 0.0
      %1877 = vmatprep.subr.mxu0 0.0
      %1878 = vmatpush2.msra.mxu0 0.0
      %1879 = vmatprep.subr.mxu0 0.0
      %1880 = vmatpush2.msra.mxu0 0.0
      %1881 = vmatprep.subr.mxu0 0.0
      %1882 = vmatpush2.msra.mxu0 0.0
      %1883 = vmatprep.subr.mxu0 0.0
      %1884 = vmatpush2.msra.mxu0 0.0
      %1885 = vmatprep.mubr.f32.mxu0 0.0
      %1886 = vmatmul.mubr.f32.gmra.mxu0 %v1819
      %v1887 = vpop.f32.mrf.mxu0
      %v1888 = vadd.f32 0.0, %v1887
      %v1889 = vpop.f32.mrf.mxu0
      %1890 = vdwg.mxu0
      %v1892 = vrot.slane %v1888, 2
      %v1894 = vadd.f32 %v1493, %v1892
      %v1895 = vxor.u32 %v1894, 2147483648
      %v1896 = vmul.f32 %v1895, 1.442695
      %v1897 = vpow.pop %v1896
      %v1898 = vadd.f32 %v1897, 1.0
      %v1899 = vrcp.pop %v1898
      %v1900 = vmul.f32 1.0, %v1899
      %v1901 = vtanh.pop %v1894
      %v1903 = vrot.slane %v1808, 6
      %v1905 = vmul.f32 %v1900, %v1903
      %1907 = vrot.lane.b32.xlu0 %v1901, 64
      %v1908 = vpop.permute.xlu0 %1907
      %v1910 = vmul.f32 %v1900, %v1908
      %1912 = vrot.lane.b32.xlu0 %v1910, 32
      %v1913 = vpop.permute.xlu0 %1912
      %v1915 = vadd.f32 %v1905, %v1913
      %v1916 = vtanh.pop %v1915
      %1918 = vrot.lane.b32.xlu0 %v1916, 64
      %v1919 = vpop.permute.xlu0 %1918
      %v1921 = vmul.f32 %v1900, %v1919
      %1923 = vrot.lane.b32.xlu0 %v1921, 32
      %v1924 = vpop.permute.xlu0 %1923
      %1926 = vst.msk [vmem:[%s1496 - $0x6] sm:$0xc0] %vm1395, %v1924
      %1928 = vrot.lane.b32.xlu0 %v1915, 96
      %v1929 = vpop.permute.xlu0 %1928
      %1931 = vst.msk [vmem:[%s1498 - $0x6] sm:$0xc0] %vm1395, %v1929
      %v1932 = vsel %vm892, %v1601, %v1707
      %v1933 = vsel %vm649, %v1932, %v1814
      %v1934 = vsel %vm1404, %v1933, %v1921
      %1936 = vrot.lane.b32.xlu0 %v1934, 32
      %v1937 = vpop.permute.xlu0 %1936
      %v1938 = vsel %vm968, %v1937, 0
      %1940 = vmatprep.subr.mxu0 0.0
      %1941 = vmatpush1.msra.mxu0 0.0
      %1942 = vmatprep.subr.mxu0 0.0
      %1943 = vmatpush1.msra.mxu0 0.0
      %1944 = vmatprep.subr.mxu0 0.0
      %1945 = vmatpush1.msra.mxu0 0.0
      %1946 = vmatprep.subr.mxu0 0.0
      %1947 = vmatpush1.msra.mxu0 0.0
      %1948 = vmatprep.subr.mxu0 0.0
      %1949 = vmatpush1.msra.mxu0 0.0
      %1950 = vmatprep.subr.mxu0 0.0
      %1951 = vmatpush1.msra.mxu0 0.0
      %1952 = vmatprep.subr.mxu0 0.0
      %1953 = vmatpush1.msra.mxu0 0.0
      %1954 = vmatprep.subr.mxu0 0.0
      %1955 = vmatpush1.msra.mxu0 0.0
      %1956 = vmatprep.subr.mxu0 0.0
      %1957 = vmatpush1.msra.mxu0 0.0
      %1958 = vmatprep.subr.mxu0 0.0
      %1959 = vmatpush1.msra.mxu0 0.0
      %1960 = vmatprep.subr.mxu0 0.0
      %1961 = vmatpush1.msra.mxu0 0.0
      %1962 = vmatprep.subr.mxu0 0.0
      %1963 = vmatpush1.msra.mxu0 0.0
      %1964 = vmatprep.subr.mxu0 0.0
      %1965 = vmatpush1.msra.mxu0 %v634
      %1966 = vmatprep.subr.mxu0 0.0
      %1967 = vmatpush1.msra.mxu0 %v633
      %1968 = vmatprep.subr.mxu0 0.0
      %1969 = vmatpush1.msra.mxu0 %v632
      %1970 = vmatprep.subr.mxu0 0.0
      %1971 = vmatpush1.msra.mxu0 %v631
      %1972 = vmatprep.subr.mxu0 0.0
      %1973 = vmatpush2.msra.mxu0 0.0
      %1974 = vmatprep.subr.mxu0 0.0
      %1975 = vmatpush2.msra.mxu0 0.0
      %1976 = vmatprep.subr.mxu0 0.0
      %1977 = vmatpush2.msra.mxu0 0.0
      %1978 = vmatprep.subr.mxu0 0.0
      %1979 = vmatpush2.msra.mxu0 0.0
      %1980 = vmatprep.subr.mxu0 0.0
      %1981 = vmatpush2.msra.mxu0 0.0
      %1982 = vmatprep.subr.mxu0 0.0
      %1983 = vmatpush2.msra.mxu0 0.0
      %1984 = vmatprep.subr.mxu0 0.0
      %1985 = vmatpush2.msra.mxu0 0.0
      %1986 = vmatprep.subr.mxu0 0.0
      %1987 = vmatpush2.msra.mxu0 0.0
      %1988 = vmatprep.subr.mxu0 0.0
      %1989 = vmatpush2.msra.mxu0 0.0
      %1990 = vmatprep.subr.mxu0 0.0
      %1991 = vmatpush2.msra.mxu0 0.0
      %1992 = vmatprep.subr.mxu0 0.0
      %1993 = vmatpush2.msra.mxu0 0.0
      %1994 = vmatprep.subr.mxu0 0.0
      %1995 = vmatpush2.msra.mxu0 0.0
      %1996 = vmatprep.subr.mxu0 0.0
      %1997 = vmatpush2.msra.mxu0 0.0
      %1998 = vmatprep.subr.mxu0 0.0
      %1999 = vmatpush2.msra.mxu0 0.0
      %2000 = vmatprep.subr.mxu0 0.0
      %2001 = vmatpush2.msra.mxu0 0.0
      %2002 = vmatprep.subr.mxu0 0.0
      %2003 = vmatpush2.msra.mxu0 0.0
      %2004 = vmatprep.mubr.f32.mxu0 0.0
      %2005 = vmatmul.mubr.f32.gmra.mxu0 %v1938
      %v2006 = vpop.f32.mrf.mxu0
      %v2007 = vadd.f32 0.0, %v2006
      %v2008 = vpop.f32.mrf.mxu0
      %2009 = vdwg.mxu0
      %v2011 = vsel %vm968, %v874, 0
      %2013 = vmatprep.subr.mxu0 0.0
      %2014 = vmatpush1.msra.mxu0 0.0
      %2015 = vmatprep.subr.mxu0 0.0
      %2016 = vmatpush1.msra.mxu0 0.0
      %2017 = vmatprep.subr.mxu0 0.0
      %2018 = vmatpush1.msra.mxu0 0.0
      %2019 = vmatprep.subr.mxu0 0.0
      %2020 = vmatpush1.msra.mxu0 0.0
      %2021 = vmatprep.subr.mxu0 0.0
      %2022 = vmatpush1.msra.mxu0 0.0
      %2023 = vmatprep.subr.mxu0 0.0
      %2024 = vmatpush1.msra.mxu0 0.0
      %2025 = vmatprep.subr.mxu0 0.0
      %2026 = vmatpush1.msra.mxu0 0.0
      %2027 = vmatprep.subr.mxu0 0.0
      %2028 = vmatpush1.msra.mxu0 0.0
      %2029 = vmatprep.subr.mxu0 0.0
      %2030 = vmatpush1.msra.mxu0 0.0
      %2031 = vmatprep.subr.mxu0 0.0
      %2032 = vmatpush1.msra.mxu0 0.0
      %2033 = vmatprep.subr.mxu0 0.0
      %2034 = vmatpush1.msra.mxu0 0.0
      %2035 = vmatprep.subr.mxu0 0.0
      %2036 = vmatpush1.msra.mxu0 0.0
      %2037 = vmatprep.subr.mxu0 0.0
      %2038 = vmatpush1.msra.mxu0 %v630
      %2039 = vmatprep.subr.mxu0 0.0
      %2040 = vmatpush1.msra.mxu0 %v629
      %2041 = vmatprep.subr.mxu0 0.0
      %2042 = vmatpush1.msra.mxu0 %v628
      %2043 = vmatprep.subr.mxu0 0.0
      %2044 = vmatpush1.msra.mxu0 %v627
      %2045 = vmatprep.subr.mxu0 0.0
      %2046 = vmatpush2.msra.mxu0 0.0
      %2047 = vmatprep.subr.mxu0 0.0
      %2048 = vmatpush2.msra.mxu0 0.0
      %2049 = vmatprep.subr.mxu0 0.0
      %2050 = vmatpush2.msra.mxu0 0.0
      %2051 = vmatprep.subr.mxu0 0.0
      %2052 = vmatpush2.msra.mxu0 0.0
      %2053 = vmatprep.subr.mxu0 0.0
      %2054 = vmatpush2.msra.mxu0 0.0
      %2055 = vmatprep.subr.mxu0 0.0
      %2056 = vmatpush2.msra.mxu0 0.0
      %2057 = vmatprep.subr.mxu0 0.0
      %2058 = vmatpush2.msra.mxu0 0.0
      %2059 = vmatprep.subr.mxu0 0.0
      %2060 = vmatpush2.msra.mxu0 0.0
      %2061 = vmatprep.subr.mxu0 0.0
      %2062 = vmatpush2.msra.mxu0 0.0
      %2063 = vmatprep.subr.mxu0 0.0
      %2064 = vmatpush2.msra.mxu0 0.0
      %2065 = vmatprep.subr.mxu0 0.0
      %2066 = vmatpush2.msra.mxu0 0.0
      %2067 = vmatprep.subr.mxu0 0.0
      %2068 = vmatpush2.msra.mxu0 0.0
      %2069 = vmatprep.subr.mxu0 0.0
      %2070 = vmatpush2.msra.mxu0 0.0
      %2071 = vmatprep.subr.mxu0 0.0
      %2072 = vmatpush2.msra.mxu0 0.0
      %2073 = vmatprep.subr.mxu0 0.0
      %2074 = vmatpush2.msra.mxu0 0.0
      %2075 = vmatprep.subr.mxu0 0.0
      %2076 = vmatpush2.msra.mxu0 0.0
      %2077 = vmatprep.mubr.f32.mxu0 0.0
      %2078 = vmatmul.mubr.f32.gmra.mxu0 %v2011
      %v2079 = vpop.f32.mrf.mxu0
      %v2080 = vadd.f32 %v2007, %v2079
      %v2081 = vpop.f32.mrf.mxu0
      %2082 = vdwg.mxu0
      %v2084 = vlaneseq
      %v2085 = vshrl.u32 %v2084, 7
      %v2086 = vsub.s32 0, %v2085
      %v2087 = vrot.slane %v635, %v2086
      %v2089 = vadd.f32 %v2080, %v2087
      %vm2090 = vcmask 48136
      %v2091 = vsel %vm2090, %v2089, -inf
      %2092 = vmax.xlane.f32.xlu0 %v2091
      %v2093 = vpop.xlane.xlu0 %2092
      %v2094 = vsub.f32 %v2089, %v2093
      %v2095 = vmul.f32 %v2094, 1.442695
      %v2096 = vpow.pop %v2095
      %2098 = vrot.lane.b32.xlu0 %v2096, 127
      %v2099 = vpop.permute.xlu0 %2098
      %vm2101 = vcmask 39936
      %v2102 = vsel %vm2101, %v2099, 0.0
      %2103 = vadd.xlane.f32.xlu0 %v2102
      %v2104 = vpop.xlane.xlu0 %2103
      %v2105 = vrcp.pop %v2104
      %v2106 = vmul.f32 %v2096, %v2105
      %vm2107 = vcmask 7168
      %v2108 = vsel %vm2107, %v2089, %v2106
      %vm2109 = vcmask 48128
      %2110 = vst.msk [vmem:[%s561] sm:$0xff] %vm2109, %v2108
      %p2111 = scmp.eq.s32.totalorder %s29, 1
      // Predicated region
      $region89: #{ppo_lstm3_forward.3} parent=83 // pred_check
        %p2112 = pneg %p2111
      $region90: #{ppo_lstm3_forward.3} parent=83 // pred_check_branch
        %2114 = sbr.rel (%p2112) target = $region92
      $region91: #{ppo_lstm3_forward.3} parent=83 // pred_region
        %v2115 = vld [vmem:[#allocation2] sm:$0x3]
        %v2116 = vld [vmem:[#allocation2 + $0x2] sm:$0x3]
        %v2117 = vld [vmem:[#allocation3] sm:$0x3]
        %v2118 = vld [vmem:[#allocation3 + $0x2] sm:$0x3]
        %2121 = vrot.lane.b32.xlu0 %v2117, 32
        %v2122 = vpop.permute.xlu0 %2121
        %2123 = vrot.lane.b32.xlu0 %v2118, 32
        %v2124 = vpop.permute.xlu0 %2123
        %v2127 = vsel %vm968, %v2115, %v2122
        %v2128 = vsel %vm968, %v2116, %v2124
        %vm2129 = vcmask 517120
        %2130 = vst.msk [vmem:[%s17] sm:$0x3] %vm2129, %v2127
        %2131 = vst.msk [vmem:[%s17 + $0x2] sm:$0x3] %vm2129, %v2128
      $region92: #{ppo_lstm3_forward.3} parent=83 // pred_fallthru
        _
      %p2132 = scmp.lt.s32.totalorder %s29, 1
      %s2133 = scalar_select %p2132, %s29, 1
      %s2134 = smul.addr %s2133, 8
      %s2135 = scalar_lea.vmem %s16, %s2134
      // Predicated region
      $region93: #{ppo_lstm3_forward.3} parent=83 // pred_check
        %p2136 = pneg %p393
      $region94: #{ppo_lstm3_forward.3} parent=83 // pred_check_branch
        %2138 = sbr.rel (%p2136) target = $region96
      $region95: #{ppo_lstm3_forward.3} parent=83 // pred_region
        _
      $region96: #{ppo_lstm3_forward.3} parent=83 // pred_fallthru
        _
      // Predicated region
      $region97: #{ppo_lstm3_forward.3} parent=83 // pred_check
        %p2139 = pneg %p414
      $region98: #{ppo_lstm3_forward.3} parent=83 // pred_check_branch
        %2141 = sbr.rel (%p2139) target = $region100
      $region99: #{ppo_lstm3_forward.3} parent=83 // pred_region
        _
      $region100: #{ppo_lstm3_forward.3} parent=83 // pred_fallthru
        _
      // Predicated region
      $region101: #{ppo_lstm3_forward.3} parent=83 // pred_check
        %p2142 = pneg %p414
      $region102: #{ppo_lstm3_forward.3} parent=83 // pred_check_branch
        %2144 = sbr.rel (%p2142) target = $region104
      $region103: #{ppo_lstm3_forward.3} parent=83 // pred_region
        _
      $region104: #{ppo_lstm3_forward.3} parent=83 // pred_fallthru
        _
    $region84: #{ppo_lstm3_forward.3} parent=5 // pred_fallthru
      _
    %p2145 = scmp.le.s32.totalorder 2, %s24
    // Predicated region
    $region105: #{ppo_lstm3_forward.3} parent=5 // pred_check
      %p2146 = pneg %p2145
    $region106: #{ppo_lstm3_forward.3} parent=5 // pred_check_branch
      %2148 = sbr.rel (%p2146) target = $region108
    $region107: #{ppo_lstm3_forward.3} parent=5 // pred_region
      %s2149 = ssub.s32 %s24, 2
      // Predicated region
      $region109: #{ppo_lstm3_forward.3} parent=107 // pred_check
        %p2150 = pneg %p399
      $region110: #{ppo_lstm3_forward.3} parent=107 // pred_check_branch
        %2152 = sbr.rel (%p2150) target = $region112
      $region111: #{ppo_lstm3_forward.3} parent=107 // pred_region
        %p2153 = scmp.lt.s32.totalorder %s30, 1
        %s2154 = scalar_select %p2153, %s30, 1
        %s2155 = smul.addr %s2154, 8
        %s2156 = scalar_lea.vmem %s16, %s2155
      $region112: #{ppo_lstm3_forward.3} parent=107 // pred_fallthru
        _
    $region108: #{ppo_lstm3_forward.3} parent=5 // pred_fallthru
      _
  $region6: #{ppo_lstm3_forward.3} parent=0 // loop_footer
    %s28 = sadd.s32 1, %s24
  $region7: #{ppo_lstm3_forward.3} parent=0 // loop_footer_branch
    %23 = sbr.rel target = $region3
  $region8: #{ppo_lstm3_forward.3} parent=0 // loop_exit
    _

</llo_original>
